<compile_context>
chip_gen: v7x
topology: tpu7x:2x2x1
jax: 0.10.0
libtpu: 0.0.40
codegen_flags: <defaults>
</compile_context>

<pallas_src>
import functools

import numpy as np

import jax
import jax.numpy as jnp
from jax.experimental import pallas as pl
from jax.experimental.pallas import tpu as pltpu

EPS = 1e-5
NEG_SLOPE = 0.01  # torch.nn.LeakyReLU default

# Layer geometry for conv_shape = (16, 16):
#   name,  C_in, C_out, stride, H_in, W_in, H_out, W_out
_LAYERS = [
    ("conv1", 1, 8, 1, 16, 16, 16, 16),
    ("conv2", 8, 16, 2, 16, 16, 8, 8),
    ("conv3", 16, 32, 2, 8, 8, 4, 4),
    ("conv4", 32, 64, 2, 4, 4, 2, 2),
]


# ------------------------------------------------------------------ kernel ---

def _fused_kernel(
    x_ref,
    t1, bgb1, s1, st1,
    t2, bgb2, s2, st2,
    t3, bgb3, s3, st3,
    t4, bgb4, s4, st4,
    w1, bgbf1, w2, bf2,
    out_ref,
    pad1, pad2, pad3, pad4,
    *, n,
):
    """Whole ConvEncoder forward for a batch of `n` samples, resident in VMEM.

    Activation layout: 2D (H*N, W*C) slabs, row = h*N + sample, lane = w*C + c.
    pad1 is the conv1 input in contiguous padded-row order (h_pad*N + sample).
    pad2/pad3/pad4 hold the inputs of conv2/3/4 PARITY-SPLIT: all even h_pad
    rows first, then all odd h_pad rows, so every vertical tap of a stride-2
    conv is a single contiguous slab -> one MXU matmul per tap.
    """

    def leaky(v):
        return jnp.where(v >= 0, v, NEG_SLOPE * v)

    def bn_values(ys, sel_ref, selT_ref, bgb_ref, count):
        # Training-mode BatchNorm2d over ALL (sample, h, w) positions per channel.
        # sel_ref : (W*C, C) one-hot selector summing the W lane-groups per channel
        # selT_ref: (C, W*C) its transpose, broadcasting per-channel stats to lanes
        bgb = bgb_ref[...]                       # rows: bias, gamma, beta (bias unused here)
        tot = ys[0].sum(axis=0, keepdims=True)
        for y in ys[1:]:
            tot = tot + y.sum(axis=0, keepdims=True)
        inv_cnt = 1.0 / float(count)
        ch_mean = jnp.dot(tot, sel_ref[...], preferred_element_type=jnp.float32) * inv_cnt
        mean_l = jnp.dot(ch_mean, selT_ref[...], preferred_element_type=jnp.float32)
        dvs = [y - mean_l for y in ys]
        vtot = None
        for d in dvs:
            sq = jnp.sum(d * d, axis=0, keepdims=True)
            vtot = sq if vtot is None else vtot + sq
        ch_var = jnp.dot(vtot, sel_ref[...], preferred_element_type=jnp.float32) * inv_cnt
        inv_l = jnp.dot(jax.lax.rsqrt(ch_var + EPS), selT_ref[...],
                        preferred_element_type=jnp.float32)
        scale = inv_l * bgb[1:2, :]
        shift = bgb[2:3, :]
        return [d * scale + shift for d in dvs]

    def bn_inplace(ref, slabs, sel_ref, selT_ref, bgb_ref, count):
        ys = [ref[pl.ds(r0, rows), :] for r0, rows in slabs]
        outs = bn_values(ys, sel_ref, selT_ref, bgb_ref, count)
        for (r0, rows), o in zip(slabs, outs):
            ref[pl.ds(r0, rows), :] = o

    def conv_s2(pad_in, even_rows, t_ref, bgb_ref, h_out):
        # Stride-2 conv over a parity-split padded input: one MXU matmul per
        # vertical tap, covering ALL output rows at once.
        acc = None
        for di in range(5):
            start = ((di // 2) if di % 2 == 0 else (even_rows + di // 2)) * n
            p = jnp.dot(pad_in[pl.ds(start, h_out * n), :], t_ref[di],
                        preferred_element_type=jnp.float32)
            acc = p if acc is None else acc + p
        return leaky(acc + bgb_ref[...][0:1, :])

    def scatter_split(dst, y, h_rows, even_rows_dst):
        # Write conv output rows h (row = h*n + sample) into the next layer's
        # parity-split padded buffer (h_pad = h + 2; even block first).
        for h in range(h_rows):
            if h % 2 == 0:
                dest = ((h + 2) // 2) * n
            else:
                dest = (even_rows_dst + (h + 1) // 2) * n
            dst[pl.ds(dest, n), :] = y[h * n:(h + 1) * n, :]

    # ---- zero ONLY the H-padding rows that are actually read (scratch memory
    #      is not zero-initialized; the interiors are fully overwritten below).
    z16 = jnp.zeros((2 * n, 16), jnp.float32)
    pad1[pl.ds(0, 2 * n), :] = z16
    pad1[pl.ds(18 * n, 2 * n), :] = z16
    z1 = jnp.zeros((n, 128), jnp.float32)
    z2 = jnp.zeros((2 * n, 128), jnp.float32)
    pad2[pl.ds(0, n), :] = z1
    pad2[pl.ds(9 * n, 2 * n), :] = z2
    pad3[pl.ds(0, n), :] = z1
    pad3[pl.ds(5 * n, 2 * n), :] = z2
    pad4[pl.ds(0, n), :] = z1
    pad4[pl.ds(3 * n, 2 * n), :] = z2

    # ---- InstanceNorm2d(1): per-sample spatial normalization -> pad1 interior.
    x = x_ref[...]                                                     # (N, 256)
    mu = jnp.mean(x, axis=1, keepdims=True)
    dx = x - mu
    var = jnp.mean(dx * dx, axis=1, keepdims=True)
    xn = dx * jax.lax.rsqrt(var + EPS)                                 # (N, 256)
    for h in range(16):
        pad1[pl.ds((h + 2) * n, n), :] = xn[:, h * 16:(h + 1) * 16]

    # ---- conv1 (5x5, stride 1): 5 taps, each batched over all 16 output rows.
    acc = None
    for di in range(5):
        p = jnp.dot(pad1[pl.ds(di * n, 16 * n), :], t1[di],
                    preferred_element_type=jnp.float32)                # (16N, 128)
        acc = p if acc is None else acc + p
    y1 = leaky(acc + bgb1[...][0:1, :])
    scatter_split(pad2, y1, 16, 10)
    bn_inplace(pad2, [(n, 8 * n), (11 * n, 8 * n)], s1, st1, bgb1, n * 16 * 16)

    # ---- conv2..conv4 (5x5, stride 2), parity-split inputs, 5 matmuls each.
    y2 = conv_s2(pad2, 10, t2, bgb2, 8)                                # (8N, 128)
    scatter_split(pad3, y2, 8, 6)
    bn_inplace(pad3, [(n, 4 * n), (7 * n, 4 * n)], s2, st2, bgb2, n * 8 * 8)

    y3 = conv_s2(pad3, 6, t3, bgb3, 4)                                 # (4N, 128)
    scatter_split(pad4, y3, 4, 4)
    bn_inplace(pad4, [(n, 2 * n), (5 * n, 2 * n)], s3, st3, bgb3, n * 4 * 4)

    y4 = conv_s2(pad4, 4, t4, bgb4, 2)                                 # (2N, 128)
    y4 = bn_values([y4], s4, st4, bgb4, n * 2 * 2)[0]

    # ---- fc1 (+ LeakyReLU + BatchNorm1d over the batch) and fc2.
    # y4 rows [0, N) are output row h=0, rows [N, 2N) are h=1; the NCHW-flatten
    # permutation is folded into the packed fc1 weight (w1 rows ordered (h,w,c)).
    bgbf = bgbf1[...]                                                  # (3, 64)
    h1 = (jnp.dot(y4[0:n, :], w1[pl.ds(0, 128), :],
                  preferred_element_type=jnp.float32)
          + jnp.dot(y4[n:2 * n, :], w1[pl.ds(128, 128), :],
                    preferred_element_type=jnp.float32)
          + bgbf[0:1, :])
    h1 = leaky(h1)
    m1 = jnp.mean(h1, axis=0, keepdims=True)
    d1 = h1 - m1
    v1 = jnp.mean(d1 * d1, axis=0, keepdims=True)
    h1 = d1 * jax.lax.rsqrt(v1 + EPS) * bgbf[1:2, :] + bgbf[2:3, :]

    out_ref[...] = jnp.dot(h1, w2[...], preferred_element_type=jnp.float32) + bf2[...]


# ----------------------------------------------------------------- wrapper ---

@jax.jit
def conv_encoder_forward(packed, x_nchw):
    """x_nchw: (N, 1, 16, 16) float32. Returns (N, encoded_dimension)."""
    N = x_nchw.shape[0]
    enc_dim = packed[-1].shape[1]
    x2d = x_nchw.reshape(N, 16 * 16).astype(jnp.float32)

    kernel = functools.partial(_fused_kernel, n=N)
    vmem = pl.BlockSpec(memory_space=pltpu.MemorySpace.VMEM)
    n_in = 1 + len(packed)

    return pl.pallas_call(
        kernel,
        out_shape=jax.ShapeDtypeStruct((N, enc_dim), jnp.float32),
        in_specs=[vmem] * n_in,
        out_specs=vmem,
        scratch_shapes=[
            pltpu.VMEM((20 * N, 16), jnp.float32),    # conv1 input, H-padded, contiguous
            pltpu.VMEM((20 * N, 128), jnp.float32),   # conv2 input (conv1 out), parity-split
            pltpu.VMEM((12 * N, 128), jnp.float32),   # conv3 input, parity-split
            pltpu.VMEM((8 * N, 128), jnp.float32),    # conv4 input, parity-split
        ],
        compiler_params=pltpu.CompilerParams(vmem_limit_bytes=32 * 1024 * 1024),
    )(x2d, *packed)


# ------------------------------------------------------ parameter handling ---

def init_params(key, encoded_dimension):
    """Fresh parameters in PyTorch layouts (Conv2d: (O,I,kh,kw), Linear: (O,I))."""
    k = 5

    def uniform(key, shape, fan_in):
        bound = 1.0 / float(fan_in) ** 0.5
        return jax.random.uniform(key, shape, jnp.float32, -bound, bound)

    keys = jax.random.split(key, 12)
    params = {}
    ki = 0
    for name, cin, cout, *_ in _LAYERS:
        fan_in = cin * k * k
        params[name + "_w"] = uniform(keys[ki], (cout, cin, k, k), fan_in); ki += 1
        params[name + "_b"] = uniform(keys[ki], (cout,), fan_in); ki += 1
        params[name + "_g"] = jnp.ones((cout,), jnp.float32)       # BN gamma
        params[name + "_beta"] = jnp.zeros((cout,), jnp.float32)   # BN beta
    params["fc1_w"] = uniform(keys[ki], (64, 256), 256); ki += 1
    params["fc1_b"] = uniform(keys[ki], (64,), 256); ki += 1
    params["fc1_g"] = jnp.ones((64,), jnp.float32)
    params["fc1_beta"] = jnp.zeros((64,), jnp.float32)
    params["fc2_w"] = uniform(keys[ki], (encoded_dimension, 64), 64); ki += 1
    params["fc2_b"] = uniform(keys[ki], (encoded_dimension,), 64); ki += 1
    return params


def pack_params(params):
    """One-time (outside jit) re-layout of torch-style params into kernel operands.

    Per conv layer: Toeplitz row operators t (5, W_in*C_in, W_out*C_out) folding
    the horizontal taps, stride and W-padding into a matmul; a (3, W_out*C_out)
    stack of lane-tiled {bias, gamma, beta}; and one-hot channel selectors for
    the BatchNorm channel reduction.  fc1's weight is permuted so the kernel's
    (h, w, c) feature order matches PyTorch's NCHW flatten.
    """
    P = {k: np.asarray(v, np.float32) for k, v in params.items()}
    packed = []
    for name, cin, cout, stride, hin, win, hout, wout in _LAYERS:
        w = P[name + "_w"]                                   # (cout, cin, 5, 5)
        t = np.zeros((5, win * cin, wout * cout), np.float32)
        for di in range(5):
            for wo in range(wout):
                for dj in range(5):
                    wi = stride * wo + dj - 2
                    if 0 <= wi < win:
                        t[di,
                          wi * cin:(wi + 1) * cin,
                          wo * cout:(wo + 1) * cout] = w[:, :, di, dj].T
        sel = np.tile(np.eye(cout, dtype=np.float32), (wout, 1))   # (wout*cout, cout)
        bgb = np.stack([np.tile(P[name + "_b"], wout),
                        np.tile(P[name + "_g"], wout),
                        np.tile(P[name + "_beta"], wout)], axis=0)  # (3, wout*cout)
        packed += [t, bgb, sel, sel.T.copy()]
    # fc1: kernel feature index h*128 + w*64 + c  <->  torch index c*4 + h*2 + w.
    perm = np.zeros(256, np.int64)
    for h in range(2):
        for w_ in range(2):
            for c in range(64):
                perm[h * 128 + w_ * 64 + c] = c * 4 + h * 2 + w_
    bgb_fc = np.stack([P["fc1_b"], P["fc1_g"], P["fc1_beta"]], axis=0)  # (3, 64)
    packed += [
        P["fc1_w"][:, perm].T.copy(),            # (256, 64)
        bgb_fc,
        P["fc2_w"].T.copy(),                     # (64, enc)
        P["fc2_b"][None, :],                     # (1, enc)
    ]
    return tuple(jnp.asarray(a) for a in packed)


# --------------------------------------------------- pure-JAX reference -----

def reference_forward(params, x):
    """XLA reference (torch train()-mode semantics) for a correctness check."""
    mu = jnp.mean(x, axis=(2, 3), keepdims=True)
    var = jnp.mean((x - mu) ** 2, axis=(2, 3), keepdims=True)
    h = (x - mu) * jax.lax.rsqrt(var + EPS)
    for name, stride in (("conv1", 1), ("conv2", 2), ("conv3", 2), ("conv4", 2)):
        h = jax.lax.conv_general_dilated(
            h, params[name + "_w"], (stride, stride), ((2, 2), (2, 2)),
            dimension_numbers=("NCHW", "OIHW", "NCHW"))
        h = h + params[name + "_b"].reshape(1, -1, 1, 1)
        h = jnp.where(h >= 0, h, NEG_SLOPE * h)
        m = jnp.mean(h, axis=(0, 2, 3), keepdims=True)
        v = jnp.mean((h - m) ** 2, axis=(0, 2, 3), keepdims=True)
        h = ((h - m) * jax.lax.rsqrt(v + EPS)
             * params[name + "_g"].reshape(1, -1, 1, 1)
             + params[name + "_beta"].reshape(1, -1, 1, 1))
    f = h.reshape(x.shape[0], -1)                       # NCHW flatten (c, h, w)
    z = f @ params["fc1_w"].T + params["fc1_b"]
    z = jnp.where(z >= 0, z, NEG_SLOPE * z)
    m = jnp.mean(z, axis=0, keepdims=True)
    v = jnp.mean((z - m) ** 2, axis=0, keepdims=True)
    z = (z - m) * jax.lax.rsqrt(v + EPS) * params["fc1_g"] + params["fc1_beta"]
    return z @ params["fc2_w"].T + params["fc2_b"]


# -------------------------------------------------------------------- main ---

if __name__ == "__main__":
    encoded_dimension = 8
    key = jax.random.PRNGKey(0)
    k_x, k_p = jax.random.split(key)

    x = jax.random.normal(k_x, (2, 1, 16, 16), jnp.float32)   # NCHW, conv_shape=(16,16)
    params = init_params(k_p, encoded_dimension)
    packed = pack_params(params)                              # one-time weight packing

    enc = conv_encoder_forward(packed, x)
    jax.block_until_ready(enc)
    assert enc.shape == (2, encoded_dimension)

    ref = np.asarray(reference_forward(params, x))
    np.testing.assert_allclose(np.asarray(enc), ref, rtol=5e-2, atol=5e-2)

    print("KERNEL_OK")
</pallas_src>

<mosaic_0001>
module attributes {stable_mosaic.version = 11 : i64} {
  func.func @_fused_kernel(%arg0: memref<2x256xf32, #tpu.memory_space<vmem>>, %arg1: memref<5x16x128xf32, #tpu.memory_space<vmem>>, %arg2: memref<3x128xf32, #tpu.memory_space<vmem>>, %arg3: memref<128x8xf32, #tpu.memory_space<vmem>>, %arg4: memref<8x128xf32, #tpu.memory_space<vmem>>, %arg5: memref<5x128x128xf32, #tpu.memory_space<vmem>>, %arg6: memref<3x128xf32, #tpu.memory_space<vmem>>, %arg7: memref<128x16xf32, #tpu.memory_space<vmem>>, %arg8: memref<16x128xf32, #tpu.memory_space<vmem>>, %arg9: memref<5x128x128xf32, #tpu.memory_space<vmem>>, %arg10: memref<3x128xf32, #tpu.memory_space<vmem>>, %arg11: memref<128x32xf32, #tpu.memory_space<vmem>>, %arg12: memref<32x128xf32, #tpu.memory_space<vmem>>, %arg13: memref<5x128x128xf32, #tpu.memory_space<vmem>>, %arg14: memref<3x128xf32, #tpu.memory_space<vmem>>, %arg15: memref<128x64xf32, #tpu.memory_space<vmem>>, %arg16: memref<64x128xf32, #tpu.memory_space<vmem>>, %arg17: memref<256x64xf32, #tpu.memory_space<vmem>>, %arg18: memref<3x64xf32, #tpu.memory_space<vmem>>, %arg19: memref<64x8xf32, #tpu.memory_space<vmem>>, %arg20: memref<1x8xf32, #tpu.memory_space<vmem>>, %arg21: memref<2x8xf32, #tpu.memory_space<vmem>>, %arg22: memref<40x16xf32, #tpu.memory_space<vmem>>, %arg23: memref<40x128xf32, #tpu.memory_space<vmem>>, %arg24: memref<24x128xf32, #tpu.memory_space<vmem>>, %arg25: memref<16x128xf32, #tpu.memory_space<vmem>>) attributes {dimension_semantics = [], scalar_prefetch = 0 : i64, scratch_operands = 4 : i64, tpu.core_type = #tpu.core_type<tc>} {
    %cst = arith.constant 0.000000e+00 : f32
    %0 = vector.broadcast %cst : f32 to vector<4x16xf32>
    %c0 = arith.constant 0 : index
    %c0_0 = arith.constant 0 : index
    %1 = vector.load %arg22[%c0, %c0_0] : memref<40x16xf32, #tpu.memory_space<vmem>>, vector<4x16xf32>
    tpu.vector_store %arg22[%c0, %c0_0], %0 {strides = array<i32>} : memref<40x16xf32, #tpu.memory_space<vmem>>, vector<4x16xf32>,
    %c36 = arith.constant 36 : index
    %c0_1 = arith.constant 0 : index
    %2 = vector.load %arg22[%c36, %c0_1] : memref<40x16xf32, #tpu.memory_space<vmem>>, vector<4x16xf32>
    tpu.vector_store %arg22[%c36, %c0_1], %0 {strides = array<i32>} : memref<40x16xf32, #tpu.memory_space<vmem>>, vector<4x16xf32>,
    %cst_2 = arith.constant 0.000000e+00 : f32
    %3 = vector.broadcast %cst_2 : f32 to vector<2x128xf32>
    %cst_3 = arith.constant 0.000000e+00 : f32
    %4 = vector.broadcast %cst_3 : f32 to vector<4x128xf32>
    %c0_4 = arith.constant 0 : index
    %c0_5 = arith.constant 0 : index
    %5 = vector.load %arg23[%c0_4, %c0_5] : memref<40x128xf32, #tpu.memory_space<vmem>>, vector<2x128xf32>
    tpu.vector_store %arg23[%c0_4, %c0_5], %3 {strides = array<i32>} : memref<40x128xf32, #tpu.memory_space<vmem>>, vector<2x128xf32>,
    %c18 = arith.constant 18 : index
    %c0_6 = arith.constant 0 : index
    %6 = vector.load %arg23[%c18, %c0_6] : memref<40x128xf32, #tpu.memory_space<vmem>>, vector<4x128xf32>
    tpu.vector_store %arg23[%c18, %c0_6], %4 {strides = array<i32>} : memref<40x128xf32, #tpu.memory_space<vmem>>, vector<4x128xf32>,
    %c0_7 = arith.constant 0 : index
    %c0_8 = arith.constant 0 : index
    %7 = vector.load %arg24[%c0_7, %c0_8] : memref<24x128xf32, #tpu.memory_space<vmem>>, vector<2x128xf32>
    tpu.vector_store %arg24[%c0_7, %c0_8], %3 {strides = array<i32>} : memref<24x128xf32, #tpu.memory_space<vmem>>, vector<2x128xf32>,
    %c10 = arith.constant 10 : index
    %c0_9 = arith.constant 0 : index
    %8 = vector.load %arg24[%c10, %c0_9] : memref<24x128xf32, #tpu.memory_space<vmem>>, vector<4x128xf32>
    tpu.vector_store %arg24[%c10, %c0_9], %4 {strides = array<i32>} : memref<24x128xf32, #tpu.memory_space<vmem>>, vector<4x128xf32>,
    %c0_10 = arith.constant 0 : index
    %c0_11 = arith.constant 0 : index
    %9 = vector.load %arg25[%c0_10, %c0_11] : memref<16x128xf32, #tpu.memory_space<vmem>>, vector<2x128xf32>
    tpu.vector_store %arg25[%c0_10, %c0_11], %3 {strides = array<i32>} : memref<16x128xf32, #tpu.memory_space<vmem>>, vector<2x128xf32>,
    %c6 = arith.constant 6 : index
    %c0_12 = arith.constant 0 : index
    %10 = vector.load %arg25[%c6, %c0_12] : memref<16x128xf32, #tpu.memory_space<vmem>>, vector<4x128xf32>
    tpu.vector_store %arg25[%c6, %c0_12], %4 {strides = array<i32>} : memref<16x128xf32, #tpu.memory_space<vmem>>, vector<4x128xf32>,
    %c0_13 = arith.constant 0 : index
    %c0_14 = arith.constant 0 : index
    %11 = vector.load %arg0[%c0_13, %c0_14] : memref<2x256xf32, #tpu.memory_space<vmem>>, vector<2x256xf32>
    %cst_15 = arith.constant dense<0.000000e+00> : vector<2xf32>
    %12 = vector.multi_reduction <add>, %11, %cst_15 [1] : vector<2x256xf32> to vector<2xf32>
    %13 = vector.shape_cast %12 : vector<2xf32> to vector<2x1xf32>
    %cst_16 = arith.constant 2.560000e+02 : f32
    %14 = vector.broadcast %cst_16 : f32 to vector<2x1xf32>
    %15 = arith.divf %13, %14 : vector<2x1xf32>
    %16 = vector.broadcast %15 : vector<2x1xf32> to vector<2x256xf32>
    %17 = arith.subf %11, %16 : vector<2x256xf32>
    %18 = arith.mulf %17, %17 : vector<2x256xf32>
    %cst_17 = arith.constant dense<0.000000e+00> : vector<2xf32>
    %19 = vector.multi_reduction <add>, %18, %cst_17 [1] : vector<2x256xf32> to vector<2xf32>
    %20 = vector.shape_cast %19 : vector<2xf32> to vector<2x1xf32>
    %cst_18 = arith.constant 2.560000e+02 : f32
    %21 = vector.broadcast %cst_18 : f32 to vector<2x1xf32>
    %22 = arith.divf %20, %21 : vector<2x1xf32>
    %cst_19 = arith.constant 9.99999974E-6 : f32
    %23 = vector.broadcast %cst_19 : f32 to vector<2x1xf32>
    %24 = arith.addf %22, %23 : vector<2x1xf32>
    %25 = math.rsqrt %24 : vector<2x1xf32>
    %26 = vector.broadcast %25 : vector<2x1xf32> to vector<2x256xf32>
    %27 = arith.mulf %17, %26 : vector<2x256xf32>
    %28 = vector.extract_strided_slice %27 {offsets = [0, 0], sizes = [2, 16], strides = [1, 1]} : vector<2x256xf32> to vector<2x16xf32>
    %c4 = arith.constant 4 : index
    %c0_20 = arith.constant 0 : index
    %29 = vector.load %arg22[%c4, %c0_20] : memref<40x16xf32, #tpu.memory_space<vmem>>, vector<2x16xf32>
    tpu.vector_store %arg22[%c4, %c0_20], %28 {strides = array<i32>} : memref<40x16xf32, #tpu.memory_space<vmem>>, vector<2x16xf32>,
    %30 = vector.extract_strided_slice %27 {offsets = [0, 16], sizes = [2, 16], strides = [1, 1]} : vector<2x256xf32> to vector<2x16xf32>
    %c6_21 = arith.constant 6 : index
    %c0_22 = arith.constant 0 : index
    %31 = vector.load %arg22[%c6_21, %c0_22] : memref<40x16xf32, #tpu.memory_space<vmem>>, vector<2x16xf32>
    tpu.vector_store %arg22[%c6_21, %c0_22], %30 {strides = array<i32>} : memref<40x16xf32, #tpu.memory_space<vmem>>, vector<2x16xf32>,
    %32 = vector.extract_strided_slice %27 {offsets = [0, 32], sizes = [2, 16], strides = [1, 1]} : vector<2x256xf32> to vector<2x16xf32>
    %c8 = arith.constant 8 : index
    %c0_23 = arith.constant 0 : index
    %33 = vector.load %arg22[%c8, %c0_23] : memref<40x16xf32, #tpu.memory_space<vmem>>, vector<2x16xf32>
    tpu.vector_store %arg22[%c8, %c0_23], %32 {strides = array<i32>} : memref<40x16xf32, #tpu.memory_space<vmem>>, vector<2x16xf32>,
    %34 = vector.extract_strided_slice %27 {offsets = [0, 48], sizes = [2, 16], strides = [1, 1]} : vector<2x256xf32> to vector<2x16xf32>
    %c10_24 = arith.constant 10 : index
    %c0_25 = arith.constant 0 : index
    %35 = vector.load %arg22[%c10_24, %c0_25] : memref<40x16xf32, #tpu.memory_space<vmem>>, vector<2x16xf32>
    tpu.vector_store %arg22[%c10_24, %c0_25], %34 {strides = array<i32>} : memref<40x16xf32, #tpu.memory_space<vmem>>, vector<2x16xf32>,
    %36 = vector.extract_strided_slice %27 {offsets = [0, 64], sizes = [2, 16], strides = [1, 1]} : vector<2x256xf32> to vector<2x16xf32>
    %c12 = arith.constant 12 : index
    %c0_26 = arith.constant 0 : index
    %37 = vector.load %arg22[%c12, %c0_26] : memref<40x16xf32, #tpu.memory_space<vmem>>, vector<2x16xf32>
    tpu.vector_store %arg22[%c12, %c0_26], %36 {strides = array<i32>} : memref<40x16xf32, #tpu.memory_space<vmem>>, vector<2x16xf32>,
    %38 = vector.extract_strided_slice %27 {offsets = [0, 80], sizes = [2, 16], strides = [1, 1]} : vector<2x256xf32> to vector<2x16xf32>
    %c14 = arith.constant 14 : index
    %c0_27 = arith.constant 0 : index
    %39 = vector.load %arg22[%c14, %c0_27] : memref<40x16xf32, #tpu.memory_space<vmem>>, vector<2x16xf32>
    tpu.vector_store %arg22[%c14, %c0_27], %38 {strides = array<i32>} : memref<40x16xf32, #tpu.memory_space<vmem>>, vector<2x16xf32>,
    %40 = vector.extract_strided_slice %27 {offsets = [0, 96], sizes = [2, 16], strides = [1, 1]} : vector<2x256xf32> to vector<2x16xf32>
    %c16 = arith.constant 16 : index
    %c0_28 = arith.constant 0 : index
    %41 = vector.load %arg22[%c16, %c0_28] : memref<40x16xf32, #tpu.memory_space<vmem>>, vector<2x16xf32>
    tpu.vector_store %arg22[%c16, %c0_28], %40 {strides = array<i32>} : memref<40x16xf32, #tpu.memory_space<vmem>>, vector<2x16xf32>,
    %42 = vector.extract_strided_slice %27 {offsets = [0, 112], sizes = [2, 16], strides = [1, 1]} : vector<2x256xf32> to vector<2x16xf32>
    %c18_29 = arith.constant 18 : index
    %c0_30 = arith.constant 0 : index
    %43 = vector.load %arg22[%c18_29, %c0_30] : memref<40x16xf32, #tpu.memory_space<vmem>>, vector<2x16xf32>
    tpu.vector_store %arg22[%c18_29, %c0_30], %42 {strides = array<i32>} : memref<40x16xf32, #tpu.memory_space<vmem>>, vector<2x16xf32>,
    %44 = vector.extract_strided_slice %27 {offsets = [0, 128], sizes = [2, 16], strides = [1, 1]} : vector<2x256xf32> to vector<2x16xf32>
    %c20 = arith.constant 20 : index
    %c0_31 = arith.constant 0 : index
    %45 = vector.load %arg22[%c20, %c0_31] : memref<40x16xf32, #tpu.memory_space<vmem>>, vector<2x16xf32>
    tpu.vector_store %arg22[%c20, %c0_31], %44 {strides = array<i32>} : memref<40x16xf32, #tpu.memory_space<vmem>>, vector<2x16xf32>,
    %46 = vector.extract_strided_slice %27 {offsets = [0, 144], sizes = [2, 16], strides = [1, 1]} : vector<2x256xf32> to vector<2x16xf32>
    %c22 = arith.constant 22 : index
    %c0_32 = arith.constant 0 : index
    %47 = vector.load %arg22[%c22, %c0_32] : memref<40x16xf32, #tpu.memory_space<vmem>>, vector<2x16xf32>
    tpu.vector_store %arg22[%c22, %c0_32], %46 {strides = array<i32>} : memref<40x16xf32, #tpu.memory_space<vmem>>, vector<2x16xf32>,
    %48 = vector.extract_strided_slice %27 {offsets = [0, 160], sizes = [2, 16], strides = [1, 1]} : vector<2x256xf32> to vector<2x16xf32>
    %c24 = arith.constant 24 : index
    %c0_33 = arith.constant 0 : index
    %49 = vector.load %arg22[%c24, %c0_33] : memref<40x16xf32, #tpu.memory_space<vmem>>, vector<2x16xf32>
    tpu.vector_store %arg22[%c24, %c0_33], %48 {strides = array<i32>} : memref<40x16xf32, #tpu.memory_space<vmem>>, vector<2x16xf32>,
    %50 = vector.extract_strided_slice %27 {offsets = [0, 176], sizes = [2, 16], strides = [1, 1]} : vector<2x256xf32> to vector<2x16xf32>
    %c26 = arith.constant 26 : index
    %c0_34 = arith.constant 0 : index
    %51 = vector.load %arg22[%c26, %c0_34] : memref<40x16xf32, #tpu.memory_space<vmem>>, vector<2x16xf32>
    tpu.vector_store %arg22[%c26, %c0_34], %50 {strides = array<i32>} : memref<40x16xf32, #tpu.memory_space<vmem>>, vector<2x16xf32>,
    %52 = vector.extract_strided_slice %27 {offsets = [0, 192], sizes = [2, 16], strides = [1, 1]} : vector<2x256xf32> to vector<2x16xf32>
    %c28 = arith.constant 28 : index
    %c0_35 = arith.constant 0 : index
    %53 = vector.load %arg22[%c28, %c0_35] : memref<40x16xf32, #tpu.memory_space<vmem>>, vector<2x16xf32>
    tpu.vector_store %arg22[%c28, %c0_35], %52 {strides = array<i32>} : memref<40x16xf32, #tpu.memory_space<vmem>>, vector<2x16xf32>,
    %54 = vector.extract_strided_slice %27 {offsets = [0, 208], sizes = [2, 16], strides = [1, 1]} : vector<2x256xf32> to vector<2x16xf32>
    %c30 = arith.constant 30 : index
    %c0_36 = arith.constant 0 : index
    %55 = vector.load %arg22[%c30, %c0_36] : memref<40x16xf32, #tpu.memory_space<vmem>>, vector<2x16xf32>
    tpu.vector_store %arg22[%c30, %c0_36], %54 {strides = array<i32>} : memref<40x16xf32, #tpu.memory_space<vmem>>, vector<2x16xf32>,
    %56 = vector.extract_strided_slice %27 {offsets = [0, 224], sizes = [2, 16], strides = [1, 1]} : vector<2x256xf32> to vector<2x16xf32>
    %c32 = arith.constant 32 : index
    %c0_37 = arith.constant 0 : index
    %57 = vector.load %arg22[%c32, %c0_37] : memref<40x16xf32, #tpu.memory_space<vmem>>, vector<2x16xf32>
    tpu.vector_store %arg22[%c32, %c0_37], %56 {strides = array<i32>} : memref<40x16xf32, #tpu.memory_space<vmem>>, vector<2x16xf32>,
    %58 = vector.extract_strided_slice %27 {offsets = [0, 240], sizes = [2, 16], strides = [1, 1]} : vector<2x256xf32> to vector<2x16xf32>
    %c34 = arith.constant 34 : index
    %c0_38 = arith.constant 0 : index
    %59 = vector.load %arg22[%c34, %c0_38] : memref<40x16xf32, #tpu.memory_space<vmem>>, vector<2x16xf32>
    tpu.vector_store %arg22[%c34, %c0_38], %58 {strides = array<i32>} : memref<40x16xf32, #tpu.memory_space<vmem>>, vector<2x16xf32>,
    %c0_39 = arith.constant 0 : index
    %c0_40 = arith.constant 0 : index
    %60 = vector.load %arg22[%c0_39, %c0_40] : memref<40x16xf32, #tpu.memory_space<vmem>>, vector<32x16xf32>
    %c0_41 = arith.constant 0 : index
    %c0_42 = arith.constant 0 : index
    %c0_43 = arith.constant 0 : index
    %61 = vector.load %arg1[%c0_41, %c0_42, %c0_43] : memref<5x16x128xf32, #tpu.memory_space<vmem>>, vector<1x16x128xf32>
    %62 = vector.shape_cast %61 : vector<1x16x128xf32> to vector<16x128xf32>
    %cst_44 = arith.constant dense<0.000000e+00> : vector<32x128xf32>
    %63 = tpu.matmul %60, %62, %cst_44 {dimension_numbers = #tpu.dot_dimension_numbers<[1], [0], [0], [1], [0, 0, 1, 1], [], []>} : vector<32x16xf32>, vector<16x128xf32>, vector<32x128xf32> -> vector<32x128xf32>
    %c2 = arith.constant 2 : index
    %c0_45 = arith.constant 0 : index
    %64 = vector.load %arg22[%c2, %c0_45] : memref<40x16xf32, #tpu.memory_space<vmem>>, vector<32x16xf32>
    %c1 = arith.constant 1 : index
    %c0_46 = arith.constant 0 : index
    %c0_47 = arith.constant 0 : index
    %65 = vector.load %arg1[%c1, %c0_46, %c0_47] : memref<5x16x128xf32, #tpu.memory_space<vmem>>, vector<1x16x128xf32>
    %66 = vector.shape_cast %65 : vector<1x16x128xf32> to vector<16x128xf32>
    %cst_48 = arith.constant dense<0.000000e+00> : vector<32x128xf32>
    %67 = tpu.matmul %64, %66, %cst_48 {dimension_numbers = #tpu.dot_dimension_numbers<[1], [0], [0], [1], [0, 0, 1, 1], [], []>} : vector<32x16xf32>, vector<16x128xf32>, vector<32x128xf32> -> vector<32x128xf32>
    %68 = arith.addf %63, %67 : vector<32x128xf32>
    %c4_49 = arith.constant 4 : index
    %c0_50 = arith.constant 0 : index
    %69 = vector.load %arg22[%c4_49, %c0_50] : memref<40x16xf32, #tpu.memory_space<vmem>>, vector<32x16xf32>
    %c2_51 = arith.constant 2 : index
    %c0_52 = arith.constant 0 : index
    %c0_53 = arith.constant 0 : index
    %70 = vector.load %arg1[%c2_51, %c0_52, %c0_53] : memref<5x16x128xf32, #tpu.memory_space<vmem>>, vector<1x16x128xf32>
    %71 = vector.shape_cast %70 : vector<1x16x128xf32> to vector<16x128xf32>
    %cst_54 = arith.constant dense<0.000000e+00> : vector<32x128xf32>
    %72 = tpu.matmul %69, %71, %cst_54 {dimension_numbers = #tpu.dot_dimension_numbers<[1], [0], [0], [1], [0, 0, 1, 1], [], []>} : vector<32x16xf32>, vector<16x128xf32>, vector<32x128xf32> -> vector<32x128xf32>
    %73 = arith.addf %68, %72 : vector<32x128xf32>
    %c6_55 = arith.constant 6 : index
    %c0_56 = arith.constant 0 : index
    %74 = vector.load %arg22[%c6_55, %c0_56] : memref<40x16xf32, #tpu.memory_space<vmem>>, vector<32x16xf32>
    %c3 = arith.constant 3 : index
    %c0_57 = arith.constant 0 : index
    %c0_58 = arith.constant 0 : index
    %75 = vector.load %arg1[%c3, %c0_57, %c0_58] : memref<5x16x128xf32, #tpu.memory_space<vmem>>, vector<1x16x128xf32>
    %76 = vector.shape_cast %75 : vector<1x16x128xf32> to vector<16x128xf32>
    %cst_59 = arith.constant dense<0.000000e+00> : vector<32x128xf32>
    %77 = tpu.matmul %74, %76, %cst_59 {dimension_numbers = #tpu.dot_dimension_numbers<[1], [0], [0], [1], [0, 0, 1, 1], [], []>} : vector<32x16xf32>, vector<16x128xf32>, vector<32x128xf32> -> vector<32x128xf32>
    %78 = arith.addf %73, %77 : vector<32x128xf32>
    %c8_60 = arith.constant 8 : index
    %c0_61 = arith.constant 0 : index
    %79 = vector.load %arg22[%c8_60, %c0_61] : memref<40x16xf32, #tpu.memory_space<vmem>>, vector<32x16xf32>
    %c4_62 = arith.constant 4 : index
    %c0_63 = arith.constant 0 : index
    %c0_64 = arith.constant 0 : index
    %80 = vector.load %arg1[%c4_62, %c0_63, %c0_64] : memref<5x16x128xf32, #tpu.memory_space<vmem>>, vector<1x16x128xf32>
    %81 = vector.shape_cast %80 : vector<1x16x128xf32> to vector<16x128xf32>
    %cst_65 = arith.constant dense<0.000000e+00> : vector<32x128xf32>
    %82 = tpu.matmul %79, %81, %cst_65 {dimension_numbers = #tpu.dot_dimension_numbers<[1], [0], [0], [1], [0, 0, 1, 1], [], []>} : vector<32x16xf32>, vector<16x128xf32>, vector<32x128xf32> -> vector<32x128xf32>
    %83 = arith.addf %78, %82 : vector<32x128xf32>
    %c0_66 = arith.constant 0 : index
    %c0_67 = arith.constant 0 : index
    %84 = vector.load %arg2[%c0_66, %c0_67] : memref<3x128xf32, #tpu.memory_space<vmem>>, vector<3x128xf32>
    %85 = vector.extract_strided_slice %84 {offsets = [0, 0], sizes = [1, 128], strides = [1, 1]} : vector<3x128xf32> to vector<1x128xf32>
    %86 = vector.broadcast %85 : vector<1x128xf32> to vector<32x128xf32>
    %87 = arith.addf %83, %86 : vector<32x128xf32>
    %cst_68 = arith.constant 0.000000e+00 : f32
    %88 = vector.broadcast %cst_68 : f32 to vector<32x128xf32>
    %89 = arith.cmpf oge, %87, %88 : vector<32x128xf32>
    %cst_69 = arith.constant 0.00999999977 : f32
    %90 = vector.broadcast %cst_69 : f32 to vector<32x128xf32>
    %91 = arith.mulf %90, %87 : vector<32x128xf32>
    %92 = arith.select %89, %87, %91 : vector<32x128xi1>, vector<32x128xf32>
    %93 = vector.extract_strided_slice %92 {offsets = [0, 0], sizes = [2, 128], strides = [1, 1]} : vector<32x128xf32> to vector<2x128xf32>
    %c2_70 = arith.constant 2 : index
    %c0_71 = arith.constant 0 : index
    %94 = vector.load %arg23[%c2_70, %c0_71] : memref<40x128xf32, #tpu.memory_space<vmem>>, vector<2x128xf32>
    tpu.vector_store %arg23[%c2_70, %c0_71], %93 {strides = array<i32>} : memref<40x128xf32, #tpu.memory_space<vmem>>, vector<2x128xf32>,
    %95 = vector.extract_strided_slice %92 {offsets = [2, 0], sizes = [2, 128], strides = [1, 1]} : vector<32x128xf32> to vector<2x128xf32>
    %c22_72 = arith.constant 22 : index
    %c0_73 = arith.constant 0 : index
    %96 = vector.load %arg23[%c22_72, %c0_73] : memref<40x128xf32, #tpu.memory_space<vmem>>, vector<2x128xf32>
    tpu.vector_store %arg23[%c22_72, %c0_73], %95 {strides = array<i32>} : memref<40x128xf32, #tpu.memory_space<vmem>>, vector<2x128xf32>,
    %97 = vector.extract_strided_slice %92 {offsets = [4, 0], sizes = [2, 128], strides = [1, 1]} : vector<32x128xf32> to vector<2x128xf32>
    %c4_74 = arith.constant 4 : index
    %c0_75 = arith.constant 0 : index
    %98 = vector.load %arg23[%c4_74, %c0_75] : memref<40x128xf32, #tpu.memory_space<vmem>>, vector<2x128xf32>
    tpu.vector_store %arg23[%c4_74, %c0_75], %97 {strides = array<i32>} : memref<40x128xf32, #tpu.memory_space<vmem>>, vector<2x128xf32>,
    %99 = vector.extract_strided_slice %92 {offsets = [6, 0], sizes = [2, 128], strides = [1, 1]} : vector<32x128xf32> to vector<2x128xf32>
    %c24_76 = arith.constant 24 : index
    %c0_77 = arith.constant 0 : index
    %100 = vector.load %arg23[%c24_76, %c0_77] : memref<40x128xf32, #tpu.memory_space<vmem>>, vector<2x128xf32>
    tpu.vector_store %arg23[%c24_76, %c0_77], %99 {strides = array<i32>} : memref<40x128xf32, #tpu.memory_space<vmem>>, vector<2x128xf32>,
    %101 = vector.extract_strided_slice %92 {offsets = [8, 0], sizes = [2, 128], strides = [1, 1]} : vector<32x128xf32> to vector<2x128xf32>
    %c6_78 = arith.constant 6 : index
    %c0_79 = arith.constant 0 : index
    %102 = vector.load %arg23[%c6_78, %c0_79] : memref<40x128xf32, #tpu.memory_space<vmem>>, vector<2x128xf32>
    tpu.vector_store %arg23[%c6_78, %c0_79], %101 {strides = array<i32>} : memref<40x128xf32, #tpu.memory_space<vmem>>, vector<2x128xf32>,
    %103 = vector.extract_strided_slice %92 {offsets = [10, 0], sizes = [2, 128], strides = [1, 1]} : vector<32x128xf32> to vector<2x128xf32>
    %c26_80 = arith.constant 26 : index
    %c0_81 = arith.constant 0 : index
    %104 = vector.load %arg23[%c26_80, %c0_81] : memref<40x128xf32, #tpu.memory_space<vmem>>, vector<2x128xf32>
    tpu.vector_store %arg23[%c26_80, %c0_81], %103 {strides = array<i32>} : memref<40x128xf32, #tpu.memory_space<vmem>>, vector<2x128xf32>,
    %105 = vector.extract_strided_slice %92 {offsets = [12, 0], sizes = [2, 128], strides = [1, 1]} : vector<32x128xf32> to vector<2x128xf32>
    %c8_82 = arith.constant 8 : index
    %c0_83 = arith.constant 0 : index
    %106 = vector.load %arg23[%c8_82, %c0_83] : memref<40x128xf32, #tpu.memory_space<vmem>>, vector<2x128xf32>
    tpu.vector_store %arg23[%c8_82, %c0_83], %105 {strides = array<i32>} : memref<40x128xf32, #tpu.memory_space<vmem>>, vector<2x128xf32>,
    %107 = vector.extract_strided_slice %92 {offsets = [14, 0], sizes = [2, 128], strides = [1, 1]} : vector<32x128xf32> to vector<2x128xf32>
    %c28_84 = arith.constant 28 : index
    %c0_85 = arith.constant 0 : index
    %108 = vector.load %arg23[%c28_84, %c0_85] : memref<40x128xf32, #tpu.memory_space<vmem>>, vector<2x128xf32>
    tpu.vector_store %arg23[%c28_84, %c0_85], %107 {strides = array<i32>} : memref<40x128xf32, #tpu.memory_space<vmem>>, vector<2x128xf32>,
    %109 = vector.extract_strided_slice %92 {offsets = [16, 0], sizes = [2, 128], strides = [1, 1]} : vector<32x128xf32> to vector<2x128xf32>
    %c10_86 = arith.constant 10 : index
    %c0_87 = arith.constant 0 : index
    %110 = vector.load %arg23[%c10_86, %c0_87] : memref<40x128xf32, #tpu.memory_space<vmem>>, vector<2x128xf32>
    tpu.vector_store %arg23[%c10_86, %c0_87], %109 {strides = array<i32>} : memref<40x128xf32, #tpu.memory_space<vmem>>, vector<2x128xf32>,
    %111 = vector.extract_strided_slice %92 {offsets = [18, 0], sizes = [2, 128], strides = [1, 1]} : vector<32x128xf32> to vector<2x128xf32>
    %c30_88 = arith.constant 30 : index
    %c0_89 = arith.constant 0 : index
    %112 = vector.load %arg23[%c30_88, %c0_89] : memref<40x128xf32, #tpu.memory_space<vmem>>, vector<2x128xf32>
    tpu.vector_store %arg23[%c30_88, %c0_89], %111 {strides = array<i32>} : memref<40x128xf32, #tpu.memory_space<vmem>>, vector<2x128xf32>,
    %113 = vector.extract_strided_slice %92 {offsets = [20, 0], sizes = [2, 128], strides = [1, 1]} : vector<32x128xf32> to vector<2x128xf32>
    %c12_90 = arith.constant 12 : index
    %c0_91 = arith.constant 0 : index
    %114 = vector.load %arg23[%c12_90, %c0_91] : memref<40x128xf32, #tpu.memory_space<vmem>>, vector<2x128xf32>
    tpu.vector_store %arg23[%c12_90, %c0_91], %113 {strides = array<i32>} : memref<40x128xf32, #tpu.memory_space<vmem>>, vector<2x128xf32>,
    %115 = vector.extract_strided_slice %92 {offsets = [22, 0], sizes = [2, 128], strides = [1, 1]} : vector<32x128xf32> to vector<2x128xf32>
    %c32_92 = arith.constant 32 : index
    %c0_93 = arith.constant 0 : index
    %116 = vector.load %arg23[%c32_92, %c0_93] : memref<40x128xf32, #tpu.memory_space<vmem>>, vector<2x128xf32>
    tpu.vector_store %arg23[%c32_92, %c0_93], %115 {strides = array<i32>} : memref<40x128xf32, #tpu.memory_space<vmem>>, vector<2x128xf32>,
    %117 = vector.extract_strided_slice %92 {offsets = [24, 0], sizes = [2, 128], strides = [1, 1]} : vector<32x128xf32> to vector<2x128xf32>
    %c14_94 = arith.constant 14 : index
    %c0_95 = arith.constant 0 : index
    %118 = vector.load %arg23[%c14_94, %c0_95] : memref<40x128xf32, #tpu.memory_space<vmem>>, vector<2x128xf32>
    tpu.vector_store %arg23[%c14_94, %c0_95], %117 {strides = array<i32>} : memref<40x128xf32, #tpu.memory_space<vmem>>, vector<2x128xf32>,
    %119 = vector.extract_strided_slice %92 {offsets = [26, 0], sizes = [2, 128], strides = [1, 1]} : vector<32x128xf32> to vector<2x128xf32>
    %c34_96 = arith.constant 34 : index
    %c0_97 = arith.constant 0 : index
    %120 = vector.load %arg23[%c34_96, %c0_97] : memref<40x128xf32, #tpu.memory_space<vmem>>, vector<2x128xf32>
    tpu.vector_store %arg23[%c34_96, %c0_97], %119 {strides = array<i32>} : memref<40x128xf32, #tpu.memory_space<vmem>>, vector<2x128xf32>,
    %121 = vector.extract_strided_slice %92 {offsets = [28, 0], sizes = [2, 128], strides = [1, 1]} : vector<32x128xf32> to vector<2x128xf32>
    %c16_98 = arith.constant 16 : index
    %c0_99 = arith.constant 0 : index
    %122 = vector.load %arg23[%c16_98, %c0_99] : memref<40x128xf32, #tpu.memory_space<vmem>>, vector<2x128xf32>
    tpu.vector_store %arg23[%c16_98, %c0_99], %121 {strides = array<i32>} : memref<40x128xf32, #tpu.memory_space<vmem>>, vector<2x128xf32>,
    %123 = vector.extract_strided_slice %92 {offsets = [30, 0], sizes = [2, 128], strides = [1, 1]} : vector<32x128xf32> to vector<2x128xf32>
    %c36_100 = arith.constant 36 : index
    %c0_101 = arith.constant 0 : index
    %124 = vector.load %arg23[%c36_100, %c0_101] : memref<40x128xf32, #tpu.memory_space<vmem>>, vector<2x128xf32>
    tpu.vector_store %arg23[%c36_100, %c0_101], %123 {strides = array<i32>} : memref<40x128xf32, #tpu.memory_space<vmem>>, vector<2x128xf32>,
    %c2_102 = arith.constant 2 : index
    %c0_103 = arith.constant 0 : index
    %125 = vector.load %arg23[%c2_102, %c0_103] : memref<40x128xf32, #tpu.memory_space<vmem>>, vector<16x128xf32>
    %c22_104 = arith.constant 22 : index
    %c0_105 = arith.constant 0 : index
    %126 = vector.load %arg23[%c22_104, %c0_105] : memref<40x128xf32, #tpu.memory_space<vmem>>, vector<16x128xf32>
    %c0_106 = arith.constant 0 : index
    %c0_107 = arith.constant 0 : index
    %127 = vector.load %arg2[%c0_106, %c0_107] : memref<3x128xf32, #tpu.memory_space<vmem>>, vector<3x128xf32>
    %cst_108 = arith.constant dense<0.000000e+00> : vector<128xf32>
    %128 = vector.multi_reduction <add>, %125, %cst_108 [0] : vector<16x128xf32> to vector<128xf32>
    %129 = vector.shape_cast %128 : vector<128xf32> to vector<1x128xf32>
    %cst_109 = arith.constant dense<0.000000e+00> : vector<128xf32>
    %130 = vector.multi_reduction <add>, %126, %cst_109 [0] : vector<16x128xf32> to vector<128xf32>
    %131 = vector.shape_cast %130 : vector<128xf32> to vector<1x128xf32>
    %132 = arith.addf %129, %131 : vector<1x128xf32>
    %c0_110 = arith.constant 0 : index
    %c0_111 = arith.constant 0 : index
    %133 = vector.load %arg3[%c0_110, %c0_111] : memref<128x8xf32, #tpu.memory_space<vmem>>, vector<128x8xf32>
    %cst_112 = arith.constant dense<0.000000e+00> : vector<1x8xf32>
    %134 = tpu.matmul %132, %133, %cst_112 {dimension_numbers = #tpu.dot_dimension_numbers<[1], [0], [0], [1], [0, 0, 1, 1], [], []>} : vector<1x128xf32>, vector<128x8xf32>, vector<1x8xf32> -> vector<1x8xf32>
    %cst_113 = arith.constant 0.001953125 : f32
    %135 = vector.broadcast %cst_113 : f32 to vector<1x8xf32>
    %136 = arith.mulf %134, %135 : vector<1x8xf32>
    %c0_114 = arith.constant 0 : index
    %c0_115 = arith.constant 0 : index
    %137 = vector.load %arg4[%c0_114, %c0_115] : memref<8x128xf32, #tpu.memory_space<vmem>>, vector<8x128xf32>
    %cst_116 = arith.constant dense<0.000000e+00> : vector<1x128xf32>
    %138 = tpu.matmul %136, %137, %cst_116 {dimension_numbers = #tpu.dot_dimension_numbers<[1], [0], [0], [1], [0, 0, 1, 1], [], []>} : vector<1x8xf32>, vector<8x128xf32>, vector<1x128xf32> -> vector<1x128xf32>
    %139 = vector.broadcast %138 : vector<1x128xf32> to vector<16x128xf32>
    %140 = arith.subf %125, %139 : vector<16x128xf32>
    %141 = vector.broadcast %138 : vector<1x128xf32> to vector<16x128xf32>
    %142 = arith.subf %126, %141 : vector<16x128xf32>
    %143 = arith.mulf %140, %140 : vector<16x128xf32>
    %cst_117 = arith.constant dense<0.000000e+00> : vector<128xf32>
    %144 = vector.multi_reduction <add>, %143, %cst_117 [0] : vector<16x128xf32> to vector<128xf32>
    %145 = vector.shape_cast %144 : vector<128xf32> to vector<1x128xf32>
    %146 = arith.mulf %142, %142 : vector<16x128xf32>
    %cst_118 = arith.constant dense<0.000000e+00> : vector<128xf32>
    %147 = vector.multi_reduction <add>, %146, %cst_118 [0] : vector<16x128xf32> to vector<128xf32>
    %148 = vector.shape_cast %147 : vector<128xf32> to vector<1x128xf32>
    %149 = arith.addf %145, %148 : vector<1x128xf32>
    %c0_119 = arith.constant 0 : index
    %c0_120 = arith.constant 0 : index
    %150 = vector.load %arg3[%c0_119, %c0_120] : memref<128x8xf32, #tpu.memory_space<vmem>>, vector<128x8xf32>
    %cst_121 = arith.constant dense<0.000000e+00> : vector<1x8xf32>
    %151 = tpu.matmul %149, %150, %cst_121 {dimension_numbers = #tpu.dot_dimension_numbers<[1], [0], [0], [1], [0, 0, 1, 1], [], []>} : vector<1x128xf32>, vector<128x8xf32>, vector<1x8xf32> -> vector<1x8xf32>
    %cst_122 = arith.constant 0.001953125 : f32
    %152 = vector.broadcast %cst_122 : f32 to vector<1x8xf32>
    %153 = arith.mulf %151, %152 : vector<1x8xf32>
    %cst_123 = arith.constant 9.99999974E-6 : f32
    %154 = vector.broadcast %cst_123 : f32 to vector<1x8xf32>
    %155 = arith.addf %153, %154 : vector<1x8xf32>
    %156 = math.rsqrt %155 : vector<1x8xf32>
    %c0_124 = arith.constant 0 : index
    %c0_125 = arith.constant 0 : index
    %157 = vector.load %arg4[%c0_124, %c0_125] : memref<8x128xf32, #tpu.memory_space<vmem>>, vector<8x128xf32>
    %cst_126 = arith.constant dense<0.000000e+00> : vector<1x128xf32>
    %158 = tpu.matmul %156, %157, %cst_126 {dimension_numbers = #tpu.dot_dimension_numbers<[1], [0], [0], [1], [0, 0, 1, 1], [], []>} : vector<1x8xf32>, vector<8x128xf32>, vector<1x128xf32> -> vector<1x128xf32>
    %159 = vector.extract_strided_slice %127 {offsets = [1, 0], sizes = [1, 128], strides = [1, 1]} : vector<3x128xf32> to vector<1x128xf32>
    %160 = arith.mulf %158, %159 : vector<1x128xf32>
    %161 = vector.extract_strided_slice %127 {offsets = [2, 0], sizes = [1, 128], strides = [1, 1]} : vector<3x128xf32> to vector<1x128xf32>
    %162 = vector.broadcast %160 : vector<1x128xf32> to vector<16x128xf32>
    %163 = arith.mulf %140, %162 : vector<16x128xf32>
    %164 = vector.broadcast %161 : vector<1x128xf32> to vector<16x128xf32>
    %165 = arith.addf %163, %164 : vector<16x128xf32>
    %166 = vector.broadcast %160 : vector<1x128xf32> to vector<16x128xf32>
    %167 = arith.mulf %142, %166 : vector<16x128xf32>
    %168 = vector.broadcast %161 : vector<1x128xf32> to vector<16x128xf32>
    %169 = arith.addf %167, %168 : vector<16x128xf32>
    %c2_127 = arith.constant 2 : index
    %c0_128 = arith.constant 0 : index
    %170 = vector.load %arg23[%c2_127, %c0_128] : memref<40x128xf32, #tpu.memory_space<vmem>>, vector<16x128xf32>
    tpu.vector_store %arg23[%c2_127, %c0_128], %165 {strides = array<i32>} : memref<40x128xf32, #tpu.memory_space<vmem>>, vector<16x128xf32>,
    %c22_129 = arith.constant 22 : index
    %c0_130 = arith.constant 0 : index
    %171 = vector.load %arg23[%c22_129, %c0_130] : memref<40x128xf32, #tpu.memory_space<vmem>>, vector<16x128xf32>
    tpu.vector_store %arg23[%c22_129, %c0_130], %169 {strides = array<i32>} : memref<40x128xf32, #tpu.memory_space<vmem>>, vector<16x128xf32>,
    %c0_131 = arith.constant 0 : index
    %c0_132 = arith.constant 0 : index
    %172 = vector.load %arg23[%c0_131, %c0_132] : memref<40x128xf32, #tpu.memory_space<vmem>>, vector<16x128xf32>
    %c0_133 = arith.constant 0 : index
    %c0_134 = arith.constant 0 : index
    %c0_135 = arith.constant 0 : index
    %173 = vector.load %arg5[%c0_133, %c0_134, %c0_135] : memref<5x128x128xf32, #tpu.memory_space<vmem>>, vector<1x128x128xf32>
    %174 = vector.shape_cast %173 : vector<1x128x128xf32> to vector<128x128xf32>
    %cst_136 = arith.constant dense<0.000000e+00> : vector<16x128xf32>
    %175 = tpu.matmul %172, %174, %cst_136 {dimension_numbers = #tpu.dot_dimension_numbers<[1], [0], [0], [1], [0, 0, 1, 1], [], []>} : vector<16x128xf32>, vector<128x128xf32>, vector<16x128xf32> -> vector<16x128xf32>
    %c20_137 = arith.constant 20 : index
    %c0_138 = arith.constant 0 : index
    %176 = vector.load %arg23[%c20_137, %c0_138] : memref<40x128xf32, #tpu.memory_space<vmem>>, vector<16x128xf32>
    %c1_139 = arith.constant 1 : index
    %c0_140 = arith.constant 0 : index
    %c0_141 = arith.constant 0 : index
    %177 = vector.load %arg5[%c1_139, %c0_140, %c0_141] : memref<5x128x128xf32, #tpu.memory_space<vmem>>, vector<1x128x128xf32>
    %178 = vector.shape_cast %177 : vector<1x128x128xf32> to vector<128x128xf32>
    %cst_142 = arith.constant dense<0.000000e+00> : vector<16x128xf32>
    %179 = tpu.matmul %176, %178, %cst_142 {dimension_numbers = #tpu.dot_dimension_numbers<[1], [0], [0], [1], [0, 0, 1, 1], [], []>} : vector<16x128xf32>, vector<128x128xf32>, vector<16x128xf32> -> vector<16x128xf32>
    %180 = arith.addf %175, %179 : vector<16x128xf32>
    %c2_143 = arith.constant 2 : index
    %c0_144 = arith.constant 0 : index
    %181 = vector.load %arg23[%c2_143, %c0_144] : memref<40x128xf32, #tpu.memory_space<vmem>>, vector<16x128xf32>
    %c2_145 = arith.constant 2 : index
    %c0_146 = arith.constant 0 : index
    %c0_147 = arith.constant 0 : index
    %182 = vector.load %arg5[%c2_145, %c0_146, %c0_147] : memref<5x128x128xf32, #tpu.memory_space<vmem>>, vector<1x128x128xf32>
    %183 = vector.shape_cast %182 : vector<1x128x128xf32> to vector<128x128xf32>
    %cst_148 = arith.constant dense<0.000000e+00> : vector<16x128xf32>
    %184 = tpu.matmul %181, %183, %cst_148 {dimension_numbers = #tpu.dot_dimension_numbers<[1], [0], [0], [1], [0, 0, 1, 1], [], []>} : vector<16x128xf32>, vector<128x128xf32>, vector<16x128xf32> -> vector<16x128xf32>
    %185 = arith.addf %180, %184 : vector<16x128xf32>
    %c22_149 = arith.constant 22 : index
    %c0_150 = arith.constant 0 : index
    %186 = vector.load %arg23[%c22_149, %c0_150] : memref<40x128xf32, #tpu.memory_space<vmem>>, vector<16x128xf32>
    %c3_151 = arith.constant 3 : index
    %c0_152 = arith.constant 0 : index
    %c0_153 = arith.constant 0 : index
    %187 = vector.load %arg5[%c3_151, %c0_152, %c0_153] : memref<5x128x128xf32, #tpu.memory_space<vmem>>, vector<1x128x128xf32>
    %188 = vector.shape_cast %187 : vector<1x128x128xf32> to vector<128x128xf32>
    %cst_154 = arith.constant dense<0.000000e+00> : vector<16x128xf32>
    %189 = tpu.matmul %186, %188, %cst_154 {dimension_numbers = #tpu.dot_dimension_numbers<[1], [0], [0], [1], [0, 0, 1, 1], [], []>} : vector<16x128xf32>, vector<128x128xf32>, vector<16x128xf32> -> vector<16x128xf32>
    %190 = arith.addf %185, %189 : vector<16x128xf32>
    %c4_155 = arith.constant 4 : index
    %c0_156 = arith.constant 0 : index
    %191 = vector.load %arg23[%c4_155, %c0_156] : memref<40x128xf32, #tpu.memory_space<vmem>>, vector<16x128xf32>
    %c4_157 = arith.constant 4 : index
    %c0_158 = arith.constant 0 : index
    %c0_159 = arith.constant 0 : index
    %192 = vector.load %arg5[%c4_157, %c0_158, %c0_159] : memref<5x128x128xf32, #tpu.memory_space<vmem>>, vector<1x128x128xf32>
    %193 = vector.shape_cast %192 : vector<1x128x128xf32> to vector<128x128xf32>
    %cst_160 = arith.constant dense<0.000000e+00> : vector<16x128xf32>
    %194 = tpu.matmul %191, %193, %cst_160 {dimension_numbers = #tpu.dot_dimension_numbers<[1], [0], [0], [1], [0, 0, 1, 1], [], []>} : vector<16x128xf32>, vector<128x128xf32>, vector<16x128xf32> -> vector<16x128xf32>
    %195 = arith.addf %190, %194 : vector<16x128xf32>
    %c0_161 = arith.constant 0 : index
    %c0_162 = arith.constant 0 : index
    %196 = vector.load %arg6[%c0_161, %c0_162] : memref<3x128xf32, #tpu.memory_space<vmem>>, vector<3x128xf32>
    %197 = vector.extract_strided_slice %196 {offsets = [0, 0], sizes = [1, 128], strides = [1, 1]} : vector<3x128xf32> to vector<1x128xf32>
    %198 = vector.broadcast %197 : vector<1x128xf32> to vector<16x128xf32>
    %199 = arith.addf %195, %198 : vector<16x128xf32>
    %cst_163 = arith.constant 0.000000e+00 : f32
    %200 = vector.broadcast %cst_163 : f32 to vector<16x128xf32>
    %201 = arith.cmpf oge, %199, %200 : vector<16x128xf32>
    %cst_164 = arith.constant 0.00999999977 : f32
    %202 = vector.broadcast %cst_164 : f32 to vector<16x128xf32>
    %203 = arith.mulf %202, %199 : vector<16x128xf32>
    %204 = arith.select %201, %199, %203 : vector<16x128xi1>, vector<16x128xf32>
    %205 = vector.extract_strided_slice %204 {offsets = [0, 0], sizes = [2, 128], strides = [1, 1]} : vector<16x128xf32> to vector<2x128xf32>
    %c2_165 = arith.constant 2 : index
    %c0_166 = arith.constant 0 : index
    %206 = vector.load %arg24[%c2_165, %c0_166] : memref<24x128xf32, #tpu.memory_space<vmem>>, vector<2x128xf32>
    tpu.vector_store %arg24[%c2_165, %c0_166], %205 {strides = array<i32>} : memref<24x128xf32, #tpu.memory_space<vmem>>, vector<2x128xf32>,
    %207 = vector.extract_strided_slice %204 {offsets = [2, 0], sizes = [2, 128], strides = [1, 1]} : vector<16x128xf32> to vector<2x128xf32>
    %c14_167 = arith.constant 14 : index
    %c0_168 = arith.constant 0 : index
    %208 = vector.load %arg24[%c14_167, %c0_168] : memref<24x128xf32, #tpu.memory_space<vmem>>, vector<2x128xf32>
    tpu.vector_store %arg24[%c14_167, %c0_168], %207 {strides = array<i32>} : memref<24x128xf32, #tpu.memory_space<vmem>>, vector<2x128xf32>,
    %209 = vector.extract_strided_slice %204 {offsets = [4, 0], sizes = [2, 128], strides = [1, 1]} : vector<16x128xf32> to vector<2x128xf32>
    %c4_169 = arith.constant 4 : index
    %c0_170 = arith.constant 0 : index
    %210 = vector.load %arg24[%c4_169, %c0_170] : memref<24x128xf32, #tpu.memory_space<vmem>>, vector<2x128xf32>
    tpu.vector_store %arg24[%c4_169, %c0_170], %209 {strides = array<i32>} : memref<24x128xf32, #tpu.memory_space<vmem>>, vector<2x128xf32>,
    %211 = vector.extract_strided_slice %204 {offsets = [6, 0], sizes = [2, 128], strides = [1, 1]} : vector<16x128xf32> to vector<2x128xf32>
    %c16_171 = arith.constant 16 : index
    %c0_172 = arith.constant 0 : index
    %212 = vector.load %arg24[%c16_171, %c0_172] : memref<24x128xf32, #tpu.memory_space<vmem>>, vector<2x128xf32>
    tpu.vector_store %arg24[%c16_171, %c0_172], %211 {strides = array<i32>} : memref<24x128xf32, #tpu.memory_space<vmem>>, vector<2x128xf32>,
    %213 = vector.extract_strided_slice %204 {offsets = [8, 0], sizes = [2, 128], strides = [1, 1]} : vector<16x128xf32> to vector<2x128xf32>
    %c6_173 = arith.constant 6 : index
    %c0_174 = arith.constant 0 : index
    %214 = vector.load %arg24[%c6_173, %c0_174] : memref<24x128xf32, #tpu.memory_space<vmem>>, vector<2x128xf32>
    tpu.vector_store %arg24[%c6_173, %c0_174], %213 {strides = array<i32>} : memref<24x128xf32, #tpu.memory_space<vmem>>, vector<2x128xf32>,
    %215 = vector.extract_strided_slice %204 {offsets = [10, 0], sizes = [2, 128], strides = [1, 1]} : vector<16x128xf32> to vector<2x128xf32>
    %c18_175 = arith.constant 18 : index
    %c0_176 = arith.constant 0 : index
    %216 = vector.load %arg24[%c18_175, %c0_176] : memref<24x128xf32, #tpu.memory_space<vmem>>, vector<2x128xf32>
    tpu.vector_store %arg24[%c18_175, %c0_176], %215 {strides = array<i32>} : memref<24x128xf32, #tpu.memory_space<vmem>>, vector<2x128xf32>,
    %217 = vector.extract_strided_slice %204 {offsets = [12, 0], sizes = [2, 128], strides = [1, 1]} : vector<16x128xf32> to vector<2x128xf32>
    %c8_177 = arith.constant 8 : index
    %c0_178 = arith.constant 0 : index
    %218 = vector.load %arg24[%c8_177, %c0_178] : memref<24x128xf32, #tpu.memory_space<vmem>>, vector<2x128xf32>
    tpu.vector_store %arg24[%c8_177, %c0_178], %217 {strides = array<i32>} : memref<24x128xf32, #tpu.memory_space<vmem>>, vector<2x128xf32>,
    %219 = vector.extract_strided_slice %204 {offsets = [14, 0], sizes = [2, 128], strides = [1, 1]} : vector<16x128xf32> to vector<2x128xf32>
    %c20_179 = arith.constant 20 : index
    %c0_180 = arith.constant 0 : index
    %220 = vector.load %arg24[%c20_179, %c0_180] : memref<24x128xf32, #tpu.memory_space<vmem>>, vector<2x128xf32>
    tpu.vector_store %arg24[%c20_179, %c0_180], %219 {strides = array<i32>} : memref<24x128xf32, #tpu.memory_space<vmem>>, vector<2x128xf32>,
    %c2_181 = arith.constant 2 : index
    %c0_182 = arith.constant 0 : index
    %221 = vector.load %arg24[%c2_181, %c0_182] : memref<24x128xf32, #tpu.memory_space<vmem>>, vector<8x128xf32>
    %c14_183 = arith.constant 14 : index
    %c0_184 = arith.constant 0 : index
    %222 = vector.load %arg24[%c14_183, %c0_184] : memref<24x128xf32, #tpu.memory_space<vmem>>, vector<8x128xf32>
    %c0_185 = arith.constant 0 : index
    %c0_186 = arith.constant 0 : index
    %223 = vector.load %arg6[%c0_185, %c0_186] : memref<3x128xf32, #tpu.memory_space<vmem>>, vector<3x128xf32>
    %cst_187 = arith.constant dense<0.000000e+00> : vector<128xf32>
    %224 = vector.multi_reduction <add>, %221, %cst_187 [0] : vector<8x128xf32> to vector<128xf32>
    %225 = vector.shape_cast %224 : vector<128xf32> to vector<1x128xf32>
    %cst_188 = arith.constant dense<0.000000e+00> : vector<128xf32>
    %226 = vector.multi_reduction <add>, %222, %cst_188 [0] : vector<8x128xf32> to vector<128xf32>
    %227 = vector.shape_cast %226 : vector<128xf32> to vector<1x128xf32>
    %228 = arith.addf %225, %227 : vector<1x128xf32>
    %c0_189 = arith.constant 0 : index
    %c0_190 = arith.constant 0 : index
    %229 = vector.load %arg7[%c0_189, %c0_190] : memref<128x16xf32, #tpu.memory_space<vmem>>, vector<128x16xf32>
    %cst_191 = arith.constant dense<0.000000e+00> : vector<1x16xf32>
    %230 = tpu.matmul %228, %229, %cst_191 {dimension_numbers = #tpu.dot_dimension_numbers<[1], [0], [0], [1], [0, 0, 1, 1], [], []>} : vector<1x128xf32>, vector<128x16xf32>, vector<1x16xf32> -> vector<1x16xf32>
    %cst_192 = arith.constant 7.812500e-03 : f32
    %231 = vector.broadcast %cst_192 : f32 to vector<1x16xf32>
    %232 = arith.mulf %230, %231 : vector<1x16xf32>
    %c0_193 = arith.constant 0 : index
    %c0_194 = arith.constant 0 : index
    %233 = vector.load %arg8[%c0_193, %c0_194] : memref<16x128xf32, #tpu.memory_space<vmem>>, vector<16x128xf32>
    %cst_195 = arith.constant dense<0.000000e+00> : vector<1x128xf32>
    %234 = tpu.matmul %232, %233, %cst_195 {dimension_numbers = #tpu.dot_dimension_numbers<[1], [0], [0], [1], [0, 0, 1, 1], [], []>} : vector<1x16xf32>, vector<16x128xf32>, vector<1x128xf32> -> vector<1x128xf32>
    %235 = vector.broadcast %234 : vector<1x128xf32> to vector<8x128xf32>
    %236 = arith.subf %221, %235 : vector<8x128xf32>
    %237 = vector.broadcast %234 : vector<1x128xf32> to vector<8x128xf32>
    %238 = arith.subf %222, %237 : vector<8x128xf32>
    %239 = arith.mulf %236, %236 : vector<8x128xf32>
    %cst_196 = arith.constant dense<0.000000e+00> : vector<128xf32>
    %240 = vector.multi_reduction <add>, %239, %cst_196 [0] : vector<8x128xf32> to vector<128xf32>
    %241 = vector.shape_cast %240 : vector<128xf32> to vector<1x128xf32>
    %242 = arith.mulf %238, %238 : vector<8x128xf32>
    %cst_197 = arith.constant dense<0.000000e+00> : vector<128xf32>
    %243 = vector.multi_reduction <add>, %242, %cst_197 [0] : vector<8x128xf32> to vector<128xf32>
    %244 = vector.shape_cast %243 : vector<128xf32> to vector<1x128xf32>
    %245 = arith.addf %241, %244 : vector<1x128xf32>
    %c0_198 = arith.constant 0 : index
    %c0_199 = arith.constant 0 : index
    %246 = vector.load %arg7[%c0_198, %c0_199] : memref<128x16xf32, #tpu.memory_space<vmem>>, vector<128x16xf32>
    %cst_200 = arith.constant dense<0.000000e+00> : vector<1x16xf32>
    %247 = tpu.matmul %245, %246, %cst_200 {dimension_numbers = #tpu.dot_dimension_numbers<[1], [0], [0], [1], [0, 0, 1, 1], [], []>} : vector<1x128xf32>, vector<128x16xf32>, vector<1x16xf32> -> vector<1x16xf32>
    %cst_201 = arith.constant 7.812500e-03 : f32
    %248 = vector.broadcast %cst_201 : f32 to vector<1x16xf32>
    %249 = arith.mulf %247, %248 : vector<1x16xf32>
    %cst_202 = arith.constant 9.99999974E-6 : f32
    %250 = vector.broadcast %cst_202 : f32 to vector<1x16xf32>
    %251 = arith.addf %249, %250 : vector<1x16xf32>
    %252 = math.rsqrt %251 : vector<1x16xf32>
    %c0_203 = arith.constant 0 : index
    %c0_204 = arith.constant 0 : index
    %253 = vector.load %arg8[%c0_203, %c0_204] : memref<16x128xf32, #tpu.memory_space<vmem>>, vector<16x128xf32>
    %cst_205 = arith.constant dense<0.000000e+00> : vector<1x128xf32>
    %254 = tpu.matmul %252, %253, %cst_205 {dimension_numbers = #tpu.dot_dimension_numbers<[1], [0], [0], [1], [0, 0, 1, 1], [], []>} : vector<1x16xf32>, vector<16x128xf32>, vector<1x128xf32> -> vector<1x128xf32>
    %255 = vector.extract_strided_slice %223 {offsets = [1, 0], sizes = [1, 128], strides = [1, 1]} : vector<3x128xf32> to vector<1x128xf32>
    %256 = arith.mulf %254, %255 : vector<1x128xf32>
    %257 = vector.extract_strided_slice %223 {offsets = [2, 0], sizes = [1, 128], strides = [1, 1]} : vector<3x128xf32> to vector<1x128xf32>
    %258 = vector.broadcast %256 : vector<1x128xf32> to vector<8x128xf32>
    %259 = arith.mulf %236, %258 : vector<8x128xf32>
    %260 = vector.broadcast %257 : vector<1x128xf32> to vector<8x128xf32>
    %261 = arith.addf %259, %260 : vector<8x128xf32>
    %262 = vector.broadcast %256 : vector<1x128xf32> to vector<8x128xf32>
    %263 = arith.mulf %238, %262 : vector<8x128xf32>
    %264 = vector.broadcast %257 : vector<1x128xf32> to vector<8x128xf32>
    %265 = arith.addf %263, %264 : vector<8x128xf32>
    %c2_206 = arith.constant 2 : index
    %c0_207 = arith.constant 0 : index
    %266 = vector.load %arg24[%c2_206, %c0_207] : memref<24x128xf32, #tpu.memory_space<vmem>>, vector<8x128xf32>
    tpu.vector_store %arg24[%c2_206, %c0_207], %261 {strides = array<i32>} : memref<24x128xf32, #tpu.memory_space<vmem>>, vector<8x128xf32>,
    %c14_208 = arith.constant 14 : index
    %c0_209 = arith.constant 0 : index
    %267 = vector.load %arg24[%c14_208, %c0_209] : memref<24x128xf32, #tpu.memory_space<vmem>>, vector<8x128xf32>
    tpu.vector_store %arg24[%c14_208, %c0_209], %265 {strides = array<i32>} : memref<24x128xf32, #tpu.memory_space<vmem>>, vector<8x128xf32>,
    %c0_210 = arith.constant 0 : index
    %c0_211 = arith.constant 0 : index
    %268 = vector.load %arg24[%c0_210, %c0_211] : memref<24x128xf32, #tpu.memory_space<vmem>>, vector<8x128xf32>
    %c0_212 = arith.constant 0 : index
    %c0_213 = arith.constant 0 : index
    %c0_214 = arith.constant 0 : index
    %269 = vector.load %arg9[%c0_212, %c0_213, %c0_214] : memref<5x128x128xf32, #tpu.memory_space<vmem>>, vector<1x128x128xf32>
    %270 = vector.shape_cast %269 : vector<1x128x128xf32> to vector<128x128xf32>
    %cst_215 = arith.constant dense<0.000000e+00> : vector<8x128xf32>
    %271 = tpu.matmul %268, %270, %cst_215 {dimension_numbers = #tpu.dot_dimension_numbers<[1], [0], [0], [1], [0, 0, 1, 1], [], []>} : vector<8x128xf32>, vector<128x128xf32>, vector<8x128xf32> -> vector<8x128xf32>
    %c12_216 = arith.constant 12 : index
    %c0_217 = arith.constant 0 : index
    %272 = vector.load %arg24[%c12_216, %c0_217] : memref<24x128xf32, #tpu.memory_space<vmem>>, vector<8x128xf32>
    %c1_218 = arith.constant 1 : index
    %c0_219 = arith.constant 0 : index
    %c0_220 = arith.constant 0 : index
    %273 = vector.load %arg9[%c1_218, %c0_219, %c0_220] : memref<5x128x128xf32, #tpu.memory_space<vmem>>, vector<1x128x128xf32>
    %274 = vector.shape_cast %273 : vector<1x128x128xf32> to vector<128x128xf32>
    %cst_221 = arith.constant dense<0.000000e+00> : vector<8x128xf32>
    %275 = tpu.matmul %272, %274, %cst_221 {dimension_numbers = #tpu.dot_dimension_numbers<[1], [0], [0], [1], [0, 0, 1, 1], [], []>} : vector<8x128xf32>, vector<128x128xf32>, vector<8x128xf32> -> vector<8x128xf32>
    %276 = arith.addf %271, %275 : vector<8x128xf32>
    %c2_222 = arith.constant 2 : index
    %c0_223 = arith.constant 0 : index
    %277 = vector.load %arg24[%c2_222, %c0_223] : memref<24x128xf32, #tpu.memory_space<vmem>>, vector<8x128xf32>
    %c2_224 = arith.constant 2 : index
    %c0_225 = arith.constant 0 : index
    %c0_226 = arith.constant 0 : index
    %278 = vector.load %arg9[%c2_224, %c0_225, %c0_226] : memref<5x128x128xf32, #tpu.memory_space<vmem>>, vector<1x128x128xf32>
    %279 = vector.shape_cast %278 : vector<1x128x128xf32> to vector<128x128xf32>
    %cst_227 = arith.constant dense<0.000000e+00> : vector<8x128xf32>
    %280 = tpu.matmul %277, %279, %cst_227 {dimension_numbers = #tpu.dot_dimension_numbers<[1], [0], [0], [1], [0, 0, 1, 1], [], []>} : vector<8x128xf32>, vector<128x128xf32>, vector<8x128xf32> -> vector<8x128xf32>
    %281 = arith.addf %276, %280 : vector<8x128xf32>
    %c14_228 = arith.constant 14 : index
    %c0_229 = arith.constant 0 : index
    %282 = vector.load %arg24[%c14_228, %c0_229] : memref<24x128xf32, #tpu.memory_space<vmem>>, vector<8x128xf32>
    %c3_230 = arith.constant 3 : index
    %c0_231 = arith.constant 0 : index
    %c0_232 = arith.constant 0 : index
    %283 = vector.load %arg9[%c3_230, %c0_231, %c0_232] : memref<5x128x128xf32, #tpu.memory_space<vmem>>, vector<1x128x128xf32>
    %284 = vector.shape_cast %283 : vector<1x128x128xf32> to vector<128x128xf32>
    %cst_233 = arith.constant dense<0.000000e+00> : vector<8x128xf32>
    %285 = tpu.matmul %282, %284, %cst_233 {dimension_numbers = #tpu.dot_dimension_numbers<[1], [0], [0], [1], [0, 0, 1, 1], [], []>} : vector<8x128xf32>, vector<128x128xf32>, vector<8x128xf32> -> vector<8x128xf32>
    %286 = arith.addf %281, %285 : vector<8x128xf32>
    %c4_234 = arith.constant 4 : index
    %c0_235 = arith.constant 0 : index
    %287 = vector.load %arg24[%c4_234, %c0_235] : memref<24x128xf32, #tpu.memory_space<vmem>>, vector<8x128xf32>
    %c4_236 = arith.constant 4 : index
    %c0_237 = arith.constant 0 : index
    %c0_238 = arith.constant 0 : index
    %288 = vector.load %arg9[%c4_236, %c0_237, %c0_238] : memref<5x128x128xf32, #tpu.memory_space<vmem>>, vector<1x128x128xf32>
    %289 = vector.shape_cast %288 : vector<1x128x128xf32> to vector<128x128xf32>
    %cst_239 = arith.constant dense<0.000000e+00> : vector<8x128xf32>
    %290 = tpu.matmul %287, %289, %cst_239 {dimension_numbers = #tpu.dot_dimension_numbers<[1], [0], [0], [1], [0, 0, 1, 1], [], []>} : vector<8x128xf32>, vector<128x128xf32>, vector<8x128xf32> -> vector<8x128xf32>
    %291 = arith.addf %286, %290 : vector<8x128xf32>
    %c0_240 = arith.constant 0 : index
    %c0_241 = arith.constant 0 : index
    %292 = vector.load %arg10[%c0_240, %c0_241] : memref<3x128xf32, #tpu.memory_space<vmem>>, vector<3x128xf32>
    %293 = vector.extract_strided_slice %292 {offsets = [0, 0], sizes = [1, 128], strides = [1, 1]} : vector<3x128xf32> to vector<1x128xf32>
    %294 = vector.broadcast %293 : vector<1x128xf32> to vector<8x128xf32>
    %295 = arith.addf %291, %294 : vector<8x128xf32>
    %cst_242 = arith.constant 0.000000e+00 : f32
    %296 = vector.broadcast %cst_242 : f32 to vector<8x128xf32>
    %297 = arith.cmpf oge, %295, %296 : vector<8x128xf32>
    %cst_243 = arith.constant 0.00999999977 : f32
    %298 = vector.broadcast %cst_243 : f32 to vector<8x128xf32>
    %299 = arith.mulf %298, %295 : vector<8x128xf32>
    %300 = arith.select %297, %295, %299 : vector<8x128xi1>, vector<8x128xf32>
    %301 = vector.extract_strided_slice %300 {offsets = [0, 0], sizes = [2, 128], strides = [1, 1]} : vector<8x128xf32> to vector<2x128xf32>
    %c2_244 = arith.constant 2 : index
    %c0_245 = arith.constant 0 : index
    %302 = vector.load %arg25[%c2_244, %c0_245] : memref<16x128xf32, #tpu.memory_space<vmem>>, vector<2x128xf32>
    tpu.vector_store %arg25[%c2_244, %c0_245], %301 {strides = array<i32>} : memref<16x128xf32, #tpu.memory_space<vmem>>, vector<2x128xf32>,
    %303 = vector.extract_strided_slice %300 {offsets = [2, 0], sizes = [2, 128], strides = [1, 1]} : vector<8x128xf32> to vector<2x128xf32>
    %c10_246 = arith.constant 10 : index
    %c0_247 = arith.constant 0 : index
    %304 = vector.load %arg25[%c10_246, %c0_247] : memref<16x128xf32, #tpu.memory_space<vmem>>, vector<2x128xf32>
    tpu.vector_store %arg25[%c10_246, %c0_247], %303 {strides = array<i32>} : memref<16x128xf32, #tpu.memory_space<vmem>>, vector<2x128xf32>,
    %305 = vector.extract_strided_slice %300 {offsets = [4, 0], sizes = [2, 128], strides = [1, 1]} : vector<8x128xf32> to vector<2x128xf32>
    %c4_248 = arith.constant 4 : index
    %c0_249 = arith.constant 0 : index
    %306 = vector.load %arg25[%c4_248, %c0_249] : memref<16x128xf32, #tpu.memory_space<vmem>>, vector<2x128xf32>
    tpu.vector_store %arg25[%c4_248, %c0_249], %305 {strides = array<i32>} : memref<16x128xf32, #tpu.memory_space<vmem>>, vector<2x128xf32>,
    %307 = vector.extract_strided_slice %300 {offsets = [6, 0], sizes = [2, 128], strides = [1, 1]} : vector<8x128xf32> to vector<2x128xf32>
    %c12_250 = arith.constant 12 : index
    %c0_251 = arith.constant 0 : index
    %308 = vector.load %arg25[%c12_250, %c0_251] : memref<16x128xf32, #tpu.memory_space<vmem>>, vector<2x128xf32>
    tpu.vector_store %arg25[%c12_250, %c0_251], %307 {strides = array<i32>} : memref<16x128xf32, #tpu.memory_space<vmem>>, vector<2x128xf32>,
    %c2_252 = arith.constant 2 : index
    %c0_253 = arith.constant 0 : index
    %309 = vector.load %arg25[%c2_252, %c0_253] : memref<16x128xf32, #tpu.memory_space<vmem>>, vector<4x128xf32>
    %c10_254 = arith.constant 10 : index
    %c0_255 = arith.constant 0 : index
    %310 = vector.load %arg25[%c10_254, %c0_255] : memref<16x128xf32, #tpu.memory_space<vmem>>, vector<4x128xf32>
    %c0_256 = arith.constant 0 : index
    %c0_257 = arith.constant 0 : index
    %311 = vector.load %arg10[%c0_256, %c0_257] : memref<3x128xf32, #tpu.memory_space<vmem>>, vector<3x128xf32>
    %cst_258 = arith.constant dense<0.000000e+00> : vector<128xf32>
    %312 = vector.multi_reduction <add>, %309, %cst_258 [0] : vector<4x128xf32> to vector<128xf32>
    %313 = vector.shape_cast %312 : vector<128xf32> to vector<1x128xf32>
    %cst_259 = arith.constant dense<0.000000e+00> : vector<128xf32>
    %314 = vector.multi_reduction <add>, %310, %cst_259 [0] : vector<4x128xf32> to vector<128xf32>
    %315 = vector.shape_cast %314 : vector<128xf32> to vector<1x128xf32>
    %316 = arith.addf %313, %315 : vector<1x128xf32>
    %c0_260 = arith.constant 0 : index
    %c0_261 = arith.constant 0 : index
    %317 = vector.load %arg11[%c0_260, %c0_261] : memref<128x32xf32, #tpu.memory_space<vmem>>, vector<128x32xf32>
    %cst_262 = arith.constant dense<0.000000e+00> : vector<1x32xf32>
    %318 = tpu.matmul %316, %317, %cst_262 {dimension_numbers = #tpu.dot_dimension_numbers<[1], [0], [0], [1], [0, 0, 1, 1], [], []>} : vector<1x128xf32>, vector<128x32xf32>, vector<1x32xf32> -> vector<1x32xf32>
    %cst_263 = arith.constant 3.125000e-02 : f32
    %319 = vector.broadcast %cst_263 : f32 to vector<1x32xf32>
    %320 = arith.mulf %318, %319 : vector<1x32xf32>
    %c0_264 = arith.constant 0 : index
    %c0_265 = arith.constant 0 : index
    %321 = vector.load %arg12[%c0_264, %c0_265] : memref<32x128xf32, #tpu.memory_space<vmem>>, vector<32x128xf32>
    %cst_266 = arith.constant dense<0.000000e+00> : vector<1x128xf32>
    %322 = tpu.matmul %320, %321, %cst_266 {dimension_numbers = #tpu.dot_dimension_numbers<[1], [0], [0], [1], [0, 0, 1, 1], [], []>} : vector<1x32xf32>, vector<32x128xf32>, vector<1x128xf32> -> vector<1x128xf32>
    %323 = vector.broadcast %322 : vector<1x128xf32> to vector<4x128xf32>
    %324 = arith.subf %309, %323 : vector<4x128xf32>
    %325 = vector.broadcast %322 : vector<1x128xf32> to vector<4x128xf32>
    %326 = arith.subf %310, %325 : vector<4x128xf32>
    %327 = arith.mulf %324, %324 : vector<4x128xf32>
    %cst_267 = arith.constant dense<0.000000e+00> : vector<128xf32>
    %328 = vector.multi_reduction <add>, %327, %cst_267 [0] : vector<4x128xf32> to vector<128xf32>
    %329 = vector.shape_cast %328 : vector<128xf32> to vector<1x128xf32>
    %330 = arith.mulf %326, %326 : vector<4x128xf32>
    %cst_268 = arith.constant dense<0.000000e+00> : vector<128xf32>
    %331 = vector.multi_reduction <add>, %330, %cst_268 [0] : vector<4x128xf32> to vector<128xf32>
    %332 = vector.shape_cast %331 : vector<128xf32> to vector<1x128xf32>
    %333 = arith.addf %329, %332 : vector<1x128xf32>
    %c0_269 = arith.constant 0 : index
    %c0_270 = arith.constant 0 : index
    %334 = vector.load %arg11[%c0_269, %c0_270] : memref<128x32xf32, #tpu.memory_space<vmem>>, vector<128x32xf32>
    %cst_271 = arith.constant dense<0.000000e+00> : vector<1x32xf32>
    %335 = tpu.matmul %333, %334, %cst_271 {dimension_numbers = #tpu.dot_dimension_numbers<[1], [0], [0], [1], [0, 0, 1, 1], [], []>} : vector<1x128xf32>, vector<128x32xf32>, vector<1x32xf32> -> vector<1x32xf32>
    %cst_272 = arith.constant 3.125000e-02 : f32
    %336 = vector.broadcast %cst_272 : f32 to vector<1x32xf32>
    %337 = arith.mulf %335, %336 : vector<1x32xf32>
    %cst_273 = arith.constant 9.99999974E-6 : f32
    %338 = vector.broadcast %cst_273 : f32 to vector<1x32xf32>
    %339 = arith.addf %337, %338 : vector<1x32xf32>
    %340 = math.rsqrt %339 : vector<1x32xf32>
    %c0_274 = arith.constant 0 : index
    %c0_275 = arith.constant 0 : index
    %341 = vector.load %arg12[%c0_274, %c0_275] : memref<32x128xf32, #tpu.memory_space<vmem>>, vector<32x128xf32>
    %cst_276 = arith.constant dense<0.000000e+00> : vector<1x128xf32>
    %342 = tpu.matmul %340, %341, %cst_276 {dimension_numbers = #tpu.dot_dimension_numbers<[1], [0], [0], [1], [0, 0, 1, 1], [], []>} : vector<1x32xf32>, vector<32x128xf32>, vector<1x128xf32> -> vector<1x128xf32>
    %343 = vector.extract_strided_slice %311 {offsets = [1, 0], sizes = [1, 128], strides = [1, 1]} : vector<3x128xf32> to vector<1x128xf32>
    %344 = arith.mulf %342, %343 : vector<1x128xf32>
    %345 = vector.extract_strided_slice %311 {offsets = [2, 0], sizes = [1, 128], strides = [1, 1]} : vector<3x128xf32> to vector<1x128xf32>
    %346 = vector.broadcast %344 : vector<1x128xf32> to vector<4x128xf32>
    %347 = arith.mulf %324, %346 : vector<4x128xf32>
    %348 = vector.broadcast %345 : vector<1x128xf32> to vector<4x128xf32>
    %349 = arith.addf %347, %348 : vector<4x128xf32>
    %350 = vector.broadcast %344 : vector<1x128xf32> to vector<4x128xf32>
    %351 = arith.mulf %326, %350 : vector<4x128xf32>
    %352 = vector.broadcast %345 : vector<1x128xf32> to vector<4x128xf32>
    %353 = arith.addf %351, %352 : vector<4x128xf32>
    %c2_277 = arith.constant 2 : index
    %c0_278 = arith.constant 0 : index
    %354 = vector.load %arg25[%c2_277, %c0_278] : memref<16x128xf32, #tpu.memory_space<vmem>>, vector<4x128xf32>
    tpu.vector_store %arg25[%c2_277, %c0_278], %349 {strides = array<i32>} : memref<16x128xf32, #tpu.memory_space<vmem>>, vector<4x128xf32>,
    %c10_279 = arith.constant 10 : index
    %c0_280 = arith.constant 0 : index
    %355 = vector.load %arg25[%c10_279, %c0_280] : memref<16x128xf32, #tpu.memory_space<vmem>>, vector<4x128xf32>
    tpu.vector_store %arg25[%c10_279, %c0_280], %353 {strides = array<i32>} : memref<16x128xf32, #tpu.memory_space<vmem>>, vector<4x128xf32>,
    %c0_281 = arith.constant 0 : index
    %c0_282 = arith.constant 0 : index
    %356 = vector.load %arg25[%c0_281, %c0_282] : memref<16x128xf32, #tpu.memory_space<vmem>>, vector<4x128xf32>
    %c0_283 = arith.constant 0 : index
    %c0_284 = arith.constant 0 : index
    %c0_285 = arith.constant 0 : index
    %357 = vector.load %arg13[%c0_283, %c0_284, %c0_285] : memref<5x128x128xf32, #tpu.memory_space<vmem>>, vector<1x128x128xf32>
    %358 = vector.shape_cast %357 : vector<1x128x128xf32> to vector<128x128xf32>
    %cst_286 = arith.constant dense<0.000000e+00> : vector<4x128xf32>
    %359 = tpu.matmul %356, %358, %cst_286 {dimension_numbers = #tpu.dot_dimension_numbers<[1], [0], [0], [1], [0, 0, 1, 1], [], []>} : vector<4x128xf32>, vector<128x128xf32>, vector<4x128xf32> -> vector<4x128xf32>
    %c8_287 = arith.constant 8 : index
    %c0_288 = arith.constant 0 : index
    %360 = vector.load %arg25[%c8_287, %c0_288] : memref<16x128xf32, #tpu.memory_space<vmem>>, vector<4x128xf32>
    %c1_289 = arith.constant 1 : index
    %c0_290 = arith.constant 0 : index
    %c0_291 = arith.constant 0 : index
    %361 = vector.load %arg13[%c1_289, %c0_290, %c0_291] : memref<5x128x128xf32, #tpu.memory_space<vmem>>, vector<1x128x128xf32>
    %362 = vector.shape_cast %361 : vector<1x128x128xf32> to vector<128x128xf32>
    %cst_292 = arith.constant dense<0.000000e+00> : vector<4x128xf32>
    %363 = tpu.matmul %360, %362, %cst_292 {dimension_numbers = #tpu.dot_dimension_numbers<[1], [0], [0], [1], [0, 0, 1, 1], [], []>} : vector<4x128xf32>, vector<128x128xf32>, vector<4x128xf32> -> vector<4x128xf32>
    %364 = arith.addf %359, %363 : vector<4x128xf32>
    %c2_293 = arith.constant 2 : index
    %c0_294 = arith.constant 0 : index
    %365 = vector.load %arg25[%c2_293, %c0_294] : memref<16x128xf32, #tpu.memory_space<vmem>>, vector<4x128xf32>
    %c2_295 = arith.constant 2 : index
    %c0_296 = arith.constant 0 : index
    %c0_297 = arith.constant 0 : index
    %366 = vector.load %arg13[%c2_295, %c0_296, %c0_297] : memref<5x128x128xf32, #tpu.memory_space<vmem>>, vector<1x128x128xf32>
    %367 = vector.shape_cast %366 : vector<1x128x128xf32> to vector<128x128xf32>
    %cst_298 = arith.constant dense<0.000000e+00> : vector<4x128xf32>
    %368 = tpu.matmul %365, %367, %cst_298 {dimension_numbers = #tpu.dot_dimension_numbers<[1], [0], [0], [1], [0, 0, 1, 1], [], []>} : vector<4x128xf32>, vector<128x128xf32>, vector<4x128xf32> -> vector<4x128xf32>
    %369 = arith.addf %364, %368 : vector<4x128xf32>
    %c10_299 = arith.constant 10 : index
    %c0_300 = arith.constant 0 : index
    %370 = vector.load %arg25[%c10_299, %c0_300] : memref<16x128xf32, #tpu.memory_space<vmem>>, vector<4x128xf32>
    %c3_301 = arith.constant 3 : index
    %c0_302 = arith.constant 0 : index
    %c0_303 = arith.constant 0 : index
    %371 = vector.load %arg13[%c3_301, %c0_302, %c0_303] : memref<5x128x128xf32, #tpu.memory_space<vmem>>, vector<1x128x128xf32>
    %372 = vector.shape_cast %371 : vector<1x128x128xf32> to vector<128x128xf32>
    %cst_304 = arith.constant dense<0.000000e+00> : vector<4x128xf32>
    %373 = tpu.matmul %370, %372, %cst_304 {dimension_numbers = #tpu.dot_dimension_numbers<[1], [0], [0], [1], [0, 0, 1, 1], [], []>} : vector<4x128xf32>, vector<128x128xf32>, vector<4x128xf32> -> vector<4x128xf32>
    %374 = arith.addf %369, %373 : vector<4x128xf32>
    %c4_305 = arith.constant 4 : index
    %c0_306 = arith.constant 0 : index
    %375 = vector.load %arg25[%c4_305, %c0_306] : memref<16x128xf32, #tpu.memory_space<vmem>>, vector<4x128xf32>
    %c4_307 = arith.constant 4 : index
    %c0_308 = arith.constant 0 : index
    %c0_309 = arith.constant 0 : index
    %376 = vector.load %arg13[%c4_307, %c0_308, %c0_309] : memref<5x128x128xf32, #tpu.memory_space<vmem>>, vector<1x128x128xf32>
    %377 = vector.shape_cast %376 : vector<1x128x128xf32> to vector<128x128xf32>
    %cst_310 = arith.constant dense<0.000000e+00> : vector<4x128xf32>
    %378 = tpu.matmul %375, %377, %cst_310 {dimension_numbers = #tpu.dot_dimension_numbers<[1], [0], [0], [1], [0, 0, 1, 1], [], []>} : vector<4x128xf32>, vector<128x128xf32>, vector<4x128xf32> -> vector<4x128xf32>
    %379 = arith.addf %374, %378 : vector<4x128xf32>
    %c0_311 = arith.constant 0 : index
    %c0_312 = arith.constant 0 : index
    %380 = vector.load %arg14[%c0_311, %c0_312] : memref<3x128xf32, #tpu.memory_space<vmem>>, vector<3x128xf32>
    %381 = vector.extract_strided_slice %380 {offsets = [0, 0], sizes = [1, 128], strides = [1, 1]} : vector<3x128xf32> to vector<1x128xf32>
    %382 = vector.broadcast %381 : vector<1x128xf32> to vector<4x128xf32>
    %383 = arith.addf %379, %382 : vector<4x128xf32>
    %cst_313 = arith.constant 0.000000e+00 : f32
    %384 = vector.broadcast %cst_313 : f32 to vector<4x128xf32>
    %385 = arith.cmpf oge, %383, %384 : vector<4x128xf32>
    %cst_314 = arith.constant 0.00999999977 : f32
    %386 = vector.broadcast %cst_314 : f32 to vector<4x128xf32>
    %387 = arith.mulf %386, %383 : vector<4x128xf32>
    %388 = arith.select %385, %383, %387 : vector<4x128xi1>, vector<4x128xf32>
    %c0_315 = arith.constant 0 : index
    %c0_316 = arith.constant 0 : index
    %389 = vector.load %arg14[%c0_315, %c0_316] : memref<3x128xf32, #tpu.memory_space<vmem>>, vector<3x128xf32>
    %cst_317 = arith.constant dense<0.000000e+00> : vector<128xf32>
    %390 = vector.multi_reduction <add>, %388, %cst_317 [0] : vector<4x128xf32> to vector<128xf32>
    %391 = vector.shape_cast %390 : vector<128xf32> to vector<1x128xf32>
    %c0_318 = arith.constant 0 : index
    %c0_319 = arith.constant 0 : index
    %392 = vector.load %arg15[%c0_318, %c0_319] : memref<128x64xf32, #tpu.memory_space<vmem>>, vector<128x64xf32>
    %cst_320 = arith.constant dense<0.000000e+00> : vector<1x64xf32>
    %393 = tpu.matmul %391, %392, %cst_320 {dimension_numbers = #tpu.dot_dimension_numbers<[1], [0], [0], [1], [0, 0, 1, 1], [], []>} : vector<1x128xf32>, vector<128x64xf32>, vector<1x64xf32> -> vector<1x64xf32>
    %cst_321 = arith.constant 1.250000e-01 : f32
    %394 = vector.broadcast %cst_321 : f32 to vector<1x64xf32>
    %395 = arith.mulf %393, %394 : vector<1x64xf32>
    %c0_322 = arith.constant 0 : index
    %c0_323 = arith.constant 0 : index
    %396 = vector.load %arg16[%c0_322, %c0_323] : memref<64x128xf32, #tpu.memory_space<vmem>>, vector<64x128xf32>
    %cst_324 = arith.constant dense<0.000000e+00> : vector<1x128xf32>
    %397 = tpu.matmul %395, %396, %cst_324 {dimension_numbers = #tpu.dot_dimension_numbers<[1], [0], [0], [1], [0, 0, 1, 1], [], []>} : vector<1x64xf32>, vector<64x128xf32>, vector<1x128xf32> -> vector<1x128xf32>
    %398 = vector.broadcast %397 : vector<1x128xf32> to vector<4x128xf32>
    %399 = arith.subf %388, %398 : vector<4x128xf32>
    %400 = arith.mulf %399, %399 : vector<4x128xf32>
    %cst_325 = arith.constant dense<0.000000e+00> : vector<128xf32>
    %401 = vector.multi_reduction <add>, %400, %cst_325 [0] : vector<4x128xf32> to vector<128xf32>
    %402 = vector.shape_cast %401 : vector<128xf32> to vector<1x128xf32>
    %c0_326 = arith.constant 0 : index
    %c0_327 = arith.constant 0 : index
    %403 = vector.load %arg15[%c0_326, %c0_327] : memref<128x64xf32, #tpu.memory_space<vmem>>, vector<128x64xf32>
    %cst_328 = arith.constant dense<0.000000e+00> : vector<1x64xf32>
    %404 = tpu.matmul %402, %403, %cst_328 {dimension_numbers = #tpu.dot_dimension_numbers<[1], [0], [0], [1], [0, 0, 1, 1], [], []>} : vector<1x128xf32>, vector<128x64xf32>, vector<1x64xf32> -> vector<1x64xf32>
    %cst_329 = arith.constant 1.250000e-01 : f32
    %405 = vector.broadcast %cst_329 : f32 to vector<1x64xf32>
    %406 = arith.mulf %404, %405 : vector<1x64xf32>
    %cst_330 = arith.constant 9.99999974E-6 : f32
    %407 = vector.broadcast %cst_330 : f32 to vector<1x64xf32>
    %408 = arith.addf %406, %407 : vector<1x64xf32>
    %409 = math.rsqrt %408 : vector<1x64xf32>
    %c0_331 = arith.constant 0 : index
    %c0_332 = arith.constant 0 : index
    %410 = vector.load %arg16[%c0_331, %c0_332] : memref<64x128xf32, #tpu.memory_space<vmem>>, vector<64x128xf32>
    %cst_333 = arith.constant dense<0.000000e+00> : vector<1x128xf32>
    %411 = tpu.matmul %409, %410, %cst_333 {dimension_numbers = #tpu.dot_dimension_numbers<[1], [0], [0], [1], [0, 0, 1, 1], [], []>} : vector<1x64xf32>, vector<64x128xf32>, vector<1x128xf32> -> vector<1x128xf32>
    %412 = vector.extract_strided_slice %389 {offsets = [1, 0], sizes = [1, 128], strides = [1, 1]} : vector<3x128xf32> to vector<1x128xf32>
    %413 = arith.mulf %411, %412 : vector<1x128xf32>
    %414 = vector.extract_strided_slice %389 {offsets = [2, 0], sizes = [1, 128], strides = [1, 1]} : vector<3x128xf32> to vector<1x128xf32>
    %415 = vector.broadcast %413 : vector<1x128xf32> to vector<4x128xf32>
    %416 = arith.mulf %399, %415 : vector<4x128xf32>
    %417 = vector.broadcast %414 : vector<1x128xf32> to vector<4x128xf32>
    %418 = arith.addf %416, %417 : vector<4x128xf32>
    %c0_334 = arith.constant 0 : index
    %c0_335 = arith.constant 0 : index
    %419 = vector.load %arg18[%c0_334, %c0_335] : memref<3x64xf32, #tpu.memory_space<vmem>>, vector<3x64xf32>
    %420 = vector.extract_strided_slice %418 {offsets = [0, 0], sizes = [2, 128], strides = [1, 1]} : vector<4x128xf32> to vector<2x128xf32>
    %c0_336 = arith.constant 0 : index
    %c0_337 = arith.constant 0 : index
    %421 = vector.load %arg17[%c0_336, %c0_337] : memref<256x64xf32, #tpu.memory_space<vmem>>, vector<128x64xf32>
    %cst_338 = arith.constant dense<0.000000e+00> : vector<2x64xf32>
    %422 = tpu.matmul %420, %421, %cst_338 {dimension_numbers = #tpu.dot_dimension_numbers<[1], [0], [0], [1], [0, 0, 1, 1], [], []>} : vector<2x128xf32>, vector<128x64xf32>, vector<2x64xf32> -> vector<2x64xf32>
    %423 = vector.extract_strided_slice %418 {offsets = [2, 0], sizes = [2, 128], strides = [1, 1]} : vector<4x128xf32> to vector<2x128xf32>
    %c128 = arith.constant 128 : index
    %c0_339 = arith.constant 0 : index
    %424 = vector.load %arg17[%c128, %c0_339] : memref<256x64xf32, #tpu.memory_space<vmem>>, vector<128x64xf32>
    %cst_340 = arith.constant dense<0.000000e+00> : vector<2x64xf32>
    %425 = tpu.matmul %423, %424, %cst_340 {dimension_numbers = #tpu.dot_dimension_numbers<[1], [0], [0], [1], [0, 0, 1, 1], [], []>} : vector<2x128xf32>, vector<128x64xf32>, vector<2x64xf32> -> vector<2x64xf32>
    %426 = arith.addf %422, %425 : vector<2x64xf32>
    %427 = vector.extract_strided_slice %419 {offsets = [0, 0], sizes = [1, 64], strides = [1, 1]} : vector<3x64xf32> to vector<1x64xf32>
    %428 = vector.broadcast %427 : vector<1x64xf32> to vector<2x64xf32>
    %429 = arith.addf %426, %428 : vector<2x64xf32>
    %cst_341 = arith.constant 0.000000e+00 : f32
    %430 = vector.broadcast %cst_341 : f32 to vector<2x64xf32>
    %431 = arith.cmpf oge, %429, %430 : vector<2x64xf32>
    %cst_342 = arith.constant 0.00999999977 : f32
    %432 = vector.broadcast %cst_342 : f32 to vector<2x64xf32>
    %433 = arith.mulf %432, %429 : vector<2x64xf32>
    %434 = arith.select %431, %429, %433 : vector<2x64xi1>, vector<2x64xf32>
    %cst_343 = arith.constant dense<0.000000e+00> : vector<64xf32>
    %435 = vector.multi_reduction <add>, %434, %cst_343 [0] : vector<2x64xf32> to vector<64xf32>
    %436 = vector.shape_cast %435 : vector<64xf32> to vector<1x64xf32>
    %cst_344 = arith.constant 2.000000e+00 : f32
    %437 = vector.broadcast %cst_344 : f32 to vector<1x64xf32>
    %438 = arith.divf %436, %437 : vector<1x64xf32>
    %439 = vector.broadcast %438 : vector<1x64xf32> to vector<2x64xf32>
    %440 = arith.subf %434, %439 : vector<2x64xf32>
    %441 = arith.mulf %440, %440 : vector<2x64xf32>
    %cst_345 = arith.constant dense<0.000000e+00> : vector<64xf32>
    %442 = vector.multi_reduction <add>, %441, %cst_345 [0] : vector<2x64xf32> to vector<64xf32>
    %443 = vector.shape_cast %442 : vector<64xf32> to vector<1x64xf32>
    %cst_346 = arith.constant 2.000000e+00 : f32
    %444 = vector.broadcast %cst_346 : f32 to vector<1x64xf32>
    %445 = arith.divf %443, %444 : vector<1x64xf32>
    %cst_347 = arith.constant 9.99999974E-6 : f32
    %446 = vector.broadcast %cst_347 : f32 to vector<1x64xf32>
    %447 = arith.addf %445, %446 : vector<1x64xf32>
    %448 = math.rsqrt %447 : vector<1x64xf32>
    %449 = vector.broadcast %448 : vector<1x64xf32> to vector<2x64xf32>
    %450 = arith.mulf %440, %449 : vector<2x64xf32>
    %451 = vector.extract_strided_slice %419 {offsets = [1, 0], sizes = [1, 64], strides = [1, 1]} : vector<3x64xf32> to vector<1x64xf32>
    %452 = vector.broadcast %451 : vector<1x64xf32> to vector<2x64xf32>
    %453 = arith.mulf %450, %452 : vector<2x64xf32>
    %454 = vector.extract_strided_slice %419 {offsets = [2, 0], sizes = [1, 64], strides = [1, 1]} : vector<3x64xf32> to vector<1x64xf32>
    %455 = vector.broadcast %454 : vector<1x64xf32> to vector<2x64xf32>
    %456 = arith.addf %453, %455 : vector<2x64xf32>
    %c0_348 = arith.constant 0 : index
    %c0_349 = arith.constant 0 : index
    %457 = vector.load %arg19[%c0_348, %c0_349] : memref<64x8xf32, #tpu.memory_space<vmem>>, vector<64x8xf32>
    %cst_350 = arith.constant dense<0.000000e+00> : vector<2x8xf32>
    %458 = tpu.matmul %456, %457, %cst_350 {dimension_numbers = #tpu.dot_dimension_numbers<[1], [0], [0], [1], [0, 0, 1, 1], [], []>} : vector<2x64xf32>, vector<64x8xf32>, vector<2x8xf32> -> vector<2x8xf32>
    %c0_351 = arith.constant 0 : index
    %c0_352 = arith.constant 0 : index
    %459 = vector.load %arg20[%c0_351, %c0_352] : memref<1x8xf32, #tpu.memory_space<vmem>>, vector<1x8xf32>
    %460 = vector.broadcast %459 : vector<1x8xf32> to vector<2x8xf32>
    %461 = arith.addf %458, %460 : vector<2x8xf32>
    %c0_353 = arith.constant 0 : index
    %c0_354 = arith.constant 0 : index
    %462 = vector.load %arg21[%c0_353, %c0_354] : memref<2x8xf32, #tpu.memory_space<vmem>>, vector<2x8xf32>
    tpu.vector_store %arg21[%c0_353, %c0_354], %461 {strides = array<i32>} : memref<2x8xf32, #tpu.memory_space<vmem>>, vector<2x8xf32>,
    return
  }
}

</mosaic_0001>

<llo_original>
// kernel: conv_encoder_forward.1
$region0: #{conv_encoder_forward.1}
  #allocation0 [shape = 'u32[]', space=smem, size = 0x4, offset = 0x4, fixed_abs, tag = 'smem constant byte address 0x4 - core index']
  #allocation1 [shape = 'u32[144,128]{1,0:T(1,128)}', space=vmem, size = 0x12000, scoped, tag = 'internal scratch']
  #allocation2 [shape = 'f32[40,16]{1,0:T(8,128)}', space=vmem, size = 0x5000, scoped, tag = 'scratch operand']
  #allocation3 [shape = 'f32[40,128]{1,0:T(8,128)}', space=vmem, size = 0x5000, scoped, tag = 'scratch operand']
  #allocation4 [shape = 'f32[24,128]{1,0:T(8,128)}', space=vmem, size = 0x3000, scoped, tag = 'scratch operand']
  #allocation5 [shape = 'f32[16,128]{1,0:T(8,128)}', space=vmem, size = 0x2000, scoped, tag = 'scratch operand']
  %s0 = inlined_call_operand.vmem [shape: f32[2,256], index: 0, kind: input, shape index: {}]
  %s1 = inlined_call_operand.vmem [shape: f32[5,16,128], index: 1, kind: input, shape index: {}]
  %s2 = inlined_call_operand.vmem [shape: f32[3,128], index: 2, kind: input, shape index: {}]
  %s3 = inlined_call_operand.vmem [shape: f32[128,8], index: 3, kind: input, shape index: {}]
  %s4 = inlined_call_operand.vmem [shape: f32[8,128], index: 4, kind: input, shape index: {}]
  %s5 = inlined_call_operand.vmem [shape: f32[5,128,128], index: 5, kind: input, shape index: {}]
  %s6 = inlined_call_operand.vmem [shape: f32[3,128], index: 6, kind: input, shape index: {}]
  %s7 = inlined_call_operand.vmem [shape: f32[128,16], index: 7, kind: input, shape index: {}]
  %s8 = inlined_call_operand.vmem [shape: f32[16,128], index: 8, kind: input, shape index: {}]
  %s9 = inlined_call_operand.hbm [shape: f32[5,128,128], index: 9, kind: input, shape index: {}]
  %s10 = inlined_call_operand.vmem [shape: f32[3,128], index: 10, kind: input, shape index: {}]
  %s11 = inlined_call_operand.vmem [shape: f32[128,32], index: 11, kind: input, shape index: {}]
  %s12 = inlined_call_operand.vmem [shape: f32[32,128], index: 12, kind: input, shape index: {}]
  %s13 = inlined_call_operand.hbm [shape: f32[5,128,128], index: 13, kind: input, shape index: {}]
  %s14 = inlined_call_operand.vmem [shape: f32[3,128], index: 14, kind: input, shape index: {}]
  %s15 = inlined_call_operand.vmem [shape: f32[128,64], index: 15, kind: input, shape index: {}]
  %s16 = inlined_call_operand.vmem [shape: f32[64,128], index: 16, kind: input, shape index: {}]
  %s17 = inlined_call_operand.vmem [shape: f32[256,64], index: 17, kind: input, shape index: {}]
  %s18 = inlined_call_operand.vmem [shape: f32[3,64], index: 18, kind: input, shape index: {}]
  %s19 = inlined_call_operand.vmem [shape: f32[64,8], index: 19, kind: input, shape index: {}]
  %s20 = inlined_call_operand.vmem [shape: f32[1,8], index: 20, kind: input, shape index: {}]
  %s21 = inlined_call_operand.hbm [shape: f32[2,8], index: 21, kind: output, shape index: {}]
  %s22 = sld [smem:[#allocation0]]
  $region102: #{conv_encoder_forward.1} parent=0
    _
  %s24 = ssub.s32 1, %s22
  %s25 = scalar_select 0, %s24, %s22
  $region1: #{conv_encoder_forward.1} parent=0
    #allocation6 [shape = 'u8[327680]{0}', space=vmem, size = 0x50000, scoped, tag = 'input window, operand 9, single buffered']
    #allocation7 [shape = 's32[1]{0}', space=sflag, size = 0x4, scoped, tag = 'scoped memory for conv_encoder_forward.1']
    #allocation8 [shape = 's32[1]{0}', space=sflag, size = 0x4, scoped, tag = 'scoped memory for conv_encoder_forward.1']
    #allocation9 [shape = 'u8[327680]{0}', space=vmem, size = 0x50000, scoped, tag = 'input window, operand 13, single buffered']
    #allocation10 [shape = 's32[1]{0}', space=sflag, size = 0x4, scoped, tag = 'scoped memory for conv_encoder_forward.1']
    #allocation11 [shape = 'u8[1024]{0}', space=vmem, size = 0x400, scoped, tag = 'output window, operand 0, single buffered']
    %26 = vsyncpa [#allocation7], 0
    %27 = vsyncpa [#allocation10], 0
    %28 = vsyncpa [#allocation8], 0
    // Predicated region
    $region2: #{conv_encoder_forward.1} parent=1 // pred_check
      _
    $region3: #{conv_encoder_forward.1} parent=1 // pred_check_branch
      %30 = sbr.rel (0) target = $region5
    $region4: #{conv_encoder_forward.1} parent=1 // pred_region
      _
    $region5: #{conv_encoder_forward.1} parent=1 // pred_fallthru
      _
    // Predicated region
    $region6: #{conv_encoder_forward.1} parent=1 // pred_check
      _
    $region7: #{conv_encoder_forward.1} parent=1 // pred_check_branch
      %32 = sbr.rel (0) target = $region9
    $region8: #{conv_encoder_forward.1} parent=1 // pred_region
      _
    $region9: #{conv_encoder_forward.1} parent=1 // pred_fallthru
      _
    // Predicated region
    $region10: #{conv_encoder_forward.1} parent=1 // pred_check
      _
    $region11: #{conv_encoder_forward.1} parent=1 // pred_check_branch
      %34 = sbr.rel (0) target = $region13
    $region12: #{conv_encoder_forward.1} parent=1 // pred_region
      _
    $region13: #{conv_encoder_forward.1} parent=1 // pred_fallthru
      _
    // Predicated region
    $region14: #{conv_encoder_forward.1} parent=1 // pred_check
      _
    $region15: #{conv_encoder_forward.1} parent=1 // pred_check_branch
      %36 = sbr.rel (0) target = $region17
    $region16: #{conv_encoder_forward.1} parent=1 // pred_region
      _
    $region17: #{conv_encoder_forward.1} parent=1 // pred_fallthru
      _
    // Predicated region
    $region18: #{conv_encoder_forward.1} parent=1 // pred_check
      _
    $region19: #{conv_encoder_forward.1} parent=1 // pred_check_branch
      %38 = sbr.rel (0) target = $region21
    $region20: #{conv_encoder_forward.1} parent=1 // pred_region
      _
    $region21: #{conv_encoder_forward.1} parent=1 // pred_fallthru
      _
    // Predicated region
    $region22: #{conv_encoder_forward.1} parent=1 // pred_check
      _
    $region23: #{conv_encoder_forward.1} parent=1 // pred_check_branch
      %40 = sbr.rel (0) target = $region25
    $region24: #{conv_encoder_forward.1} parent=1 // pred_region
      _
    $region25: #{conv_encoder_forward.1} parent=1 // pred_fallthru
      _
    // Predicated region
    $region26: #{conv_encoder_forward.1} parent=1 // pred_check
      _
    $region27: #{conv_encoder_forward.1} parent=1 // pred_check_branch
      %42 = sbr.rel (0) target = $region29
    $region28: #{conv_encoder_forward.1} parent=1 // pred_region
      _
    $region29: #{conv_encoder_forward.1} parent=1 // pred_fallthru
      _
    // Predicated region
    $region30: #{conv_encoder_forward.1} parent=1 // pred_check
      _
    $region31: #{conv_encoder_forward.1} parent=1 // pred_check_branch
      %44 = sbr.rel (0) target = $region33
    $region32: #{conv_encoder_forward.1} parent=1 // pred_region
      _
    $region33: #{conv_encoder_forward.1} parent=1 // pred_fallthru
      _
    // Predicated region
    $region34: #{conv_encoder_forward.1} parent=1 // pred_check
      _
    $region35: #{conv_encoder_forward.1} parent=1 // pred_check_branch
      %46 = sbr.rel (0) target = $region37
    $region36: #{conv_encoder_forward.1} parent=1 // pred_region
      _
    $region37: #{conv_encoder_forward.1} parent=1 // pred_fallthru
      _
    // Predicated region
    $region38: #{conv_encoder_forward.1} parent=1 // pred_check
      _
    $region39: #{conv_encoder_forward.1} parent=1 // pred_check_branch
      %48 = sbr.rel (0) target = $region41
    $region40: #{conv_encoder_forward.1} parent=1 // pred_region
      %s50 = ssub.s32 10240, 10240
      %51 = vsyncadd [#allocation7], %s50
      %s52 = sshll.u32 [#allocation6], 4
      %s53 = int_to_ptr.vmem [resolvable:$true] %s52
      %58 = dma.hbm_to_vmem [thread:$0]  %s9, 10240, %s53, [#allocation7], 128, 128, 8
    $region41: #{conv_encoder_forward.1} parent=1 // pred_fallthru
      _
    // Predicated region
    $region42: #{conv_encoder_forward.1} parent=1 // pred_check
      _
    $region43: #{conv_encoder_forward.1} parent=1 // pred_check_branch
      %60 = sbr.rel (0) target = $region45
    $region44: #{conv_encoder_forward.1} parent=1 // pred_region
      _
    $region45: #{conv_encoder_forward.1} parent=1 // pred_fallthru
      _
    // Predicated region
    $region46: #{conv_encoder_forward.1} parent=1 // pred_check
      _
    $region47: #{conv_encoder_forward.1} parent=1 // pred_check_branch
      %62 = sbr.rel (0) target = $region49
    $region48: #{conv_encoder_forward.1} parent=1 // pred_region
      _
    $region49: #{conv_encoder_forward.1} parent=1 // pred_fallthru
      _
    // Predicated region
    $region50: #{conv_encoder_forward.1} parent=1 // pred_check
      _
    $region51: #{conv_encoder_forward.1} parent=1 // pred_check_branch
      %64 = sbr.rel (0) target = $region53
    $region52: #{conv_encoder_forward.1} parent=1 // pred_region
      _
    $region53: #{conv_encoder_forward.1} parent=1 // pred_fallthru
      _
    // Predicated region
    $region54: #{conv_encoder_forward.1} parent=1 // pred_check
      _
    $region55: #{conv_encoder_forward.1} parent=1 // pred_check_branch
      %66 = sbr.rel (0) target = $region57
    $region56: #{conv_encoder_forward.1} parent=1 // pred_region
      %s68 = ssub.s32 10240, 10240
      %69 = vsyncadd [#allocation10], %s68
      %s70 = sshll.u32 [#allocation9], 4
      %s71 = int_to_ptr.vmem [resolvable:$true] %s70
      %76 = dma.hbm_to_vmem [thread:$0]  %s13, 10240, %s71, [#allocation10], 128, 128, 8
    $region57: #{conv_encoder_forward.1} parent=1 // pred_fallthru
      _
    // Predicated region
    $region58: #{conv_encoder_forward.1} parent=1 // pred_check
      _
    $region59: #{conv_encoder_forward.1} parent=1 // pred_check_branch
      %78 = sbr.rel (0) target = $region61
    $region60: #{conv_encoder_forward.1} parent=1 // pred_region
      _
    $region61: #{conv_encoder_forward.1} parent=1 // pred_fallthru
      _
    // Predicated region
    $region62: #{conv_encoder_forward.1} parent=1 // pred_check
      _
    $region63: #{conv_encoder_forward.1} parent=1 // pred_check_branch
      %80 = sbr.rel (0) target = $region65
    $region64: #{conv_encoder_forward.1} parent=1 // pred_region
      _
    $region65: #{conv_encoder_forward.1} parent=1 // pred_fallthru
      _
    // Predicated region
    $region66: #{conv_encoder_forward.1} parent=1 // pred_check
      _
    $region67: #{conv_encoder_forward.1} parent=1 // pred_check_branch
      %82 = sbr.rel (0) target = $region69
    $region68: #{conv_encoder_forward.1} parent=1 // pred_region
      _
    $region69: #{conv_encoder_forward.1} parent=1 // pred_fallthru
      _
    // Predicated region
    $region70: #{conv_encoder_forward.1} parent=1 // pred_check
      _
    $region71: #{conv_encoder_forward.1} parent=1 // pred_check_branch
      %84 = sbr.rel (0) target = $region73
    $region72: #{conv_encoder_forward.1} parent=1 // pred_region
      _
    $region73: #{conv_encoder_forward.1} parent=1 // pred_fallthru
      _
    // Predicated region
    $region74: #{conv_encoder_forward.1} parent=1 // pred_check
      _
    $region75: #{conv_encoder_forward.1} parent=1 // pred_check_branch
      %86 = sbr.rel (0) target = $region77
    $region76: #{conv_encoder_forward.1} parent=1 // pred_region
      _
    $region77: #{conv_encoder_forward.1} parent=1 // pred_fallthru
      _
    // Predicated region
    $region78: #{conv_encoder_forward.1} parent=1 // pred_check
      _
    $region79: #{conv_encoder_forward.1} parent=1 // pred_check_branch
      %88 = sbr.rel (0) target = $region81
    $region80: #{conv_encoder_forward.1} parent=1 // pred_region
      _
    $region81: #{conv_encoder_forward.1} parent=1 // pred_fallthru
      _
    // Predicated region
    $region82: #{conv_encoder_forward.1} parent=1 // pred_check
      _
    $region83: #{conv_encoder_forward.1} parent=1 // pred_check_branch
      %90 = sbr.rel (0) target = $region85
    $region84: #{conv_encoder_forward.1} parent=1 // pred_region
      _
    $region85: #{conv_encoder_forward.1} parent=1 // pred_fallthru
      _
    // Predicated region
    $region86: #{conv_encoder_forward.1} parent=1 // pred_check
      _
    $region87: #{conv_encoder_forward.1} parent=1 // pred_check_branch
      %92 = sbr.rel (0) target = $region89
    $region88: #{conv_encoder_forward.1} parent=1 // pred_region
      %93 = dma.done [#allocation7], 10240
    $region89: #{conv_encoder_forward.1} parent=1 // pred_fallthru
      _
    // Predicated region
    $region90: #{conv_encoder_forward.1} parent=1 // pred_check
      _
    $region91: #{conv_encoder_forward.1} parent=1 // pred_check_branch
      %95 = sbr.rel (0) target = $region93
    $region92: #{conv_encoder_forward.1} parent=1 // pred_region
      %96 = dma.done [#allocation10], 10240
    $region93: #{conv_encoder_forward.1} parent=1 // pred_fallthru
      _
    %vm97 = vcmask 125952
    %98 = vst.msk [vmem:[#allocation2] sm:$0xf] %vm97, 0.0
    %99 = vst.msk [vmem:[#allocation2 + $0x24] sm:$0xf] %vm97, 0.0
    %100 = vst [vmem:[#allocation3] sm:$0x3] 0.0
    %101 = vst [vmem:[#allocation3 + $0x12] sm:$0xf] 0.0
    %102 = vst [vmem:[#allocation4] sm:$0x3] 0.0
    %103 = vst [vmem:[#allocation4 + $0xa] sm:$0xf] 0.0
    %104 = vst [vmem:[#allocation5] sm:$0x3] 0.0
    %105 = vst [vmem:[#allocation5 + $0x6] sm:$0xf] 0.0
    %v106 = vld [vmem:[%s0] sm:$0xf]
    %v109 = vunpack.c.l.s4 1983009808
    %v110 = vunpack.c.0.s8 %v109
    %v111 = vlaneseq
    %v112 = vshrl.u32 %v111, 7
    %v113 = vsub.s32 %v110, %v112
    %v114 = vrot.slane %v106, %v113
    %v115 = vcombine.high %v114, %v114
    %vm118 = vcmask 1041408
    %v119 = vsel %vm118, %v114, 0.0
    %v120 = vsel %vm118, %v115, 0.0
    %v121 = vadd.f32 %v119, %v120
    %122 = vadd.xlane.f32.xlu0 %v121
    %v123 = vpop.xlane.xlu0 %122
    %v124 = vrcp.pop 256.0
    %v125 = vmul.f32 %v123, %v124
    %v128 = vunpack.c.l.s4 269488144
    %v129 = vunpack.c.0.s8 %v128
    %v130 = vlaneseq
    %v131 = vshrl.u32 %v130, 7
    %v132 = vsub.s32 %v129, %v131
    %v133 = vrot.slane %v125, %v132
    %v135 = vsub.f32 %v106, %v133
    %v136 = vmul.f32 %v135, %v135
    %v139 = vunpack.c.l.s4 1983009808
    %v140 = vunpack.c.0.s8 %v139
    %v141 = vlaneseq
    %v142 = vshrl.u32 %v141, 7
    %v143 = vsub.s32 %v140, %v142
    %v144 = vrot.slane %v136, %v143
    %v145 = vcombine.high %v144, %v144
    %v148 = vsel %vm118, %v144, 0.0
    %v149 = vsel %vm118, %v145, 0.0
    %v150 = vadd.f32 %v148, %v149
    %151 = vadd.xlane.f32.xlu0 %v150
    %v152 = vpop.xlane.xlu0 %151
    %v153 = vmul.f32 %v152, %v124
    %v154 = vadd.f32 %v153, 1e-05
    %v155 = vrsqrt.pop %v154
    %v158 = vunpack.c.l.s4 269488144
    %v159 = vunpack.c.0.s8 %v158
    %v160 = vlaneseq
    %v161 = vshrl.u32 %v160, 7
    %v162 = vsub.s32 %v159, %v161
    %v163 = vrot.slane %v155, %v162
    %v165 = vmul.f32 %v135, %v163
    %vm166 = vcmask 123904
    %167 = vst.msk [vmem:[#allocation2 + $0x4] sm:$0x3] %vm166, %v165
    %v170 = vunpack.c.l.s4 1983009808
    %v171 = vunpack.c.0.s8 %v170
    %v172 = vlaneseq
    %v173 = vshrl.u32 %v172, 7
    %v174 = vsub.s32 %v171, %v173
    %v175 = vrot.slane %v165, %v174
    %176 = vrot.lane.b32.xlu0 %v175, 112
    %v177 = vpop.permute.xlu0 %176
    %179 = vst.msk [vmem:[#allocation2 + $0x6] sm:$0x3] %vm166, %v177
    %180 = vrot.lane.b32.xlu0 %v175, 96
    %v181 = vpop.permute.xlu0 %180
    %183 = vst.msk [vmem:[#allocation2 + $0x8] sm:$0x3] %vm166, %v181
    %184 = vrot.lane.b32.xlu0 %v175, 80
    %v185 = vpop.permute.xlu0 %184
    %187 = vst.msk [vmem:[#allocation2 + $0xa] sm:$0x3] %vm166, %v185
    %188 = vrot.lane.b32.xlu0 %v175, 64
    %v189 = vpop.permute.xlu0 %188
    %191 = vst.msk [vmem:[#allocation2 + $0xc] sm:$0x3] %vm166, %v189
    %192 = vrot.lane.b32.xlu0 %v175, 48
    %v193 = vpop.permute.xlu0 %192
    %195 = vst.msk [vmem:[#allocation2 + $0xe] sm:$0x3] %vm166, %v193
    %196 = vrot.lane.b32.xlu0 %v175, 32
    %v197 = vpop.permute.xlu0 %196
    %199 = vst.msk [vmem:[#allocation2 + $0x10] sm:$0x3] %vm166, %v197
    %200 = vrot.lane.b32.xlu0 %v175, 16
    %v201 = vpop.permute.xlu0 %200
    %203 = vst.msk [vmem:[#allocation2 + $0x12] sm:$0x3] %vm166, %v201
    %v204 = vcombine.high %v175, %v175
    %206 = vst.msk [vmem:[#allocation2 + $0x14] sm:$0x3] %vm166, %v204
    %207 = vrot.lane.b32.xlu0 %v204, 112
    %v208 = vpop.permute.xlu0 %207
    %210 = vst.msk [vmem:[#allocation2 + $0x16] sm:$0x3] %vm166, %v208
    %211 = vrot.lane.b32.xlu0 %v204, 96
    %v212 = vpop.permute.xlu0 %211
    %214 = vst.msk [vmem:[#allocation2 + $0x18] sm:$0x3] %vm166, %v212
    %215 = vrot.lane.b32.xlu0 %v204, 80
    %v216 = vpop.permute.xlu0 %215
    %218 = vst.msk [vmem:[#allocation2 + $0x1a] sm:$0x3] %vm166, %v216
    %219 = vrot.lane.b32.xlu0 %v204, 64
    %v220 = vpop.permute.xlu0 %219
    %222 = vst.msk [vmem:[#allocation2 + $0x1c] sm:$0x3] %vm166, %v220
    %223 = vrot.lane.b32.xlu0 %v204, 48
    %v224 = vpop.permute.xlu0 %223
    %226 = vst.msk [vmem:[#allocation2 + $0x1e] sm:$0x3] %vm166, %v224
    %227 = vrot.lane.b32.xlu0 %v204, 32
    %v228 = vpop.permute.xlu0 %227
    %230 = vst.msk [vmem:[#allocation2 + $0x20] sm:$0x3] %vm166, %v228
    %231 = vrot.lane.b32.xlu0 %v204, 16
    %v232 = vpop.permute.xlu0 %231
    %234 = vst.msk [vmem:[#allocation2 + $0x22] sm:$0x3] %vm166, %v232
    %v235 = vld [vmem:[#allocation2] sm:$0xff]
    %v236 = vld [vmem:[#allocation2 + $0x8] sm:$0xff]
    %v237 = vld [vmem:[#allocation2 + $0x10] sm:$0xff]
    %v238 = vld [vmem:[#allocation2 + $0x18] sm:$0xff]
    %v239 = vld [vmem:[%s1] sm:$0xff]
    %v240 = vld [vmem:[%s1 + $0x8] sm:$0xff]
    %v241 = vld [vmem:[#allocation2 + $0x2] sm:$0xff]
    %v242 = vld [vmem:[#allocation2 + $0xa] sm:$0xff]
    %v243 = vld [vmem:[#allocation2 + $0x12] sm:$0xff]
    %v244 = vld [vmem:[#allocation2 + $0x1a] sm:$0xff]
    %s245 = scalar_lea.vmem %s1, 16
    %v246 = vld [vmem:[%s245] sm:$0xff]
    %v247 = vld [vmem:[%s245 + $0x8] sm:$0xff]
    %vm248 = vcmask 130048
    %v250 = vsel %vm248, %v241, 0
    %v253 = vsel %vm248, %v242, 0
    %v256 = vsel %vm248, %v243, 0
    %v259 = vsel %vm248, %v244, 0
    %261 = vmatprep.subr.mxu0 0.0
    %262 = vmatpush1.msra.mxu0 %v246
    %263 = vmatprep.subr.mxu0 0.0
    %264 = vmatpush1.msra.mxu0 %v247
    %265 = vmatprep.subr.mxu0 0.0
    %266 = vmatpush1.msra.mxu0 0.0
    %267 = vmatprep.subr.mxu0 0.0
    %268 = vmatpush1.msra.mxu0 0.0
    %269 = vmatprep.subr.mxu0 0.0
    %270 = vmatpush1.msra.mxu0 0.0
    %271 = vmatprep.subr.mxu0 0.0
    %272 = vmatpush1.msra.mxu0 0.0
    %273 = vmatprep.subr.mxu0 0.0
    %274 = vmatpush1.msra.mxu0 0.0
    %275 = vmatprep.subr.mxu0 0.0
    %276 = vmatpush1.msra.mxu0 0.0
    %277 = vmatprep.subr.mxu0 0.0
    %278 = vmatpush1.msra.mxu0 0.0
    %279 = vmatprep.subr.mxu0 0.0
    %280 = vmatpush1.msra.mxu0 0.0
    %281 = vmatprep.subr.mxu0 0.0
    %282 = vmatpush1.msra.mxu0 0.0
    %283 = vmatprep.subr.mxu0 0.0
    %284 = vmatpush1.msra.mxu0 0.0
    %285 = vmatprep.subr.mxu0 0.0
    %286 = vmatpush1.msra.mxu0 0.0
    %287 = vmatprep.subr.mxu0 0.0
    %288 = vmatpush1.msra.mxu0 0.0
    %289 = vmatprep.subr.mxu0 0.0
    %290 = vmatpush1.msra.mxu0 0.0
    %291 = vmatprep.subr.mxu0 0.0
    %292 = vmatpush1.msra.mxu0 0.0
    %293 = vmatprep.subr.mxu0 0.0
    %294 = vmatpush1.msra.mxu0 0.0
    %295 = vmatprep.subr.mxu0 0.0
    %296 = vmatpush1.msra.mxu0 0.0
    %297 = vmatprep.subr.mxu0 0.0
    %298 = vmatpush1.msra.mxu0 0.0
    %299 = vmatprep.subr.mxu0 0.0
    %300 = vmatpush1.msra.mxu0 0.0
    %301 = vmatprep.subr.mxu0 0.0
    %302 = vmatpush1.msra.mxu0 0.0
    %303 = vmatprep.subr.mxu0 0.0
    %304 = vmatpush1.msra.mxu0 0.0
    %305 = vmatprep.subr.mxu0 0.0
    %306 = vmatpush1.msra.mxu0 0.0
    %307 = vmatprep.subr.mxu0 0.0
    %308 = vmatpush1.msra.mxu0 0.0
    %309 = vmatprep.subr.mxu0 0.0
    %310 = vmatpush1.msra.mxu0 0.0
    %311 = vmatprep.subr.mxu0 0.0
    %312 = vmatpush1.msra.mxu0 0.0
    %313 = vmatprep.subr.mxu0 0.0
    %314 = vmatpush1.msra.mxu0 0.0
    %315 = vmatprep.subr.mxu0 0.0
    %316 = vmatpush1.msra.mxu0 0.0
    %317 = vmatprep.subr.mxu0 0.0
    %318 = vmatpush1.msra.mxu0 0.0
    %319 = vmatprep.subr.mxu0 0.0
    %320 = vmatpush1.msra.mxu0 0.0
    %321 = vmatprep.subr.mxu0 0.0
    %322 = vmatpush1.msra.mxu0 0.0
    %323 = vmatprep.subr.mxu0 0.0
    %324 = vmatpush1.msra.mxu0 0.0
    %325 = vmatprep.mubr.f32.mxu0 0.0
    %326 = vmatmul.mubr.f32.gmra.mrb[0].mxu0 %v250
    %v327 = vpop.f32.mrb[0].mxu0
    %v328 = vadd.f32 0.0, %v327
    %v329 = vpop.f32.mrb[0].mxu0
    %330 = vmatprep.mubr.f32.mxu0 0.0
    %331 = vmatmul.mubr.f32.gmra.mrb[0].mxu0 %v253
    %v332 = vpop.f32.mrb[0].mxu0
    %v333 = vadd.f32 0.0, %v332
    %v334 = vpop.f32.mrb[0].mxu0
    %335 = vmatprep.mubr.f32.mxu0 0.0
    %336 = vmatmul.mubr.f32.gmra.mrb[0].mxu0 %v256
    %v337 = vpop.f32.mrb[0].mxu0
    %v338 = vadd.f32 0.0, %v337
    %v339 = vpop.f32.mrb[0].mxu0
    %340 = vmatprep.mubr.f32.mxu0 0.0
    %341 = vmatmul.mubr.f32.gmra.mrb[0].mxu0 %v259
    %v342 = vpop.f32.mrb[0].mxu0
    %v343 = vadd.f32 0.0, %v342
    %v344 = vpop.f32.mrb[0].mxu0
    %345 = vdwg.mxu0
    %v347 = vsel %vm248, %v235, 0
    %v350 = vsel %vm248, %v236, 0
    %v353 = vsel %vm248, %v237, 0
    %v356 = vsel %vm248, %v238, 0
    %358 = vmatprep.subr.mxu0 0.0
    %359 = vmatpush1.msra.mxu0 %v239
    %360 = vmatprep.subr.mxu0 0.0
    %361 = vmatpush1.msra.mxu0 %v240
    %362 = vmatprep.subr.mxu0 0.0
    %363 = vmatpush1.msra.mxu0 0.0
    %364 = vmatprep.subr.mxu0 0.0
    %365 = vmatpush1.msra.mxu0 0.0
    %366 = vmatprep.subr.mxu0 0.0
    %367 = vmatpush1.msra.mxu0 0.0
    %368 = vmatprep.subr.mxu0 0.0
    %369 = vmatpush1.msra.mxu0 0.0
    %370 = vmatprep.subr.mxu0 0.0
    %371 = vmatpush1.msra.mxu0 0.0
    %372 = vmatprep.subr.mxu0 0.0
    %373 = vmatpush1.msra.mxu0 0.0
    %374 = vmatprep.subr.mxu0 0.0
    %375 = vmatpush1.msra.mxu0 0.0
    %376 = vmatprep.subr.mxu0 0.0
    %377 = vmatpush1.msra.mxu0 0.0
    %378 = vmatprep.subr.mxu0 0.0
    %379 = vmatpush1.msra.mxu0 0.0
    %380 = vmatprep.subr.mxu0 0.0
    %381 = vmatpush1.msra.mxu0 0.0
    %382 = vmatprep.subr.mxu0 0.0
    %383 = vmatpush1.msra.mxu0 0.0
    %384 = vmatprep.subr.mxu0 0.0
    %385 = vmatpush1.msra.mxu0 0.0
    %386 = vmatprep.subr.mxu0 0.0
    %387 = vmatpush1.msra.mxu0 0.0
    %388 = vmatprep.subr.mxu0 0.0
    %389 = vmatpush1.msra.mxu0 0.0
    %390 = vmatprep.subr.mxu0 0.0
    %391 = vmatpush1.msra.mxu0 0.0
    %392 = vmatprep.subr.mxu0 0.0
    %393 = vmatpush1.msra.mxu0 0.0
    %394 = vmatprep.subr.mxu0 0.0
    %395 = vmatpush1.msra.mxu0 0.0
    %396 = vmatprep.subr.mxu0 0.0
    %397 = vmatpush1.msra.mxu0 0.0
    %398 = vmatprep.subr.mxu0 0.0
    %399 = vmatpush1.msra.mxu0 0.0
    %400 = vmatprep.subr.mxu0 0.0
    %401 = vmatpush1.msra.mxu0 0.0
    %402 = vmatprep.subr.mxu0 0.0
    %403 = vmatpush1.msra.mxu0 0.0
    %404 = vmatprep.subr.mxu0 0.0
    %405 = vmatpush1.msra.mxu0 0.0
    %406 = vmatprep.subr.mxu0 0.0
    %407 = vmatpush1.msra.mxu0 0.0
    %408 = vmatprep.subr.mxu0 0.0
    %409 = vmatpush1.msra.mxu0 0.0
    %410 = vmatprep.subr.mxu0 0.0
    %411 = vmatpush1.msra.mxu0 0.0
    %412 = vmatprep.subr.mxu0 0.0
    %413 = vmatpush1.msra.mxu0 0.0
    %414 = vmatprep.subr.mxu0 0.0
    %415 = vmatpush1.msra.mxu0 0.0
    %416 = vmatprep.subr.mxu0 0.0
    %417 = vmatpush1.msra.mxu0 0.0
    %418 = vmatprep.subr.mxu0 0.0
    %419 = vmatpush1.msra.mxu0 0.0
    %420 = vmatprep.subr.mxu0 0.0
    %421 = vmatpush1.msra.mxu0 0.0
    %422 = vmatprep.mubr.f32.mxu0 0.0
    %423 = vmatmul.mubr.f32.gmra.mrb[0].mxu0 %v347
    %v424 = vpop.f32.mrb[0].mxu0
    %v425 = vadd.f32 %v328, %v424
    %v426 = vpop.f32.mrb[0].mxu0
    %427 = vmatprep.mubr.f32.mxu0 0.0
    %428 = vmatmul.mubr.f32.gmra.mrb[0].mxu0 %v350
    %v429 = vpop.f32.mrb[0].mxu0
    %v430 = vadd.f32 %v333, %v429
    %v431 = vpop.f32.mrb[0].mxu0
    %432 = vmatprep.mubr.f32.mxu0 0.0
    %433 = vmatmul.mubr.f32.gmra.mrb[0].mxu0 %v353
    %v434 = vpop.f32.mrb[0].mxu0
    %v435 = vadd.f32 %v338, %v434
    %v436 = vpop.f32.mrb[0].mxu0
    %437 = vmatprep.mubr.f32.mxu0 0.0
    %438 = vmatmul.mubr.f32.gmra.mrb[0].mxu0 %v356
    %v439 = vpop.f32.mrb[0].mxu0
    %v440 = vadd.f32 %v343, %v439
    %v441 = vpop.f32.mrb[0].mxu0
    %442 = vdwg.mxu0
    %v443 = vld [vmem:[#allocation2 + $0x4] sm:$0xff]
    %v444 = vld [vmem:[#allocation2 + $0xc] sm:$0xff]
    %v445 = vld [vmem:[#allocation2 + $0x14] sm:$0xff]
    %v446 = vld [vmem:[#allocation2 + $0x1c] sm:$0xff]
    %s447 = scalar_lea.vmem %s1, 32
    %v448 = vld [vmem:[%s447] sm:$0xff]
    %v449 = vld [vmem:[%s447 + $0x8] sm:$0xff]
    %v451 = vsel %vm248, %v443, 0
    %v454 = vsel %vm248, %v444, 0
    %v457 = vsel %vm248, %v445, 0
    %v460 = vsel %vm248, %v446, 0
    %462 = vmatprep.subr.mxu0 0.0
    %463 = vmatpush1.msra.mxu0 %v448
    %464 = vmatprep.subr.mxu0 0.0
    %465 = vmatpush1.msra.mxu0 %v449
    %466 = vmatprep.subr.mxu0 0.0
    %467 = vmatpush1.msra.mxu0 0.0
    %468 = vmatprep.subr.mxu0 0.0
    %469 = vmatpush1.msra.mxu0 0.0
    %470 = vmatprep.subr.mxu0 0.0
    %471 = vmatpush1.msra.mxu0 0.0
    %472 = vmatprep.subr.mxu0 0.0
    %473 = vmatpush1.msra.mxu0 0.0
    %474 = vmatprep.subr.mxu0 0.0
    %475 = vmatpush1.msra.mxu0 0.0
    %476 = vmatprep.subr.mxu0 0.0
    %477 = vmatpush1.msra.mxu0 0.0
    %478 = vmatprep.subr.mxu0 0.0
    %479 = vmatpush1.msra.mxu0 0.0
    %480 = vmatprep.subr.mxu0 0.0
    %481 = vmatpush1.msra.mxu0 0.0
    %482 = vmatprep.subr.mxu0 0.0
    %483 = vmatpush1.msra.mxu0 0.0
    %484 = vmatprep.subr.mxu0 0.0
    %485 = vmatpush1.msra.mxu0 0.0
    %486 = vmatprep.subr.mxu0 0.0
    %487 = vmatpush1.msra.mxu0 0.0
    %488 = vmatprep.subr.mxu0 0.0
    %489 = vmatpush1.msra.mxu0 0.0
    %490 = vmatprep.subr.mxu0 0.0
    %491 = vmatpush1.msra.mxu0 0.0
    %492 = vmatprep.subr.mxu0 0.0
    %493 = vmatpush1.msra.mxu0 0.0
    %494 = vmatprep.subr.mxu0 0.0
    %495 = vmatpush1.msra.mxu0 0.0
    %496 = vmatprep.subr.mxu0 0.0
    %497 = vmatpush1.msra.mxu0 0.0
    %498 = vmatprep.subr.mxu0 0.0
    %499 = vmatpush1.msra.mxu0 0.0
    %500 = vmatprep.subr.mxu0 0.0
    %501 = vmatpush1.msra.mxu0 0.0
    %502 = vmatprep.subr.mxu0 0.0
    %503 = vmatpush1.msra.mxu0 0.0
    %504 = vmatprep.subr.mxu0 0.0
    %505 = vmatpush1.msra.mxu0 0.0
    %506 = vmatprep.subr.mxu0 0.0
    %507 = vmatpush1.msra.mxu0 0.0
    %508 = vmatprep.subr.mxu0 0.0
    %509 = vmatpush1.msra.mxu0 0.0
    %510 = vmatprep.subr.mxu0 0.0
    %511 = vmatpush1.msra.mxu0 0.0
    %512 = vmatprep.subr.mxu0 0.0
    %513 = vmatpush1.msra.mxu0 0.0
    %514 = vmatprep.subr.mxu0 0.0
    %515 = vmatpush1.msra.mxu0 0.0
    %516 = vmatprep.subr.mxu0 0.0
    %517 = vmatpush1.msra.mxu0 0.0
    %518 = vmatprep.subr.mxu0 0.0
    %519 = vmatpush1.msra.mxu0 0.0
    %520 = vmatprep.subr.mxu0 0.0
    %521 = vmatpush1.msra.mxu0 0.0
    %522 = vmatprep.subr.mxu0 0.0
    %523 = vmatpush1.msra.mxu0 0.0
    %524 = vmatprep.subr.mxu0 0.0
    %525 = vmatpush1.msra.mxu0 0.0
    %526 = vmatprep.mubr.f32.mxu0 0.0
    %527 = vmatmul.mubr.f32.gmra.mrb[0].mxu0 %v451
    %v528 = vpop.f32.mrb[0].mxu0
    %v529 = vadd.f32 0.0, %v528
    %v530 = vpop.f32.mrb[0].mxu0
    %531 = vmatprep.mubr.f32.mxu0 0.0
    %532 = vmatmul.mubr.f32.gmra.mrb[0].mxu0 %v454
    %v533 = vpop.f32.mrb[0].mxu0
    %v534 = vadd.f32 0.0, %v533
    %v535 = vpop.f32.mrb[0].mxu0
    %536 = vmatprep.mubr.f32.mxu0 0.0
    %537 = vmatmul.mubr.f32.gmra.mrb[0].mxu0 %v457
    %v538 = vpop.f32.mrb[0].mxu0
    %v539 = vadd.f32 0.0, %v538
    %v540 = vpop.f32.mrb[0].mxu0
    %541 = vmatprep.mubr.f32.mxu0 0.0
    %542 = vmatmul.mubr.f32.gmra.mrb[0].mxu0 %v460
    %v543 = vpop.f32.mrb[0].mxu0
    %v544 = vadd.f32 0.0, %v543
    %v545 = vpop.f32.mrb[0].mxu0
    %546 = vdwg.mxu0
    %v547 = vadd.f32 %v425, %v529
    %v548 = vadd.f32 %v430, %v534
    %v549 = vadd.f32 %v435, %v539
    %v550 = vadd.f32 %v440, %v544
    %v551 = vld [vmem:[#allocation2 + $0x6] sm:$0xff]
    %v552 = vld [vmem:[#allocation2 + $0xe] sm:$0xff]
    %v553 = vld [vmem:[#allocation2 + $0x16] sm:$0xff]
    %v554 = vld [vmem:[#allocation2 + $0x1e] sm:$0xff]
    %s555 = scalar_lea.vmem %s1, 48
    %v556 = vld [vmem:[%s555] sm:$0xff]
    %v557 = vld [vmem:[%s555 + $0x8] sm:$0xff]
    %v559 = vsel %vm248, %v551, 0
    %v562 = vsel %vm248, %v552, 0
    %v565 = vsel %vm248, %v553, 0
    %v568 = vsel %vm248, %v554, 0
    %570 = vmatprep.subr.mxu0 0.0
    %571 = vmatpush1.msra.mxu0 %v556
    %572 = vmatprep.subr.mxu0 0.0
    %573 = vmatpush1.msra.mxu0 %v557
    %574 = vmatprep.subr.mxu0 0.0
    %575 = vmatpush1.msra.mxu0 0.0
    %576 = vmatprep.subr.mxu0 0.0
    %577 = vmatpush1.msra.mxu0 0.0
    %578 = vmatprep.subr.mxu0 0.0
    %579 = vmatpush1.msra.mxu0 0.0
    %580 = vmatprep.subr.mxu0 0.0
    %581 = vmatpush1.msra.mxu0 0.0
    %582 = vmatprep.subr.mxu0 0.0
    %583 = vmatpush1.msra.mxu0 0.0
    %584 = vmatprep.subr.mxu0 0.0
    %585 = vmatpush1.msra.mxu0 0.0
    %586 = vmatprep.subr.mxu0 0.0
    %587 = vmatpush1.msra.mxu0 0.0
    %588 = vmatprep.subr.mxu0 0.0
    %589 = vmatpush1.msra.mxu0 0.0
    %590 = vmatprep.subr.mxu0 0.0
    %591 = vmatpush1.msra.mxu0 0.0
    %592 = vmatprep.subr.mxu0 0.0
    %593 = vmatpush1.msra.mxu0 0.0
    %594 = vmatprep.subr.mxu0 0.0
    %595 = vmatpush1.msra.mxu0 0.0
    %596 = vmatprep.subr.mxu0 0.0
    %597 = vmatpush1.msra.mxu0 0.0
    %598 = vmatprep.subr.mxu0 0.0
    %599 = vmatpush1.msra.mxu0 0.0
    %600 = vmatprep.subr.mxu0 0.0
    %601 = vmatpush1.msra.mxu0 0.0
    %602 = vmatprep.subr.mxu0 0.0
    %603 = vmatpush1.msra.mxu0 0.0
    %604 = vmatprep.subr.mxu0 0.0
    %605 = vmatpush1.msra.mxu0 0.0
    %606 = vmatprep.subr.mxu0 0.0
    %607 = vmatpush1.msra.mxu0 0.0
    %608 = vmatprep.subr.mxu0 0.0
    %609 = vmatpush1.msra.mxu0 0.0
    %610 = vmatprep.subr.mxu0 0.0
    %611 = vmatpush1.msra.mxu0 0.0
    %612 = vmatprep.subr.mxu0 0.0
    %613 = vmatpush1.msra.mxu0 0.0
    %614 = vmatprep.subr.mxu0 0.0
    %615 = vmatpush1.msra.mxu0 0.0
    %616 = vmatprep.subr.mxu0 0.0
    %617 = vmatpush1.msra.mxu0 0.0
    %618 = vmatprep.subr.mxu0 0.0
    %619 = vmatpush1.msra.mxu0 0.0
    %620 = vmatprep.subr.mxu0 0.0
    %621 = vmatpush1.msra.mxu0 0.0
    %622 = vmatprep.subr.mxu0 0.0
    %623 = vmatpush1.msra.mxu0 0.0
    %624 = vmatprep.subr.mxu0 0.0
    %625 = vmatpush1.msra.mxu0 0.0
    %626 = vmatprep.subr.mxu0 0.0
    %627 = vmatpush1.msra.mxu0 0.0
    %628 = vmatprep.subr.mxu0 0.0
    %629 = vmatpush1.msra.mxu0 0.0
    %630 = vmatprep.subr.mxu0 0.0
    %631 = vmatpush1.msra.mxu0 0.0
    %632 = vmatprep.subr.mxu0 0.0
    %633 = vmatpush1.msra.mxu0 0.0
    %634 = vmatprep.mubr.f32.mxu0 0.0
    %635 = vmatmul.mubr.f32.gmra.mrb[0].mxu0 %v559
    %v636 = vpop.f32.mrb[0].mxu0
    %v637 = vadd.f32 0.0, %v636
    %v638 = vpop.f32.mrb[0].mxu0
    %639 = vmatprep.mubr.f32.mxu0 0.0
    %640 = vmatmul.mubr.f32.gmra.mrb[0].mxu0 %v562
    %v641 = vpop.f32.mrb[0].mxu0
    %v642 = vadd.f32 0.0, %v641
    %v643 = vpop.f32.mrb[0].mxu0
    %644 = vmatprep.mubr.f32.mxu0 0.0
    %645 = vmatmul.mubr.f32.gmra.mrb[0].mxu0 %v565
    %v646 = vpop.f32.mrb[0].mxu0
    %v647 = vadd.f32 0.0, %v646
    %v648 = vpop.f32.mrb[0].mxu0
    %649 = vmatprep.mubr.f32.mxu0 0.0
    %650 = vmatmul.mubr.f32.gmra.mrb[0].mxu0 %v568
    %v651 = vpop.f32.mrb[0].mxu0
    %v652 = vadd.f32 0.0, %v651
    %v653 = vpop.f32.mrb[0].mxu0
    %654 = vdwg.mxu0
    %v655 = vadd.f32 %v547, %v637
    %v656 = vadd.f32 %v548, %v642
    %v657 = vadd.f32 %v549, %v647
    %v658 = vadd.f32 %v550, %v652
    %v659 = vld [vmem:[#allocation2 + $0x8] sm:$0xff]
    %v660 = vld [vmem:[#allocation2 + $0x10] sm:$0xff]
    %v661 = vld [vmem:[#allocation2 + $0x18] sm:$0xff]
    %v662 = vld [vmem:[#allocation2 + $0x20] sm:$0xff]
    %s663 = scalar_lea.vmem %s1, 64
    %v664 = vld [vmem:[%s663] sm:$0xff]
    %v665 = vld [vmem:[%s663 + $0x8] sm:$0xff]
    %v667 = vsel %vm248, %v659, 0
    %v670 = vsel %vm248, %v660, 0
    %v673 = vsel %vm248, %v661, 0
    %v676 = vsel %vm248, %v662, 0
    %678 = vmatprep.subr.mxu0 0.0
    %679 = vmatpush1.msra.mxu0 %v664
    %680 = vmatprep.subr.mxu0 0.0
    %681 = vmatpush1.msra.mxu0 %v665
    %682 = vmatprep.subr.mxu0 0.0
    %683 = vmatpush1.msra.mxu0 0.0
    %684 = vmatprep.subr.mxu0 0.0
    %685 = vmatpush1.msra.mxu0 0.0
    %686 = vmatprep.subr.mxu0 0.0
    %687 = vmatpush1.msra.mxu0 0.0
    %688 = vmatprep.subr.mxu0 0.0
    %689 = vmatpush1.msra.mxu0 0.0
    %690 = vmatprep.subr.mxu0 0.0
    %691 = vmatpush1.msra.mxu0 0.0
    %692 = vmatprep.subr.mxu0 0.0
    %693 = vmatpush1.msra.mxu0 0.0
    %694 = vmatprep.subr.mxu0 0.0
    %695 = vmatpush1.msra.mxu0 0.0
    %696 = vmatprep.subr.mxu0 0.0
    %697 = vmatpush1.msra.mxu0 0.0
    %698 = vmatprep.subr.mxu0 0.0
    %699 = vmatpush1.msra.mxu0 0.0
    %700 = vmatprep.subr.mxu0 0.0
    %701 = vmatpush1.msra.mxu0 0.0
    %702 = vmatprep.subr.mxu0 0.0
    %703 = vmatpush1.msra.mxu0 0.0
    %704 = vmatprep.subr.mxu0 0.0
    %705 = vmatpush1.msra.mxu0 0.0
    %706 = vmatprep.subr.mxu0 0.0
    %707 = vmatpush1.msra.mxu0 0.0
    %708 = vmatprep.subr.mxu0 0.0
    %709 = vmatpush1.msra.mxu0 0.0
    %710 = vmatprep.subr.mxu0 0.0
    %711 = vmatpush1.msra.mxu0 0.0
    %712 = vmatprep.subr.mxu0 0.0
    %713 = vmatpush1.msra.mxu0 0.0
    %714 = vmatprep.subr.mxu0 0.0
    %715 = vmatpush1.msra.mxu0 0.0
    %716 = vmatprep.subr.mxu0 0.0
    %717 = vmatpush1.msra.mxu0 0.0
    %718 = vmatprep.subr.mxu0 0.0
    %719 = vmatpush1.msra.mxu0 0.0
    %720 = vmatprep.subr.mxu0 0.0
    %721 = vmatpush1.msra.mxu0 0.0
    %722 = vmatprep.subr.mxu0 0.0
    %723 = vmatpush1.msra.mxu0 0.0
    %724 = vmatprep.subr.mxu0 0.0
    %725 = vmatpush1.msra.mxu0 0.0
    %726 = vmatprep.subr.mxu0 0.0
    %727 = vmatpush1.msra.mxu0 0.0
    %728 = vmatprep.subr.mxu0 0.0
    %729 = vmatpush1.msra.mxu0 0.0
    %730 = vmatprep.subr.mxu0 0.0
    %731 = vmatpush1.msra.mxu0 0.0
    %732 = vmatprep.subr.mxu0 0.0
    %733 = vmatpush1.msra.mxu0 0.0
    %734 = vmatprep.subr.mxu0 0.0
    %735 = vmatpush1.msra.mxu0 0.0
    %736 = vmatprep.subr.mxu0 0.0
    %737 = vmatpush1.msra.mxu0 0.0
    %738 = vmatprep.subr.mxu0 0.0
    %739 = vmatpush1.msra.mxu0 0.0
    %740 = vmatprep.subr.mxu0 0.0
    %741 = vmatpush1.msra.mxu0 0.0
    %742 = vmatprep.mubr.f32.mxu0 0.0
    %743 = vmatmul.mubr.f32.gmra.mrb[0].mxu0 %v667
    %v744 = vpop.f32.mrb[0].mxu0
    %v745 = vadd.f32 0.0, %v744
    %v746 = vpop.f32.mrb[0].mxu0
    %747 = vmatprep.mubr.f32.mxu0 0.0
    %748 = vmatmul.mubr.f32.gmra.mrb[0].mxu0 %v670
    %v749 = vpop.f32.mrb[0].mxu0
    %v750 = vadd.f32 0.0, %v749
    %v751 = vpop.f32.mrb[0].mxu0
    %752 = vmatprep.mubr.f32.mxu0 0.0
    %753 = vmatmul.mubr.f32.gmra.mrb[0].mxu0 %v673
    %v754 = vpop.f32.mrb[0].mxu0
    %v755 = vadd.f32 0.0, %v754
    %v756 = vpop.f32.mrb[0].mxu0
    %757 = vmatprep.mubr.f32.mxu0 0.0
    %758 = vmatmul.mubr.f32.gmra.mrb[0].mxu0 %v676
    %v759 = vpop.f32.mrb[0].mxu0
    %v760 = vadd.f32 0.0, %v759
    %v761 = vpop.f32.mrb[0].mxu0
    %762 = vdwg.mxu0
    %v763 = vadd.f32 %v655, %v745
    %v764 = vadd.f32 %v656, %v750
    %v765 = vadd.f32 %v657, %v755
    %v766 = vadd.f32 %v658, %v760
    %v767 = vld [vmem:[%s2] sm:$0x7]
    %v768 = vlaneseq
    %v769 = vshrl.u32 %v768, 7
    %v770 = vsub.s32 0, %v769
    %v771 = vrot.slane %v767, %v770
    %v772 = vadd.f32 %v763, %v771
    %v773 = vadd.f32 %v764, %v771
    %v774 = vadd.f32 %v765, %v771
    %v775 = vadd.f32 %v766, %v771
    %vm776 = vcmp.ge.f32.partialorder %v772, 0.0
    %vm777 = vcmp.ge.f32.partialorder %v773, 0.0
    %vm778 = vcmp.ge.f32.partialorder %v774, 0.0
    %vm779 = vcmp.ge.f32.partialorder %v775, 0.0
    %v780 = vmul.f32 %v772, 0.01
    %v781 = vmul.f32 %v773, 0.01
    %v782 = vmul.f32 %v774, 0.01
    %v783 = vmul.f32 %v775, 0.01
    %v784 = vsel %vm776, %v772, %v780
    %v785 = vsel %vm777, %v773, %v781
    %v786 = vsel %vm778, %v774, %v782
    %v787 = vsel %vm779, %v775, %v783
    %788 = vst [vmem:[#allocation3 + $0x2] sm:$0x3] %v784
    %789 = vst [vmem:[#allocation3 + $0x14] sm:$0xc] %v784
    %790 = vst [vmem:[#allocation3] sm:$0x30] %v784
    %791 = vst [vmem:[#allocation3 + $0x12] sm:$0xc0] %v784
    %792 = vst [vmem:[#allocation3 + $0x6] sm:$0x3] %v785
    %793 = vst [vmem:[#allocation3 + $0x18] sm:$0xc] %v785
    %794 = vst [vmem:[#allocation3 + $0x4] sm:$0x30] %v785
    %795 = vst [vmem:[#allocation3 + $0x16] sm:$0xc0] %v785
    %796 = vst [vmem:[#allocation3 + $0xa] sm:$0x3] %v786
    %797 = vst [vmem:[#allocation3 + $0x1c] sm:$0xc] %v786
    %798 = vst [vmem:[#allocation3 + $0x8] sm:$0x30] %v786
    %799 = vst [vmem:[#allocation3 + $0x1a] sm:$0xc0] %v786
    %800 = vst [vmem:[#allocation3 + $0xe] sm:$0x3] %v787
    %801 = vst [vmem:[#allocation3 + $0x20] sm:$0xc] %v787
    %802 = vst [vmem:[#allocation3 + $0xc] sm:$0x30] %v787
    %803 = vst [vmem:[#allocation3 + $0x1e] sm:$0xc0] %v787
    %v804 = vld [vmem:[#allocation3 + $0x2] sm:$0xff]
    %v805 = vld [vmem:[#allocation3 + $0xa] sm:$0xff]
    %v806 = vld [vmem:[#allocation3 + $0x16] sm:$0xff]
    %v807 = vld [vmem:[#allocation3 + $0x1e] sm:$0xff]
    %v808 = vld [vmem:[%s2] sm:$0x7]
    %v809 = vadd.f32 %v804, %v805
    %v810 = vrot.slane %v809, 4
    %v811 = vadd.f32 %v809, %v810
    %v812 = vrot.slane %v811, 2
    %v813 = vadd.f32 %v811, %v812
    %v814 = vrot.slane %v813, 1
    %v815 = vadd.f32 %v813, %v814
    %v816 = vadd.f32 %v806, %v807
    %v817 = vrot.slane %v816, 4
    %v818 = vadd.f32 %v816, %v817
    %v819 = vrot.slane %v818, 2
    %v820 = vadd.f32 %v818, %v819
    %v821 = vrot.slane %v820, 1
    %v822 = vadd.f32 %v820, %v821
    %v823 = vadd.f32 %v815, %v822
    %v824 = vld [vmem:[%s3] sm:$0xff]
    %v825 = vld [vmem:[%s3 + $0x8] sm:$0xff]
    %v826 = vld [vmem:[%s3 + $0x10] sm:$0xff]
    %v827 = vld [vmem:[%s3 + $0x18] sm:$0xff]
    %v828 = vld [vmem:[%s3 + $0x20] sm:$0xff]
    %v829 = vld [vmem:[%s3 + $0x28] sm:$0xff]
    %v830 = vld [vmem:[%s3 + $0x30] sm:$0xff]
    %v831 = vld [vmem:[%s3 + $0x38] sm:$0xff]
    %v832 = vld [vmem:[%s3 + $0x40] sm:$0xff]
    %v833 = vld [vmem:[%s3 + $0x48] sm:$0xff]
    %v834 = vld [vmem:[%s3 + $0x50] sm:$0xff]
    %v835 = vld [vmem:[%s3 + $0x58] sm:$0xff]
    %v836 = vld [vmem:[%s3 + $0x60] sm:$0xff]
    %v837 = vld [vmem:[%s3 + $0x68] sm:$0xff]
    %v838 = vld [vmem:[%s3 + $0x70] sm:$0xff]
    %v839 = vld [vmem:[%s3 + $0x78] sm:$0xff]
    %840 = vmatprep.subr.mxu0 0.0
    %841 = vmatpush1.msra.mxu0 %v824
    %842 = vmatprep.subr.mxu0 0.0
    %843 = vmatpush1.msra.mxu0 %v825
    %844 = vmatprep.subr.mxu0 0.0
    %845 = vmatpush1.msra.mxu0 %v826
    %846 = vmatprep.subr.mxu0 0.0
    %847 = vmatpush1.msra.mxu0 %v827
    %848 = vmatprep.subr.mxu0 0.0
    %849 = vmatpush1.msra.mxu0 %v828
    %850 = vmatprep.subr.mxu0 0.0
    %851 = vmatpush1.msra.mxu0 %v829
    %852 = vmatprep.subr.mxu0 0.0
    %853 = vmatpush1.msra.mxu0 %v830
    %854 = vmatprep.subr.mxu0 0.0
    %855 = vmatpush1.msra.mxu0 %v831
    %856 = vmatprep.subr.mxu0 0.0
    %857 = vmatpush1.msra.mxu0 %v832
    %858 = vmatprep.subr.mxu0 0.0
    %859 = vmatpush1.msra.mxu0 %v833
    %860 = vmatprep.subr.mxu0 0.0
    %861 = vmatpush1.msra.mxu0 %v834
    %862 = vmatprep.subr.mxu0 0.0
    %863 = vmatpush1.msra.mxu0 %v835
    %864 = vmatprep.subr.mxu0 0.0
    %865 = vmatpush1.msra.mxu0 %v836
    %866 = vmatprep.subr.mxu0 0.0
    %867 = vmatpush1.msra.mxu0 %v837
    %868 = vmatprep.subr.mxu0 0.0
    %869 = vmatpush1.msra.mxu0 %v838
    %870 = vmatprep.subr.mxu0 0.0
    %871 = vmatpush1.msra.mxu0 %v839
    %872 = vmatprep.subr.mxu0 0.0
    %873 = vmatpush1.msra.mxu0 0.0
    %874 = vmatprep.subr.mxu0 0.0
    %875 = vmatpush1.msra.mxu0 0.0
    %876 = vmatprep.subr.mxu0 0.0
    %877 = vmatpush1.msra.mxu0 0.0
    %878 = vmatprep.subr.mxu0 0.0
    %879 = vmatpush1.msra.mxu0 0.0
    %880 = vmatprep.subr.mxu0 0.0
    %881 = vmatpush1.msra.mxu0 0.0
    %882 = vmatprep.subr.mxu0 0.0
    %883 = vmatpush1.msra.mxu0 0.0
    %884 = vmatprep.subr.mxu0 0.0
    %885 = vmatpush1.msra.mxu0 0.0
    %886 = vmatprep.subr.mxu0 0.0
    %887 = vmatpush1.msra.mxu0 0.0
    %888 = vmatprep.subr.mxu0 0.0
    %889 = vmatpush1.msra.mxu0 0.0
    %890 = vmatprep.subr.mxu0 0.0
    %891 = vmatpush1.msra.mxu0 0.0
    %892 = vmatprep.subr.mxu0 0.0
    %893 = vmatpush1.msra.mxu0 0.0
    %894 = vmatprep.subr.mxu0 0.0
    %895 = vmatpush1.msra.mxu0 0.0
    %896 = vmatprep.subr.mxu0 0.0
    %897 = vmatpush1.msra.mxu0 0.0
    %898 = vmatprep.subr.mxu0 0.0
    %899 = vmatpush1.msra.mxu0 0.0
    %900 = vmatprep.subr.mxu0 0.0
    %901 = vmatpush1.msra.mxu0 0.0
    %902 = vmatprep.subr.mxu0 0.0
    %903 = vmatpush1.msra.mxu0 0.0
    %904 = vmatprep.mubr.f32.mxu0 0.0
    %905 = vmatmul.mubr.f32.gmra.mrb[0].mxu0 %v823
    %v906 = vpop.f32.mrb[0].mxu0
    %v907 = vadd.f32 0.0, %v906
    %v908 = vpop.f32.mrb[0].mxu0
    %909 = vdwg.mxu0
    %v910 = vmul.f32 %v907, 0.001953125
    %v911 = vld [vmem:[%s4] sm:$0xff]
    %vm912 = vcmask 64512
    %v914 = vsel %vm912, %v910, 0
    %916 = vmatprep.subr.mxu0 0.0
    %917 = vmatpush1.msra.mxu0 %v911
    %918 = vmatprep.subr.mxu0 0.0
    %919 = vmatpush1.msra.mxu0 0.0
    %920 = vmatprep.subr.mxu0 0.0
    %921 = vmatpush1.msra.mxu0 0.0
    %922 = vmatprep.subr.mxu0 0.0
    %923 = vmatpush1.msra.mxu0 0.0
    %924 = vmatprep.subr.mxu0 0.0
    %925 = vmatpush1.msra.mxu0 0.0
    %926 = vmatprep.subr.mxu0 0.0
    %927 = vmatpush1.msra.mxu0 0.0
    %928 = vmatprep.subr.mxu0 0.0
    %929 = vmatpush1.msra.mxu0 0.0
    %930 = vmatprep.subr.mxu0 0.0
    %931 = vmatpush1.msra.mxu0 0.0
    %932 = vmatprep.subr.mxu0 0.0
    %933 = vmatpush1.msra.mxu0 0.0
    %934 = vmatprep.subr.mxu0 0.0
    %935 = vmatpush1.msra.mxu0 0.0
    %936 = vmatprep.subr.mxu0 0.0
    %937 = vmatpush1.msra.mxu0 0.0
    %938 = vmatprep.subr.mxu0 0.0
    %939 = vmatpush1.msra.mxu0 0.0
    %940 = vmatprep.subr.mxu0 0.0
    %941 = vmatpush1.msra.mxu0 0.0
    %942 = vmatprep.subr.mxu0 0.0
    %943 = vmatpush1.msra.mxu0 0.0
    %944 = vmatprep.subr.mxu0 0.0
    %945 = vmatpush1.msra.mxu0 0.0
    %946 = vmatprep.subr.mxu0 0.0
    %947 = vmatpush1.msra.mxu0 0.0
    %948 = vmatprep.subr.mxu0 0.0
    %949 = vmatpush1.msra.mxu0 0.0
    %950 = vmatprep.subr.mxu0 0.0
    %951 = vmatpush1.msra.mxu0 0.0
    %952 = vmatprep.subr.mxu0 0.0
    %953 = vmatpush1.msra.mxu0 0.0
    %954 = vmatprep.subr.mxu0 0.0
    %955 = vmatpush1.msra.mxu0 0.0
    %956 = vmatprep.subr.mxu0 0.0
    %957 = vmatpush1.msra.mxu0 0.0
    %958 = vmatprep.subr.mxu0 0.0
    %959 = vmatpush1.msra.mxu0 0.0
    %960 = vmatprep.subr.mxu0 0.0
    %961 = vmatpush1.msra.mxu0 0.0
    %962 = vmatprep.subr.mxu0 0.0
    %963 = vmatpush1.msra.mxu0 0.0
    %964 = vmatprep.subr.mxu0 0.0
    %965 = vmatpush1.msra.mxu0 0.0
    %966 = vmatprep.subr.mxu0 0.0
    %967 = vmatpush1.msra.mxu0 0.0
    %968 = vmatprep.subr.mxu0 0.0
    %969 = vmatpush1.msra.mxu0 0.0
    %970 = vmatprep.subr.mxu0 0.0
    %971 = vmatpush1.msra.mxu0 0.0
    %972 = vmatprep.subr.mxu0 0.0
    %973 = vmatpush1.msra.mxu0 0.0
    %974 = vmatprep.subr.mxu0 0.0
    %975 = vmatpush1.msra.mxu0 0.0
    %976 = vmatprep.subr.mxu0 0.0
    %977 = vmatpush1.msra.mxu0 0.0
    %978 = vmatprep.subr.mxu0 0.0
    %979 = vmatpush1.msra.mxu0 0.0
    %980 = vmatprep.mubr.f32.mxu0 0.0
    %981 = vmatmul.mubr.f32.gmra.mrb[0].mxu0 %v914
    %v982 = vpop.f32.mrb[0].mxu0
    %v983 = vadd.f32 0.0, %v982
    %v984 = vpop.f32.mrb[0].mxu0
    %985 = vdwg.mxu0
    %v986 = vlaneseq
    %v987 = vshrl.u32 %v986, 7
    %v988 = vsub.s32 0, %v987
    %v989 = vrot.slane %v983, %v988
    %v990 = vsub.f32 %v804, %v989
    %v991 = vsub.f32 %v805, %v989
    %v992 = vsub.f32 %v806, %v989
    %v993 = vsub.f32 %v807, %v989
    %v994 = vmul.f32 %v990, %v990
    %v995 = vmul.f32 %v991, %v991
    %v996 = vadd.f32 %v994, %v995
    %v997 = vrot.slane %v996, 4
    %v998 = vadd.f32 %v996, %v997
    %v999 = vrot.slane %v998, 2
    %v1000 = vadd.f32 %v998, %v999
    %v1001 = vrot.slane %v1000, 1
    %v1002 = vadd.f32 %v1000, %v1001
    %v1003 = vmul.f32 %v992, %v992
    %v1004 = vmul.f32 %v993, %v993
    %v1005 = vadd.f32 %v1003, %v1004
    %v1006 = vrot.slane %v1005, 4
    %v1007 = vadd.f32 %v1005, %v1006
    %v1008 = vrot.slane %v1007, 2
    %v1009 = vadd.f32 %v1007, %v1008
    %v1010 = vrot.slane %v1009, 1
    %v1011 = vadd.f32 %v1009, %v1010
    %v1012 = vadd.f32 %v1002, %v1011
    %1013 = vmatprep.subr.mxu0 0.0
    %1014 = vmatpush1.msra.mxu0 %v824
    %1015 = vmatprep.subr.mxu0 0.0
    %1016 = vmatpush1.msra.mxu0 %v825
    %1017 = vmatprep.subr.mxu0 0.0
    %1018 = vmatpush1.msra.mxu0 %v826
    %1019 = vmatprep.subr.mxu0 0.0
    %1020 = vmatpush1.msra.mxu0 %v827
    %1021 = vmatprep.subr.mxu0 0.0
    %1022 = vmatpush1.msra.mxu0 %v828
    %1023 = vmatprep.subr.mxu0 0.0
    %1024 = vmatpush1.msra.mxu0 %v829
    %1025 = vmatprep.subr.mxu0 0.0
    %1026 = vmatpush1.msra.mxu0 %v830
    %1027 = vmatprep.subr.mxu0 0.0
    %1028 = vmatpush1.msra.mxu0 %v831
    %1029 = vmatprep.subr.mxu0 0.0
    %1030 = vmatpush1.msra.mxu0 %v832
    %1031 = vmatprep.subr.mxu0 0.0
    %1032 = vmatpush1.msra.mxu0 %v833
    %1033 = vmatprep.subr.mxu0 0.0
    %1034 = vmatpush1.msra.mxu0 %v834
    %1035 = vmatprep.subr.mxu0 0.0
    %1036 = vmatpush1.msra.mxu0 %v835
    %1037 = vmatprep.subr.mxu0 0.0
    %1038 = vmatpush1.msra.mxu0 %v836
    %1039 = vmatprep.subr.mxu0 0.0
    %1040 = vmatpush1.msra.mxu0 %v837
    %1041 = vmatprep.subr.mxu0 0.0
    %1042 = vmatpush1.msra.mxu0 %v838
    %1043 = vmatprep.subr.mxu0 0.0
    %1044 = vmatpush1.msra.mxu0 %v839
    %1045 = vmatprep.subr.mxu0 0.0
    %1046 = vmatpush1.msra.mxu0 0.0
    %1047 = vmatprep.subr.mxu0 0.0
    %1048 = vmatpush1.msra.mxu0 0.0
    %1049 = vmatprep.subr.mxu0 0.0
    %1050 = vmatpush1.msra.mxu0 0.0
    %1051 = vmatprep.subr.mxu0 0.0
    %1052 = vmatpush1.msra.mxu0 0.0
    %1053 = vmatprep.subr.mxu0 0.0
    %1054 = vmatpush1.msra.mxu0 0.0
    %1055 = vmatprep.subr.mxu0 0.0
    %1056 = vmatpush1.msra.mxu0 0.0
    %1057 = vmatprep.subr.mxu0 0.0
    %1058 = vmatpush1.msra.mxu0 0.0
    %1059 = vmatprep.subr.mxu0 0.0
    %1060 = vmatpush1.msra.mxu0 0.0
    %1061 = vmatprep.subr.mxu0 0.0
    %1062 = vmatpush1.msra.mxu0 0.0
    %1063 = vmatprep.subr.mxu0 0.0
    %1064 = vmatpush1.msra.mxu0 0.0
    %1065 = vmatprep.subr.mxu0 0.0
    %1066 = vmatpush1.msra.mxu0 0.0
    %1067 = vmatprep.subr.mxu0 0.0
    %1068 = vmatpush1.msra.mxu0 0.0
    %1069 = vmatprep.subr.mxu0 0.0
    %1070 = vmatpush1.msra.mxu0 0.0
    %1071 = vmatprep.subr.mxu0 0.0
    %1072 = vmatpush1.msra.mxu0 0.0
    %1073 = vmatprep.subr.mxu0 0.0
    %1074 = vmatpush1.msra.mxu0 0.0
    %1075 = vmatprep.subr.mxu0 0.0
    %1076 = vmatpush1.msra.mxu0 0.0
    %1077 = vmatprep.mubr.f32.mxu0 0.0
    %1078 = vmatmul.mubr.f32.gmra.mrb[0].mxu0 %v1012
    %v1079 = vpop.f32.mrb[0].mxu0
    %v1080 = vadd.f32 0.0, %v1079
    %v1081 = vpop.f32.mrb[0].mxu0
    %1082 = vdwg.mxu0
    %v1083 = vmul.f32 %v1080, 0.001953125
    %v1084 = vadd.f32 %v1083, 1e-05
    %v1085 = vrsqrt.pop %v1084
    %v1087 = vsel %vm912, %v1085, 0
    %1089 = vmatprep.subr.mxu0 0.0
    %1090 = vmatpush1.msra.mxu0 %v911
    %1091 = vmatprep.subr.mxu0 0.0
    %1092 = vmatpush1.msra.mxu0 0.0
    %1093 = vmatprep.subr.mxu0 0.0
    %1094 = vmatpush1.msra.mxu0 0.0
    %1095 = vmatprep.subr.mxu0 0.0
    %1096 = vmatpush1.msra.mxu0 0.0
    %1097 = vmatprep.subr.mxu0 0.0
    %1098 = vmatpush1.msra.mxu0 0.0
    %1099 = vmatprep.subr.mxu0 0.0
    %1100 = vmatpush1.msra.mxu0 0.0
    %1101 = vmatprep.subr.mxu0 0.0
    %1102 = vmatpush1.msra.mxu0 0.0
    %1103 = vmatprep.subr.mxu0 0.0
    %1104 = vmatpush1.msra.mxu0 0.0
    %1105 = vmatprep.subr.mxu0 0.0
    %1106 = vmatpush1.msra.mxu0 0.0
    %1107 = vmatprep.subr.mxu0 0.0
    %1108 = vmatpush1.msra.mxu0 0.0
    %1109 = vmatprep.subr.mxu0 0.0
    %1110 = vmatpush1.msra.mxu0 0.0
    %1111 = vmatprep.subr.mxu0 0.0
    %1112 = vmatpush1.msra.mxu0 0.0
    %1113 = vmatprep.subr.mxu0 0.0
    %1114 = vmatpush1.msra.mxu0 0.0
    %1115 = vmatprep.subr.mxu0 0.0
    %1116 = vmatpush1.msra.mxu0 0.0
    %1117 = vmatprep.subr.mxu0 0.0
    %1118 = vmatpush1.msra.mxu0 0.0
    %1119 = vmatprep.subr.mxu0 0.0
    %1120 = vmatpush1.msra.mxu0 0.0
    %1121 = vmatprep.subr.mxu0 0.0
    %1122 = vmatpush1.msra.mxu0 0.0
    %1123 = vmatprep.subr.mxu0 0.0
    %1124 = vmatpush1.msra.mxu0 0.0
    %1125 = vmatprep.subr.mxu0 0.0
    %1126 = vmatpush1.msra.mxu0 0.0
    %1127 = vmatprep.subr.mxu0 0.0
    %1128 = vmatpush1.msra.mxu0 0.0
    %1129 = vmatprep.subr.mxu0 0.0
    %1130 = vmatpush1.msra.mxu0 0.0
    %1131 = vmatprep.subr.mxu0 0.0
    %1132 = vmatpush1.msra.mxu0 0.0
    %1133 = vmatprep.subr.mxu0 0.0
    %1134 = vmatpush1.msra.mxu0 0.0
    %1135 = vmatprep.subr.mxu0 0.0
    %1136 = vmatpush1.msra.mxu0 0.0
    %1137 = vmatprep.subr.mxu0 0.0
    %1138 = vmatpush1.msra.mxu0 0.0
    %1139 = vmatprep.subr.mxu0 0.0
    %1140 = vmatpush1.msra.mxu0 0.0
    %1141 = vmatprep.subr.mxu0 0.0
    %1142 = vmatpush1.msra.mxu0 0.0
    %1143 = vmatprep.subr.mxu0 0.0
    %1144 = vmatpush1.msra.mxu0 0.0
    %1145 = vmatprep.subr.mxu0 0.0
    %1146 = vmatpush1.msra.mxu0 0.0
    %1147 = vmatprep.subr.mxu0 0.0
    %1148 = vmatpush1.msra.mxu0 0.0
    %1149 = vmatprep.subr.mxu0 0.0
    %1150 = vmatpush1.msra.mxu0 0.0
    %1151 = vmatprep.subr.mxu0 0.0
    %1152 = vmatpush1.msra.mxu0 0.0
    %1153 = vmatprep.mubr.f32.mxu0 0.0
    %1154 = vmatmul.mubr.f32.gmra.mrb[0].mxu0 %v1087
    %v1155 = vpop.f32.mrb[0].mxu0
    %v1156 = vadd.f32 0.0, %v1155
    %v1157 = vpop.f32.mrb[0].mxu0
    %1158 = vdwg.mxu0
    %v1160 = vrot.slane %v808, 1
    %v1162 = vmul.f32 %v1156, %v1160
    %v1163 = vlaneseq
    %v1164 = vshrl.u32 %v1163, 7
    %v1165 = vsub.s32 0, %v1164
    %v1166 = vrot.slane %v1162, %v1165
    %v1167 = vmul.f32 %v990, %v1166
    %v1168 = vmul.f32 %v991, %v1166
    %v1169 = vlaneseq
    %v1170 = vshrl.u32 %v1169, 7
    %v1171 = vsub.s32 2, %v1170
    %v1172 = vrot.slane %v808, %v1171
    %v1173 = vadd.f32 %v1167, %v1172
    %v1174 = vadd.f32 %v1168, %v1172
    %v1175 = vmul.f32 %v992, %v1166
    %v1176 = vmul.f32 %v993, %v1166
    %v1177 = vadd.f32 %v1175, %v1172
    %v1178 = vadd.f32 %v1176, %v1172
    %1179 = vst [vmem:[#allocation3 + $0x2] sm:$0xff] %v1173
    %1180 = vst [vmem:[#allocation3 + $0xa] sm:$0xff] %v1174
    %1181 = vst [vmem:[#allocation3 + $0x16] sm:$0xff] %v1177
    %1182 = vst [vmem:[#allocation3 + $0x1e] sm:$0xff] %v1178
    %v1183 = vld [vmem:[#allocation3] sm:$0xff]
    %v1184 = vld [vmem:[#allocation3 + $0x8] sm:$0xff]
    %v1185 = vld [vmem:[%s5] sm:$0xff]
    %v1186 = vld [vmem:[%s5 + $0x8] sm:$0xff]
    %v1187 = vld [vmem:[%s5 + $0x10] sm:$0xff]
    %v1188 = vld [vmem:[%s5 + $0x18] sm:$0xff]
    %v1189 = vld [vmem:[%s5 + $0x20] sm:$0xff]
    %v1190 = vld [vmem:[%s5 + $0x28] sm:$0xff]
    %v1191 = vld [vmem:[%s5 + $0x30] sm:$0xff]
    %v1192 = vld [vmem:[%s5 + $0x38] sm:$0xff]
    %v1193 = vld [vmem:[%s5 + $0x40] sm:$0xff]
    %v1194 = vld [vmem:[%s5 + $0x48] sm:$0xff]
    %v1195 = vld [vmem:[%s5 + $0x50] sm:$0xff]
    %v1196 = vld [vmem:[%s5 + $0x58] sm:$0xff]
    %v1197 = vld [vmem:[%s5 + $0x60] sm:$0xff]
    %v1198 = vld [vmem:[%s5 + $0x68] sm:$0xff]
    %v1199 = vld [vmem:[%s5 + $0x70] sm:$0xff]
    %v1200 = vld [vmem:[%s5 + $0x78] sm:$0xff]
    %v1201 = vld [vmem:[#allocation3 + $0x14] sm:$0xff]
    %v1202 = vld [vmem:[#allocation3 + $0x1c] sm:$0xff]
    %s1203 = scalar_lea.vmem %s5, 128
    %v1204 = vld [vmem:[%s1203] sm:$0xff]
    %v1205 = vld [vmem:[%s1203 + $0x8] sm:$0xff]
    %v1206 = vld [vmem:[%s1203 + $0x10] sm:$0xff]
    %v1207 = vld [vmem:[%s1203 + $0x18] sm:$0xff]
    %v1208 = vld [vmem:[%s1203 + $0x20] sm:$0xff]
    %v1209 = vld [vmem:[%s1203 + $0x28] sm:$0xff]
    %v1210 = vld [vmem:[%s1203 + $0x30] sm:$0xff]
    %v1211 = vld [vmem:[%s1203 + $0x38] sm:$0xff]
    %v1212 = vld [vmem:[%s1203 + $0x40] sm:$0xff]
    %v1213 = vld [vmem:[%s1203 + $0x48] sm:$0xff]
    %v1214 = vld [vmem:[%s1203 + $0x50] sm:$0xff]
    %v1215 = vld [vmem:[%s1203 + $0x58] sm:$0xff]
    %v1216 = vld [vmem:[%s1203 + $0x60] sm:$0xff]
    %v1217 = vld [vmem:[%s1203 + $0x68] sm:$0xff]
    %v1218 = vld [vmem:[%s1203 + $0x70] sm:$0xff]
    %v1219 = vld [vmem:[%s1203 + $0x78] sm:$0xff]
    %1220 = vmatprep.subr.mxu0 0.0
    %1221 = vmatpush1.msra.mxu0 %v1204
    %1222 = vmatprep.subr.mxu0 0.0
    %1223 = vmatpush1.msra.mxu0 %v1205
    %1224 = vmatprep.subr.mxu0 0.0
    %1225 = vmatpush1.msra.mxu0 %v1206
    %1226 = vmatprep.subr.mxu0 0.0
    %1227 = vmatpush1.msra.mxu0 %v1207
    %1228 = vmatprep.subr.mxu0 0.0
    %1229 = vmatpush1.msra.mxu0 %v1208
    %1230 = vmatprep.subr.mxu0 0.0
    %1231 = vmatpush1.msra.mxu0 %v1209
    %1232 = vmatprep.subr.mxu0 0.0
    %1233 = vmatpush1.msra.mxu0 %v1210
    %1234 = vmatprep.subr.mxu0 0.0
    %1235 = vmatpush1.msra.mxu0 %v1211
    %1236 = vmatprep.subr.mxu0 0.0
    %1237 = vmatpush1.msra.mxu0 %v1212
    %1238 = vmatprep.subr.mxu0 0.0
    %1239 = vmatpush1.msra.mxu0 %v1213
    %1240 = vmatprep.subr.mxu0 0.0
    %1241 = vmatpush1.msra.mxu0 %v1214
    %1242 = vmatprep.subr.mxu0 0.0
    %1243 = vmatpush1.msra.mxu0 %v1215
    %1244 = vmatprep.subr.mxu0 0.0
    %1245 = vmatpush1.msra.mxu0 %v1216
    %1246 = vmatprep.subr.mxu0 0.0
    %1247 = vmatpush1.msra.mxu0 %v1217
    %1248 = vmatprep.subr.mxu0 0.0
    %1249 = vmatpush1.msra.mxu0 %v1218
    %1250 = vmatprep.subr.mxu0 0.0
    %1251 = vmatpush1.msra.mxu0 %v1219
    %1252 = vmatprep.subr.mxu0 0.0
    %1253 = vmatpush1.msra.mxu0 0.0
    %1254 = vmatprep.subr.mxu0 0.0
    %1255 = vmatpush1.msra.mxu0 0.0
    %1256 = vmatprep.subr.mxu0 0.0
    %1257 = vmatpush1.msra.mxu0 0.0
    %1258 = vmatprep.subr.mxu0 0.0
    %1259 = vmatpush1.msra.mxu0 0.0
    %1260 = vmatprep.subr.mxu0 0.0
    %1261 = vmatpush1.msra.mxu0 0.0
    %1262 = vmatprep.subr.mxu0 0.0
    %1263 = vmatpush1.msra.mxu0 0.0
    %1264 = vmatprep.subr.mxu0 0.0
    %1265 = vmatpush1.msra.mxu0 0.0
    %1266 = vmatprep.subr.mxu0 0.0
    %1267 = vmatpush1.msra.mxu0 0.0
    %1268 = vmatprep.subr.mxu0 0.0
    %1269 = vmatpush1.msra.mxu0 0.0
    %1270 = vmatprep.subr.mxu0 0.0
    %1271 = vmatpush1.msra.mxu0 0.0
    %1272 = vmatprep.subr.mxu0 0.0
    %1273 = vmatpush1.msra.mxu0 0.0
    %1274 = vmatprep.subr.mxu0 0.0
    %1275 = vmatpush1.msra.mxu0 0.0
    %1276 = vmatprep.subr.mxu0 0.0
    %1277 = vmatpush1.msra.mxu0 0.0
    %1278 = vmatprep.subr.mxu0 0.0
    %1279 = vmatpush1.msra.mxu0 0.0
    %1280 = vmatprep.subr.mxu0 0.0
    %1281 = vmatpush1.msra.mxu0 0.0
    %1282 = vmatprep.subr.mxu0 0.0
    %1283 = vmatpush1.msra.mxu0 0.0
    %1284 = vmatprep.mubr.f32.mxu0 0.0
    %1285 = vmatmul.mubr.f32.gmra.mrb[0].mxu0 %v1201
    %v1286 = vpop.f32.mrb[0].mxu0
    %v1287 = vadd.f32 0.0, %v1286
    %v1288 = vpop.f32.mrb[0].mxu0
    %1289 = vmatprep.mubr.f32.mxu0 0.0
    %1290 = vmatmul.mubr.f32.gmra.mrb[0].mxu0 %v1202
    %v1291 = vpop.f32.mrb[0].mxu0
    %v1292 = vadd.f32 0.0, %v1291
    %v1293 = vpop.f32.mrb[0].mxu0
    %1294 = vdwg.mxu0
    %1295 = vmatprep.subr.mxu0 0.0
    %1296 = vmatpush1.msra.mxu0 %v1185
    %1297 = vmatprep.subr.mxu0 0.0
    %1298 = vmatpush1.msra.mxu0 %v1186
    %1299 = vmatprep.subr.mxu0 0.0
    %1300 = vmatpush1.msra.mxu0 %v1187
    %1301 = vmatprep.subr.mxu0 0.0
    %1302 = vmatpush1.msra.mxu0 %v1188
    %1303 = vmatprep.subr.mxu0 0.0
    %1304 = vmatpush1.msra.mxu0 %v1189
    %1305 = vmatprep.subr.mxu0 0.0
    %1306 = vmatpush1.msra.mxu0 %v1190
    %1307 = vmatprep.subr.mxu0 0.0
    %1308 = vmatpush1.msra.mxu0 %v1191
    %1309 = vmatprep.subr.mxu0 0.0
    %1310 = vmatpush1.msra.mxu0 %v1192
    %1311 = vmatprep.subr.mxu0 0.0
    %1312 = vmatpush1.msra.mxu0 %v1193
    %1313 = vmatprep.subr.mxu0 0.0
    %1314 = vmatpush1.msra.mxu0 %v1194
    %1315 = vmatprep.subr.mxu0 0.0
    %1316 = vmatpush1.msra.mxu0 %v1195
    %1317 = vmatprep.subr.mxu0 0.0
    %1318 = vmatpush1.msra.mxu0 %v1196
    %1319 = vmatprep.subr.mxu0 0.0
    %1320 = vmatpush1.msra.mxu0 %v1197
    %1321 = vmatprep.subr.mxu0 0.0
    %1322 = vmatpush1.msra.mxu0 %v1198
    %1323 = vmatprep.subr.mxu0 0.0
    %1324 = vmatpush1.msra.mxu0 %v1199
    %1325 = vmatprep.subr.mxu0 0.0
    %1326 = vmatpush1.msra.mxu0 %v1200
    %1327 = vmatprep.subr.mxu0 0.0
    %1328 = vmatpush1.msra.mxu0 0.0
    %1329 = vmatprep.subr.mxu0 0.0
    %1330 = vmatpush1.msra.mxu0 0.0
    %1331 = vmatprep.subr.mxu0 0.0
    %1332 = vmatpush1.msra.mxu0 0.0
    %1333 = vmatprep.subr.mxu0 0.0
    %1334 = vmatpush1.msra.mxu0 0.0
    %1335 = vmatprep.subr.mxu0 0.0
    %1336 = vmatpush1.msra.mxu0 0.0
    %1337 = vmatprep.subr.mxu0 0.0
    %1338 = vmatpush1.msra.mxu0 0.0
    %1339 = vmatprep.subr.mxu0 0.0
    %1340 = vmatpush1.msra.mxu0 0.0
    %1341 = vmatprep.subr.mxu0 0.0
    %1342 = vmatpush1.msra.mxu0 0.0
    %1343 = vmatprep.subr.mxu0 0.0
    %1344 = vmatpush1.msra.mxu0 0.0
    %1345 = vmatprep.subr.mxu0 0.0
    %1346 = vmatpush1.msra.mxu0 0.0
    %1347 = vmatprep.subr.mxu0 0.0
    %1348 = vmatpush1.msra.mxu0 0.0
    %1349 = vmatprep.subr.mxu0 0.0
    %1350 = vmatpush1.msra.mxu0 0.0
    %1351 = vmatprep.subr.mxu0 0.0
    %1352 = vmatpush1.msra.mxu0 0.0
    %1353 = vmatprep.subr.mxu0 0.0
    %1354 = vmatpush1.msra.mxu0 0.0
    %1355 = vmatprep.subr.mxu0 0.0
    %1356 = vmatpush1.msra.mxu0 0.0
    %1357 = vmatprep.subr.mxu0 0.0
    %1358 = vmatpush1.msra.mxu0 0.0
    %1359 = vmatprep.mubr.f32.mxu0 0.0
    %1360 = vmatmul.mubr.f32.gmra.mrb[0].mxu0 %v1183
    %v1361 = vpop.f32.mrb[0].mxu0
    %v1362 = vadd.f32 %v1287, %v1361
    %v1363 = vpop.f32.mrb[0].mxu0
    %1364 = vmatprep.mubr.f32.mxu0 0.0
    %1365 = vmatmul.mubr.f32.gmra.mrb[0].mxu0 %v1184
    %v1366 = vpop.f32.mrb[0].mxu0
    %v1367 = vadd.f32 %v1292, %v1366
    %v1368 = vpop.f32.mrb[0].mxu0
    %1369 = vdwg.mxu0
    %v1370 = vld [vmem:[#allocation3 + $0x2] sm:$0xff]
    %v1371 = vld [vmem:[#allocation3 + $0xa] sm:$0xff]
    %s1372 = scalar_lea.vmem %s5, 256
    %v1373 = vld [vmem:[%s1372] sm:$0xff]
    %v1374 = vld [vmem:[%s1372 + $0x8] sm:$0xff]
    %v1375 = vld [vmem:[%s1372 + $0x10] sm:$0xff]
    %v1376 = vld [vmem:[%s1372 + $0x18] sm:$0xff]
    %v1377 = vld [vmem:[%s1372 + $0x20] sm:$0xff]
    %v1378 = vld [vmem:[%s1372 + $0x28] sm:$0xff]
    %v1379 = vld [vmem:[%s1372 + $0x30] sm:$0xff]
    %v1380 = vld [vmem:[%s1372 + $0x38] sm:$0xff]
    %v1381 = vld [vmem:[%s1372 + $0x40] sm:$0xff]
    %v1382 = vld [vmem:[%s1372 + $0x48] sm:$0xff]
    %v1383 = vld [vmem:[%s1372 + $0x50] sm:$0xff]
    %v1384 = vld [vmem:[%s1372 + $0x58] sm:$0xff]
    %v1385 = vld [vmem:[%s1372 + $0x60] sm:$0xff]
    %v1386 = vld [vmem:[%s1372 + $0x68] sm:$0xff]
    %v1387 = vld [vmem:[%s1372 + $0x70] sm:$0xff]
    %v1388 = vld [vmem:[%s1372 + $0x78] sm:$0xff]
    %1389 = vmatprep.subr.mxu0 0.0
    %1390 = vmatpush1.msra.mxu0 %v1373
    %1391 = vmatprep.subr.mxu0 0.0
    %1392 = vmatpush1.msra.mxu0 %v1374
    %1393 = vmatprep.subr.mxu0 0.0
    %1394 = vmatpush1.msra.mxu0 %v1375
    %1395 = vmatprep.subr.mxu0 0.0
    %1396 = vmatpush1.msra.mxu0 %v1376
    %1397 = vmatprep.subr.mxu0 0.0
    %1398 = vmatpush1.msra.mxu0 %v1377
    %1399 = vmatprep.subr.mxu0 0.0
    %1400 = vmatpush1.msra.mxu0 %v1378
    %1401 = vmatprep.subr.mxu0 0.0
    %1402 = vmatpush1.msra.mxu0 %v1379
    %1403 = vmatprep.subr.mxu0 0.0
    %1404 = vmatpush1.msra.mxu0 %v1380
    %1405 = vmatprep.subr.mxu0 0.0
    %1406 = vmatpush1.msra.mxu0 %v1381
    %1407 = vmatprep.subr.mxu0 0.0
    %1408 = vmatpush1.msra.mxu0 %v1382
    %1409 = vmatprep.subr.mxu0 0.0
    %1410 = vmatpush1.msra.mxu0 %v1383
    %1411 = vmatprep.subr.mxu0 0.0
    %1412 = vmatpush1.msra.mxu0 %v1384
    %1413 = vmatprep.subr.mxu0 0.0
    %1414 = vmatpush1.msra.mxu0 %v1385
    %1415 = vmatprep.subr.mxu0 0.0
    %1416 = vmatpush1.msra.mxu0 %v1386
    %1417 = vmatprep.subr.mxu0 0.0
    %1418 = vmatpush1.msra.mxu0 %v1387
    %1419 = vmatprep.subr.mxu0 0.0
    %1420 = vmatpush1.msra.mxu0 %v1388
    %1421 = vmatprep.subr.mxu0 0.0
    %1422 = vmatpush1.msra.mxu0 0.0
    %1423 = vmatprep.subr.mxu0 0.0
    %1424 = vmatpush1.msra.mxu0 0.0
    %1425 = vmatprep.subr.mxu0 0.0
    %1426 = vmatpush1.msra.mxu0 0.0
    %1427 = vmatprep.subr.mxu0 0.0
    %1428 = vmatpush1.msra.mxu0 0.0
    %1429 = vmatprep.subr.mxu0 0.0
    %1430 = vmatpush1.msra.mxu0 0.0
    %1431 = vmatprep.subr.mxu0 0.0
    %1432 = vmatpush1.msra.mxu0 0.0
    %1433 = vmatprep.subr.mxu0 0.0
    %1434 = vmatpush1.msra.mxu0 0.0
    %1435 = vmatprep.subr.mxu0 0.0
    %1436 = vmatpush1.msra.mxu0 0.0
    %1437 = vmatprep.subr.mxu0 0.0
    %1438 = vmatpush1.msra.mxu0 0.0
    %1439 = vmatprep.subr.mxu0 0.0
    %1440 = vmatpush1.msra.mxu0 0.0
    %1441 = vmatprep.subr.mxu0 0.0
    %1442 = vmatpush1.msra.mxu0 0.0
    %1443 = vmatprep.subr.mxu0 0.0
    %1444 = vmatpush1.msra.mxu0 0.0
    %1445 = vmatprep.subr.mxu0 0.0
    %1446 = vmatpush1.msra.mxu0 0.0
    %1447 = vmatprep.subr.mxu0 0.0
    %1448 = vmatpush1.msra.mxu0 0.0
    %1449 = vmatprep.subr.mxu0 0.0
    %1450 = vmatpush1.msra.mxu0 0.0
    %1451 = vmatprep.subr.mxu0 0.0
    %1452 = vmatpush1.msra.mxu0 0.0
    %1453 = vmatprep.mubr.f32.mxu0 0.0
    %1454 = vmatmul.mubr.f32.gmra.mrb[0].mxu0 %v1370
    %v1455 = vpop.f32.mrb[0].mxu0
    %v1456 = vadd.f32 0.0, %v1455
    %v1457 = vpop.f32.mrb[0].mxu0
    %1458 = vmatprep.mubr.f32.mxu0 0.0
    %1459 = vmatmul.mubr.f32.gmra.mrb[0].mxu0 %v1371
    %v1460 = vpop.f32.mrb[0].mxu0
    %v1461 = vadd.f32 0.0, %v1460
    %v1462 = vpop.f32.mrb[0].mxu0
    %1463 = vdwg.mxu0
    %v1464 = vadd.f32 %v1362, %v1456
    %v1465 = vadd.f32 %v1367, %v1461
    %v1466 = vld [vmem:[#allocation3 + $0x16] sm:$0xff]
    %v1467 = vld [vmem:[#allocation3 + $0x1e] sm:$0xff]
    %s1468 = scalar_lea.vmem %s5, 384
    %v1469 = vld [vmem:[%s1468] sm:$0xff]
    %v1470 = vld [vmem:[%s1468 + $0x8] sm:$0xff]
    %v1471 = vld [vmem:[%s1468 + $0x10] sm:$0xff]
    %v1472 = vld [vmem:[%s1468 + $0x18] sm:$0xff]
    %v1473 = vld [vmem:[%s1468 + $0x20] sm:$0xff]
    %v1474 = vld [vmem:[%s1468 + $0x28] sm:$0xff]
    %v1475 = vld [vmem:[%s1468 + $0x30] sm:$0xff]
    %v1476 = vld [vmem:[%s1468 + $0x38] sm:$0xff]
    %v1477 = vld [vmem:[%s1468 + $0x40] sm:$0xff]
    %v1478 = vld [vmem:[%s1468 + $0x48] sm:$0xff]
    %v1479 = vld [vmem:[%s1468 + $0x50] sm:$0xff]
    %v1480 = vld [vmem:[%s1468 + $0x58] sm:$0xff]
    %v1481 = vld [vmem:[%s1468 + $0x60] sm:$0xff]
    %v1482 = vld [vmem:[%s1468 + $0x68] sm:$0xff]
    %v1483 = vld [vmem:[%s1468 + $0x70] sm:$0xff]
    %v1484 = vld [vmem:[%s1468 + $0x78] sm:$0xff]
    %1485 = vmatprep.subr.mxu0 0.0
    %1486 = vmatpush1.msra.mxu0 %v1469
    %1487 = vmatprep.subr.mxu0 0.0
    %1488 = vmatpush1.msra.mxu0 %v1470
    %1489 = vmatprep.subr.mxu0 0.0
    %1490 = vmatpush1.msra.mxu0 %v1471
    %1491 = vmatprep.subr.mxu0 0.0
    %1492 = vmatpush1.msra.mxu0 %v1472
    %1493 = vmatprep.subr.mxu0 0.0
    %1494 = vmatpush1.msra.mxu0 %v1473
    %1495 = vmatprep.subr.mxu0 0.0
    %1496 = vmatpush1.msra.mxu0 %v1474
    %1497 = vmatprep.subr.mxu0 0.0
    %1498 = vmatpush1.msra.mxu0 %v1475
    %1499 = vmatprep.subr.mxu0 0.0
    %1500 = vmatpush1.msra.mxu0 %v1476
    %1501 = vmatprep.subr.mxu0 0.0
    %1502 = vmatpush1.msra.mxu0 %v1477
    %1503 = vmatprep.subr.mxu0 0.0
    %1504 = vmatpush1.msra.mxu0 %v1478
    %1505 = vmatprep.subr.mxu0 0.0
    %1506 = vmatpush1.msra.mxu0 %v1479
    %1507 = vmatprep.subr.mxu0 0.0
    %1508 = vmatpush1.msra.mxu0 %v1480
    %1509 = vmatprep.subr.mxu0 0.0
    %1510 = vmatpush1.msra.mxu0 %v1481
    %1511 = vmatprep.subr.mxu0 0.0
    %1512 = vmatpush1.msra.mxu0 %v1482
    %1513 = vmatprep.subr.mxu0 0.0
    %1514 = vmatpush1.msra.mxu0 %v1483
    %1515 = vmatprep.subr.mxu0 0.0
    %1516 = vmatpush1.msra.mxu0 %v1484
    %1517 = vmatprep.subr.mxu0 0.0
    %1518 = vmatpush1.msra.mxu0 0.0
    %1519 = vmatprep.subr.mxu0 0.0
    %1520 = vmatpush1.msra.mxu0 0.0
    %1521 = vmatprep.subr.mxu0 0.0
    %1522 = vmatpush1.msra.mxu0 0.0
    %1523 = vmatprep.subr.mxu0 0.0
    %1524 = vmatpush1.msra.mxu0 0.0
    %1525 = vmatprep.subr.mxu0 0.0
    %1526 = vmatpush1.msra.mxu0 0.0
    %1527 = vmatprep.subr.mxu0 0.0
    %1528 = vmatpush1.msra.mxu0 0.0
    %1529 = vmatprep.subr.mxu0 0.0
    %1530 = vmatpush1.msra.mxu0 0.0
    %1531 = vmatprep.subr.mxu0 0.0
    %1532 = vmatpush1.msra.mxu0 0.0
    %1533 = vmatprep.subr.mxu0 0.0
    %1534 = vmatpush1.msra.mxu0 0.0
    %1535 = vmatprep.subr.mxu0 0.0
    %1536 = vmatpush1.msra.mxu0 0.0
    %1537 = vmatprep.subr.mxu0 0.0
    %1538 = vmatpush1.msra.mxu0 0.0
    %1539 = vmatprep.subr.mxu0 0.0
    %1540 = vmatpush1.msra.mxu0 0.0
    %1541 = vmatprep.subr.mxu0 0.0
    %1542 = vmatpush1.msra.mxu0 0.0
    %1543 = vmatprep.subr.mxu0 0.0
    %1544 = vmatpush1.msra.mxu0 0.0
    %1545 = vmatprep.subr.mxu0 0.0
    %1546 = vmatpush1.msra.mxu0 0.0
    %1547 = vmatprep.subr.mxu0 0.0
    %1548 = vmatpush1.msra.mxu0 0.0
    %1549 = vmatprep.mubr.f32.mxu0 0.0
    %1550 = vmatmul.mubr.f32.gmra.mrb[0].mxu0 %v1466
    %v1551 = vpop.f32.mrb[0].mxu0
    %v1552 = vadd.f32 0.0, %v1551
    %v1553 = vpop.f32.mrb[0].mxu0
    %1554 = vmatprep.mubr.f32.mxu0 0.0
    %1555 = vmatmul.mubr.f32.gmra.mrb[0].mxu0 %v1467
    %v1556 = vpop.f32.mrb[0].mxu0
    %v1557 = vadd.f32 0.0, %v1556
    %v1558 = vpop.f32.mrb[0].mxu0
    %1559 = vdwg.mxu0
    %v1560 = vadd.f32 %v1464, %v1552
    %v1561 = vadd.f32 %v1465, %v1557
    %v1562 = vld [vmem:[#allocation3 + $0x4] sm:$0xff]
    %v1563 = vld [vmem:[#allocation3 + $0xc] sm:$0xff]
    %s1564 = scalar_lea.vmem %s5, 512
    %v1565 = vld [vmem:[%s1564] sm:$0xff]
    %v1566 = vld [vmem:[%s1564 + $0x8] sm:$0xff]
    %v1567 = vld [vmem:[%s1564 + $0x10] sm:$0xff]
    %v1568 = vld [vmem:[%s1564 + $0x18] sm:$0xff]
    %v1569 = vld [vmem:[%s1564 + $0x20] sm:$0xff]
    %v1570 = vld [vmem:[%s1564 + $0x28] sm:$0xff]
    %v1571 = vld [vmem:[%s1564 + $0x30] sm:$0xff]
    %v1572 = vld [vmem:[%s1564 + $0x38] sm:$0xff]
    %v1573 = vld [vmem:[%s1564 + $0x40] sm:$0xff]
    %v1574 = vld [vmem:[%s1564 + $0x48] sm:$0xff]
    %v1575 = vld [vmem:[%s1564 + $0x50] sm:$0xff]
    %v1576 = vld [vmem:[%s1564 + $0x58] sm:$0xff]
    %v1577 = vld [vmem:[%s1564 + $0x60] sm:$0xff]
    %v1578 = vld [vmem:[%s1564 + $0x68] sm:$0xff]
    %v1579 = vld [vmem:[%s1564 + $0x70] sm:$0xff]
    %v1580 = vld [vmem:[%s1564 + $0x78] sm:$0xff]
    %1581 = vmatprep.subr.mxu0 0.0
    %1582 = vmatpush1.msra.mxu0 %v1565
    %1583 = vmatprep.subr.mxu0 0.0
    %1584 = vmatpush1.msra.mxu0 %v1566
    %1585 = vmatprep.subr.mxu0 0.0
    %1586 = vmatpush1.msra.mxu0 %v1567
    %1587 = vmatprep.subr.mxu0 0.0
    %1588 = vmatpush1.msra.mxu0 %v1568
    %1589 = vmatprep.subr.mxu0 0.0
    %1590 = vmatpush1.msra.mxu0 %v1569
    %1591 = vmatprep.subr.mxu0 0.0
    %1592 = vmatpush1.msra.mxu0 %v1570
    %1593 = vmatprep.subr.mxu0 0.0
    %1594 = vmatpush1.msra.mxu0 %v1571
    %1595 = vmatprep.subr.mxu0 0.0
    %1596 = vmatpush1.msra.mxu0 %v1572
    %1597 = vmatprep.subr.mxu0 0.0
    %1598 = vmatpush1.msra.mxu0 %v1573
    %1599 = vmatprep.subr.mxu0 0.0
    %1600 = vmatpush1.msra.mxu0 %v1574
    %1601 = vmatprep.subr.mxu0 0.0
    %1602 = vmatpush1.msra.mxu0 %v1575
    %1603 = vmatprep.subr.mxu0 0.0
    %1604 = vmatpush1.msra.mxu0 %v1576
    %1605 = vmatprep.subr.mxu0 0.0
    %1606 = vmatpush1.msra.mxu0 %v1577
    %1607 = vmatprep.subr.mxu0 0.0
    %1608 = vmatpush1.msra.mxu0 %v1578
    %1609 = vmatprep.subr.mxu0 0.0
    %1610 = vmatpush1.msra.mxu0 %v1579
    %1611 = vmatprep.subr.mxu0 0.0
    %1612 = vmatpush1.msra.mxu0 %v1580
    %1613 = vmatprep.subr.mxu0 0.0
    %1614 = vmatpush1.msra.mxu0 0.0
    %1615 = vmatprep.subr.mxu0 0.0
    %1616 = vmatpush1.msra.mxu0 0.0
    %1617 = vmatprep.subr.mxu0 0.0
    %1618 = vmatpush1.msra.mxu0 0.0
    %1619 = vmatprep.subr.mxu0 0.0
    %1620 = vmatpush1.msra.mxu0 0.0
    %1621 = vmatprep.subr.mxu0 0.0
    %1622 = vmatpush1.msra.mxu0 0.0
    %1623 = vmatprep.subr.mxu0 0.0
    %1624 = vmatpush1.msra.mxu0 0.0
    %1625 = vmatprep.subr.mxu0 0.0
    %1626 = vmatpush1.msra.mxu0 0.0
    %1627 = vmatprep.subr.mxu0 0.0
    %1628 = vmatpush1.msra.mxu0 0.0
    %1629 = vmatprep.subr.mxu0 0.0
    %1630 = vmatpush1.msra.mxu0 0.0
    %1631 = vmatprep.subr.mxu0 0.0
    %1632 = vmatpush1.msra.mxu0 0.0
    %1633 = vmatprep.subr.mxu0 0.0
    %1634 = vmatpush1.msra.mxu0 0.0
    %1635 = vmatprep.subr.mxu0 0.0
    %1636 = vmatpush1.msra.mxu0 0.0
    %1637 = vmatprep.subr.mxu0 0.0
    %1638 = vmatpush1.msra.mxu0 0.0
    %1639 = vmatprep.subr.mxu0 0.0
    %1640 = vmatpush1.msra.mxu0 0.0
    %1641 = vmatprep.subr.mxu0 0.0
    %1642 = vmatpush1.msra.mxu0 0.0
    %1643 = vmatprep.subr.mxu0 0.0
    %1644 = vmatpush1.msra.mxu0 0.0
    %1645 = vmatprep.mubr.f32.mxu0 0.0
    %1646 = vmatmul.mubr.f32.gmra.mrb[0].mxu0 %v1562
    %v1647 = vpop.f32.mrb[0].mxu0
    %v1648 = vadd.f32 0.0, %v1647
    %v1649 = vpop.f32.mrb[0].mxu0
    %1650 = vmatprep.mubr.f32.mxu0 0.0
    %1651 = vmatmul.mubr.f32.gmra.mrb[0].mxu0 %v1563
    %v1652 = vpop.f32.mrb[0].mxu0
    %v1653 = vadd.f32 0.0, %v1652
    %v1654 = vpop.f32.mrb[0].mxu0
    %1655 = vdwg.mxu0
    %v1656 = vadd.f32 %v1560, %v1648
    %v1657 = vadd.f32 %v1561, %v1653
    %v1658 = vld [vmem:[%s6] sm:$0x7]
    %v1659 = vlaneseq
    %v1660 = vshrl.u32 %v1659, 7
    %v1661 = vsub.s32 0, %v1660
    %v1662 = vrot.slane %v1658, %v1661
    %v1663 = vadd.f32 %v1656, %v1662
    %v1664 = vadd.f32 %v1657, %v1662
    %vm1665 = vcmp.ge.f32.partialorder %v1663, 0.0
    %vm1666 = vcmp.ge.f32.partialorder %v1664, 0.0
    %v1667 = vmul.f32 %v1663, 0.01
    %v1668 = vmul.f32 %v1664, 0.01
    %v1669 = vsel %vm1665, %v1663, %v1667
    %v1670 = vsel %vm1666, %v1664, %v1668
    %1671 = vst [vmem:[#allocation4 + $0x2] sm:$0x3] %v1669
    %1672 = vst [vmem:[#allocation4 + $0xc] sm:$0xc] %v1669
    %1673 = vst [vmem:[#allocation4] sm:$0x30] %v1669
    %1674 = vst [vmem:[#allocation4 + $0xa] sm:$0xc0] %v1669
    %1675 = vst [vmem:[#allocation4 + $0x6] sm:$0x3] %v1670
    %1676 = vst [vmem:[#allocation4 + $0x10] sm:$0xc] %v1670
    %1677 = vst [vmem:[#allocation4 + $0x4] sm:$0x30] %v1670
    %1678 = vst [vmem:[#allocation4 + $0xe] sm:$0xc0] %v1670
    %v1679 = vld [vmem:[#allocation4 + $0x2] sm:$0xff]
    %v1680 = vld [vmem:[#allocation4 + $0xe] sm:$0xff]
    %v1681 = vld [vmem:[%s6] sm:$0x7]
    %v1682 = vrot.slane %v1679, 4
    %v1683 = vadd.f32 %v1679, %v1682
    %v1684 = vrot.slane %v1683, 2
    %v1685 = vadd.f32 %v1683, %v1684
    %v1686 = vrot.slane %v1685, 1
    %v1687 = vadd.f32 %v1685, %v1686
    %v1688 = vrot.slane %v1680, 4
    %v1689 = vadd.f32 %v1680, %v1688
    %v1690 = vrot.slane %v1689, 2
    %v1691 = vadd.f32 %v1689, %v1690
    %v1692 = vrot.slane %v1691, 1
    %v1693 = vadd.f32 %v1691, %v1692
    %v1694 = vadd.f32 %v1687, %v1693
    %v1695 = vld [vmem:[%s7] sm:$0xff]
    %v1696 = vld [vmem:[%s7 + $0x8] sm:$0xff]
    %v1697 = vld [vmem:[%s7 + $0x10] sm:$0xff]
    %v1698 = vld [vmem:[%s7 + $0x18] sm:$0xff]
    %v1699 = vld [vmem:[%s7 + $0x20] sm:$0xff]
    %v1700 = vld [vmem:[%s7 + $0x28] sm:$0xff]
    %v1701 = vld [vmem:[%s7 + $0x30] sm:$0xff]
    %v1702 = vld [vmem:[%s7 + $0x38] sm:$0xff]
    %v1703 = vld [vmem:[%s7 + $0x40] sm:$0xff]
    %v1704 = vld [vmem:[%s7 + $0x48] sm:$0xff]
    %v1705 = vld [vmem:[%s7 + $0x50] sm:$0xff]
    %v1706 = vld [vmem:[%s7 + $0x58] sm:$0xff]
    %v1707 = vld [vmem:[%s7 + $0x60] sm:$0xff]
    %v1708 = vld [vmem:[%s7 + $0x68] sm:$0xff]
    %v1709 = vld [vmem:[%s7 + $0x70] sm:$0xff]
    %v1710 = vld [vmem:[%s7 + $0x78] sm:$0xff]
    %1711 = vmatprep.subr.mxu0 0.0
    %1712 = vmatpush1.msra.mxu0 %v1695
    %1713 = vmatprep.subr.mxu0 0.0
    %1714 = vmatpush1.msra.mxu0 %v1696
    %1715 = vmatprep.subr.mxu0 0.0
    %1716 = vmatpush1.msra.mxu0 %v1697
    %1717 = vmatprep.subr.mxu0 0.0
    %1718 = vmatpush1.msra.mxu0 %v1698
    %1719 = vmatprep.subr.mxu0 0.0
    %1720 = vmatpush1.msra.mxu0 %v1699
    %1721 = vmatprep.subr.mxu0 0.0
    %1722 = vmatpush1.msra.mxu0 %v1700
    %1723 = vmatprep.subr.mxu0 0.0
    %1724 = vmatpush1.msra.mxu0 %v1701
    %1725 = vmatprep.subr.mxu0 0.0
    %1726 = vmatpush1.msra.mxu0 %v1702
    %1727 = vmatprep.subr.mxu0 0.0
    %1728 = vmatpush1.msra.mxu0 %v1703
    %1729 = vmatprep.subr.mxu0 0.0
    %1730 = vmatpush1.msra.mxu0 %v1704
    %1731 = vmatprep.subr.mxu0 0.0
    %1732 = vmatpush1.msra.mxu0 %v1705
    %1733 = vmatprep.subr.mxu0 0.0
    %1734 = vmatpush1.msra.mxu0 %v1706
    %1735 = vmatprep.subr.mxu0 0.0
    %1736 = vmatpush1.msra.mxu0 %v1707
    %1737 = vmatprep.subr.mxu0 0.0
    %1738 = vmatpush1.msra.mxu0 %v1708
    %1739 = vmatprep.subr.mxu0 0.0
    %1740 = vmatpush1.msra.mxu0 %v1709
    %1741 = vmatprep.subr.mxu0 0.0
    %1742 = vmatpush1.msra.mxu0 %v1710
    %1743 = vmatprep.subr.mxu0 0.0
    %1744 = vmatpush1.msra.mxu0 0.0
    %1745 = vmatprep.subr.mxu0 0.0
    %1746 = vmatpush1.msra.mxu0 0.0
    %1747 = vmatprep.subr.mxu0 0.0
    %1748 = vmatpush1.msra.mxu0 0.0
    %1749 = vmatprep.subr.mxu0 0.0
    %1750 = vmatpush1.msra.mxu0 0.0
    %1751 = vmatprep.subr.mxu0 0.0
    %1752 = vmatpush1.msra.mxu0 0.0
    %1753 = vmatprep.subr.mxu0 0.0
    %1754 = vmatpush1.msra.mxu0 0.0
    %1755 = vmatprep.subr.mxu0 0.0
    %1756 = vmatpush1.msra.mxu0 0.0
    %1757 = vmatprep.subr.mxu0 0.0
    %1758 = vmatpush1.msra.mxu0 0.0
    %1759 = vmatprep.subr.mxu0 0.0
    %1760 = vmatpush1.msra.mxu0 0.0
    %1761 = vmatprep.subr.mxu0 0.0
    %1762 = vmatpush1.msra.mxu0 0.0
    %1763 = vmatprep.subr.mxu0 0.0
    %1764 = vmatpush1.msra.mxu0 0.0
    %1765 = vmatprep.subr.mxu0 0.0
    %1766 = vmatpush1.msra.mxu0 0.0
    %1767 = vmatprep.subr.mxu0 0.0
    %1768 = vmatpush1.msra.mxu0 0.0
    %1769 = vmatprep.subr.mxu0 0.0
    %1770 = vmatpush1.msra.mxu0 0.0
    %1771 = vmatprep.subr.mxu0 0.0
    %1772 = vmatpush1.msra.mxu0 0.0
    %1773 = vmatprep.subr.mxu0 0.0
    %1774 = vmatpush1.msra.mxu0 0.0
    %1775 = vmatprep.mubr.f32.mxu0 0.0
    %1776 = vmatmul.mubr.f32.gmra.mrb[0].mxu0 %v1694
    %v1777 = vpop.f32.mrb[0].mxu0
    %v1778 = vadd.f32 0.0, %v1777
    %v1779 = vpop.f32.mrb[0].mxu0
    %1780 = vdwg.mxu0
    %v1781 = vmul.f32 %v1778, 0.0078125
    %v1782 = vld [vmem:[%s8] sm:$0xff]
    %v1783 = vld [vmem:[%s8 + $0x8] sm:$0xff]
    %v1785 = vsel %vm248, %v1781, 0
    %1787 = vmatprep.subr.mxu0 0.0
    %1788 = vmatpush1.msra.mxu0 %v1782
    %1789 = vmatprep.subr.mxu0 0.0
    %1790 = vmatpush1.msra.mxu0 %v1783
    %1791 = vmatprep.subr.mxu0 0.0
    %1792 = vmatpush1.msra.mxu0 0.0
    %1793 = vmatprep.subr.mxu0 0.0
    %1794 = vmatpush1.msra.mxu0 0.0
    %1795 = vmatprep.subr.mxu0 0.0
    %1796 = vmatpush1.msra.mxu0 0.0
    %1797 = vmatprep.subr.mxu0 0.0
    %1798 = vmatpush1.msra.mxu0 0.0
    %1799 = vmatprep.subr.mxu0 0.0
    %1800 = vmatpush1.msra.mxu0 0.0
    %1801 = vmatprep.subr.mxu0 0.0
    %1802 = vmatpush1.msra.mxu0 0.0
    %1803 = vmatprep.subr.mxu0 0.0
    %1804 = vmatpush1.msra.mxu0 0.0
    %1805 = vmatprep.subr.mxu0 0.0
    %1806 = vmatpush1.msra.mxu0 0.0
    %1807 = vmatprep.subr.mxu0 0.0
    %1808 = vmatpush1.msra.mxu0 0.0
    %1809 = vmatprep.subr.mxu0 0.0
    %1810 = vmatpush1.msra.mxu0 0.0
    %1811 = vmatprep.subr.mxu0 0.0
    %1812 = vmatpush1.msra.mxu0 0.0
    %1813 = vmatprep.subr.mxu0 0.0
    %1814 = vmatpush1.msra.mxu0 0.0
    %1815 = vmatprep.subr.mxu0 0.0
    %1816 = vmatpush1.msra.mxu0 0.0
    %1817 = vmatprep.subr.mxu0 0.0
    %1818 = vmatpush1.msra.mxu0 0.0
    %1819 = vmatprep.subr.mxu0 0.0
    %1820 = vmatpush1.msra.mxu0 0.0
    %1821 = vmatprep.subr.mxu0 0.0
    %1822 = vmatpush1.msra.mxu0 0.0
    %1823 = vmatprep.subr.mxu0 0.0
    %1824 = vmatpush1.msra.mxu0 0.0
    %1825 = vmatprep.subr.mxu0 0.0
    %1826 = vmatpush1.msra.mxu0 0.0
    %1827 = vmatprep.subr.mxu0 0.0
    %1828 = vmatpush1.msra.mxu0 0.0
    %1829 = vmatprep.subr.mxu0 0.0
    %1830 = vmatpush1.msra.mxu0 0.0
    %1831 = vmatprep.subr.mxu0 0.0
    %1832 = vmatpush1.msra.mxu0 0.0
    %1833 = vmatprep.subr.mxu0 0.0
    %1834 = vmatpush1.msra.mxu0 0.0
    %1835 = vmatprep.subr.mxu0 0.0
    %1836 = vmatpush1.msra.mxu0 0.0
    %1837 = vmatprep.subr.mxu0 0.0
    %1838 = vmatpush1.msra.mxu0 0.0
    %1839 = vmatprep.subr.mxu0 0.0
    %1840 = vmatpush1.msra.mxu0 0.0
    %1841 = vmatprep.subr.mxu0 0.0
    %1842 = vmatpush1.msra.mxu0 0.0
    %1843 = vmatprep.subr.mxu0 0.0
    %1844 = vmatpush1.msra.mxu0 0.0
    %1845 = vmatprep.subr.mxu0 0.0
    %1846 = vmatpush1.msra.mxu0 0.0
    %1847 = vmatprep.subr.mxu0 0.0
    %1848 = vmatpush1.msra.mxu0 0.0
    %1849 = vmatprep.subr.mxu0 0.0
    %1850 = vmatpush1.msra.mxu0 0.0
    %1851 = vmatprep.mubr.f32.mxu0 0.0
    %1852 = vmatmul.mubr.f32.gmra.mrb[0].mxu0 %v1785
    %v1853 = vpop.f32.mrb[0].mxu0
    %v1854 = vadd.f32 0.0, %v1853
    %v1855 = vpop.f32.mrb[0].mxu0
    %1856 = vdwg.mxu0
    %v1857 = vlaneseq
    %v1858 = vshrl.u32 %v1857, 7
    %v1859 = vsub.s32 0, %v1858
    %v1860 = vrot.slane %v1854, %v1859
    %v1861 = vsub.f32 %v1679, %v1860
    %v1862 = vsub.f32 %v1680, %v1860
    %v1863 = vmul.f32 %v1861, %v1861
    %v1864 = vrot.slane %v1863, 4
    %v1865 = vadd.f32 %v1863, %v1864
    %v1866 = vrot.slane %v1865, 2
    %v1867 = vadd.f32 %v1865, %v1866
    %v1868 = vrot.slane %v1867, 1
    %v1869 = vadd.f32 %v1867, %v1868
    %v1870 = vmul.f32 %v1862, %v1862
    %v1871 = vrot.slane %v1870, 4
    %v1872 = vadd.f32 %v1870, %v1871
    %v1873 = vrot.slane %v1872, 2
    %v1874 = vadd.f32 %v1872, %v1873
    %v1875 = vrot.slane %v1874, 1
    %v1876 = vadd.f32 %v1874, %v1875
    %v1877 = vadd.f32 %v1869, %v1876
    %1878 = vmatprep.subr.mxu0 0.0
    %1879 = vmatpush1.msra.mxu0 %v1695
    %1880 = vmatprep.subr.mxu0 0.0
    %1881 = vmatpush1.msra.mxu0 %v1696
    %1882 = vmatprep.subr.mxu0 0.0
    %1883 = vmatpush1.msra.mxu0 %v1697
    %1884 = vmatprep.subr.mxu0 0.0
    %1885 = vmatpush1.msra.mxu0 %v1698
    %1886 = vmatprep.subr.mxu0 0.0
    %1887 = vmatpush1.msra.mxu0 %v1699
    %1888 = vmatprep.subr.mxu0 0.0
    %1889 = vmatpush1.msra.mxu0 %v1700
    %1890 = vmatprep.subr.mxu0 0.0
    %1891 = vmatpush1.msra.mxu0 %v1701
    %1892 = vmatprep.subr.mxu0 0.0
    %1893 = vmatpush1.msra.mxu0 %v1702
    %1894 = vmatprep.subr.mxu0 0.0
    %1895 = vmatpush1.msra.mxu0 %v1703
    %1896 = vmatprep.subr.mxu0 0.0
    %1897 = vmatpush1.msra.mxu0 %v1704
    %1898 = vmatprep.subr.mxu0 0.0
    %1899 = vmatpush1.msra.mxu0 %v1705
    %1900 = vmatprep.subr.mxu0 0.0
    %1901 = vmatpush1.msra.mxu0 %v1706
    %1902 = vmatprep.subr.mxu0 0.0
    %1903 = vmatpush1.msra.mxu0 %v1707
    %1904 = vmatprep.subr.mxu0 0.0
    %1905 = vmatpush1.msra.mxu0 %v1708
    %1906 = vmatprep.subr.mxu0 0.0
    %1907 = vmatpush1.msra.mxu0 %v1709
    %1908 = vmatprep.subr.mxu0 0.0
    %1909 = vmatpush1.msra.mxu0 %v1710
    %1910 = vmatprep.subr.mxu0 0.0
    %1911 = vmatpush1.msra.mxu0 0.0
    %1912 = vmatprep.subr.mxu0 0.0
    %1913 = vmatpush1.msra.mxu0 0.0
    %1914 = vmatprep.subr.mxu0 0.0
    %1915 = vmatpush1.msra.mxu0 0.0
    %1916 = vmatprep.subr.mxu0 0.0
    %1917 = vmatpush1.msra.mxu0 0.0
    %1918 = vmatprep.subr.mxu0 0.0
    %1919 = vmatpush1.msra.mxu0 0.0
    %1920 = vmatprep.subr.mxu0 0.0
    %1921 = vmatpush1.msra.mxu0 0.0
    %1922 = vmatprep.subr.mxu0 0.0
    %1923 = vmatpush1.msra.mxu0 0.0
    %1924 = vmatprep.subr.mxu0 0.0
    %1925 = vmatpush1.msra.mxu0 0.0
    %1926 = vmatprep.subr.mxu0 0.0
    %1927 = vmatpush1.msra.mxu0 0.0
    %1928 = vmatprep.subr.mxu0 0.0
    %1929 = vmatpush1.msra.mxu0 0.0
    %1930 = vmatprep.subr.mxu0 0.0
    %1931 = vmatpush1.msra.mxu0 0.0
    %1932 = vmatprep.subr.mxu0 0.0
    %1933 = vmatpush1.msra.mxu0 0.0
    %1934 = vmatprep.subr.mxu0 0.0
    %1935 = vmatpush1.msra.mxu0 0.0
    %1936 = vmatprep.subr.mxu0 0.0
    %1937 = vmatpush1.msra.mxu0 0.0
    %1938 = vmatprep.subr.mxu0 0.0
    %1939 = vmatpush1.msra.mxu0 0.0
    %1940 = vmatprep.subr.mxu0 0.0
    %1941 = vmatpush1.msra.mxu0 0.0
    %1942 = vmatprep.mubr.f32.mxu0 0.0
    %1943 = vmatmul.mubr.f32.gmra.mrb[0].mxu0 %v1877
    %v1944 = vpop.f32.mrb[0].mxu0
    %v1945 = vadd.f32 0.0, %v1944
    %v1946 = vpop.f32.mrb[0].mxu0
    %1947 = vdwg.mxu0
    %v1948 = vmul.f32 %v1945, 0.0078125
    %v1949 = vadd.f32 %v1948, 1e-05
    %v1950 = vrsqrt.pop %v1949
    %v1952 = vsel %vm248, %v1950, 0
    %1954 = vmatprep.subr.mxu0 0.0
    %1955 = vmatpush1.msra.mxu0 %v1782
    %1956 = vmatprep.subr.mxu0 0.0
    %1957 = vmatpush1.msra.mxu0 %v1783
    %1958 = vmatprep.subr.mxu0 0.0
    %1959 = vmatpush1.msra.mxu0 0.0
    %1960 = vmatprep.subr.mxu0 0.0
    %1961 = vmatpush1.msra.mxu0 0.0
    %1962 = vmatprep.subr.mxu0 0.0
    %1963 = vmatpush1.msra.mxu0 0.0
    %1964 = vmatprep.subr.mxu0 0.0
    %1965 = vmatpush1.msra.mxu0 0.0
    %1966 = vmatprep.subr.mxu0 0.0
    %1967 = vmatpush1.msra.mxu0 0.0
    %1968 = vmatprep.subr.mxu0 0.0
    %1969 = vmatpush1.msra.mxu0 0.0
    %1970 = vmatprep.subr.mxu0 0.0
    %1971 = vmatpush1.msra.mxu0 0.0
    %1972 = vmatprep.subr.mxu0 0.0
    %1973 = vmatpush1.msra.mxu0 0.0
    %1974 = vmatprep.subr.mxu0 0.0
    %1975 = vmatpush1.msra.mxu0 0.0
    %1976 = vmatprep.subr.mxu0 0.0
    %1977 = vmatpush1.msra.mxu0 0.0
    %1978 = vmatprep.subr.mxu0 0.0
    %1979 = vmatpush1.msra.mxu0 0.0
    %1980 = vmatprep.subr.mxu0 0.0
    %1981 = vmatpush1.msra.mxu0 0.0
    %1982 = vmatprep.subr.mxu0 0.0
    %1983 = vmatpush1.msra.mxu0 0.0
    %1984 = vmatprep.subr.mxu0 0.0
    %1985 = vmatpush1.msra.mxu0 0.0
    %1986 = vmatprep.subr.mxu0 0.0
    %1987 = vmatpush1.msra.mxu0 0.0
    %1988 = vmatprep.subr.mxu0 0.0
    %1989 = vmatpush1.msra.mxu0 0.0
    %1990 = vmatprep.subr.mxu0 0.0
    %1991 = vmatpush1.msra.mxu0 0.0
    %1992 = vmatprep.subr.mxu0 0.0
    %1993 = vmatpush1.msra.mxu0 0.0
    %1994 = vmatprep.subr.mxu0 0.0
    %1995 = vmatpush1.msra.mxu0 0.0
    %1996 = vmatprep.subr.mxu0 0.0
    %1997 = vmatpush1.msra.mxu0 0.0
    %1998 = vmatprep.subr.mxu0 0.0
    %1999 = vmatpush1.msra.mxu0 0.0
    %2000 = vmatprep.subr.mxu0 0.0
    %2001 = vmatpush1.msra.mxu0 0.0
    %2002 = vmatprep.subr.mxu0 0.0
    %2003 = vmatpush1.msra.mxu0 0.0
    %2004 = vmatprep.subr.mxu0 0.0
    %2005 = vmatpush1.msra.mxu0 0.0
    %2006 = vmatprep.subr.mxu0 0.0
    %2007 = vmatpush1.msra.mxu0 0.0
    %2008 = vmatprep.subr.mxu0 0.0
    %2009 = vmatpush1.msra.mxu0 0.0
    %2010 = vmatprep.subr.mxu0 0.0
    %2011 = vmatpush1.msra.mxu0 0.0
    %2012 = vmatprep.subr.mxu0 0.0
    %2013 = vmatpush1.msra.mxu0 0.0
    %2014 = vmatprep.subr.mxu0 0.0
    %2015 = vmatpush1.msra.mxu0 0.0
    %2016 = vmatprep.subr.mxu0 0.0
    %2017 = vmatpush1.msra.mxu0 0.0
    %2018 = vmatprep.mubr.f32.mxu0 0.0
    %2019 = vmatmul.mubr.f32.gmra.mrb[0].mxu0 %v1952
    %v2020 = vpop.f32.mrb[0].mxu0
    %v2021 = vadd.f32 0.0, %v2020
    %v2022 = vpop.f32.mrb[0].mxu0
    %2023 = vdwg.mxu0
    %v2025 = vrot.slane %v1681, 1
    %v2027 = vmul.f32 %v2021, %v2025
    %v2028 = vlaneseq
    %v2029 = vshrl.u32 %v2028, 7
    %v2030 = vsub.s32 0, %v2029
    %v2031 = vrot.slane %v2027, %v2030
    %v2032 = vmul.f32 %v1861, %v2031
    %v2033 = vlaneseq
    %v2034 = vshrl.u32 %v2033, 7
    %v2035 = vsub.s32 2, %v2034
    %v2036 = vrot.slane %v1681, %v2035
    %v2037 = vadd.f32 %v2032, %v2036
    %v2038 = vmul.f32 %v1862, %v2031
    %v2039 = vadd.f32 %v2038, %v2036
    %2040 = vst [vmem:[#allocation4 + $0x2] sm:$0xff] %v2037
    %2041 = vst [vmem:[#allocation4 + $0xe] sm:$0xff] %v2039
    %v2042 = vld [vmem:[#allocation4] sm:$0xff]
    %v2043 = vld [vmem:[#allocation6] sm:$0xff]
    %v2044 = vld [vmem:[#allocation6 + $0x8] sm:$0xff]
    %v2045 = vld [vmem:[#allocation6 + $0x10] sm:$0xff]
    %v2046 = vld [vmem:[#allocation6 + $0x18] sm:$0xff]
    %v2047 = vld [vmem:[#allocation6 + $0x20] sm:$0xff]
    %v2048 = vld [vmem:[#allocation6 + $0x28] sm:$0xff]
    %v2049 = vld [vmem:[#allocation6 + $0x30] sm:$0xff]
    %v2050 = vld [vmem:[#allocation6 + $0x38] sm:$0xff]
    %v2051 = vld [vmem:[#allocation6 + $0x40] sm:$0xff]
    %v2052 = vld [vmem:[#allocation6 + $0x48] sm:$0xff]
    %v2053 = vld [vmem:[#allocation6 + $0x50] sm:$0xff]
    %v2054 = vld [vmem:[#allocation6 + $0x58] sm:$0xff]
    %v2055 = vld [vmem:[#allocation6 + $0x60] sm:$0xff]
    %v2056 = vld [vmem:[#allocation6 + $0x68] sm:$0xff]
    %v2057 = vld [vmem:[#allocation6 + $0x70] sm:$0xff]
    %v2058 = vld [vmem:[#allocation6 + $0x78] sm:$0xff]
    %v2059 = vld [vmem:[#allocation4 + $0xc] sm:$0xff]
    %s2060 = scalar_lea.vmem [#allocation6], 128
    %v2061 = vld [vmem:[%s2060] sm:$0xff]
    %v2062 = vld [vmem:[%s2060 + $0x8] sm:$0xff]
    %v2063 = vld [vmem:[%s2060 + $0x10] sm:$0xff]
    %v2064 = vld [vmem:[%s2060 + $0x18] sm:$0xff]
    %v2065 = vld [vmem:[%s2060 + $0x20] sm:$0xff]
    %v2066 = vld [vmem:[%s2060 + $0x28] sm:$0xff]
    %v2067 = vld [vmem:[%s2060 + $0x30] sm:$0xff]
    %v2068 = vld [vmem:[%s2060 + $0x38] sm:$0xff]
    %v2069 = vld [vmem:[%s2060 + $0x40] sm:$0xff]
    %v2070 = vld [vmem:[%s2060 + $0x48] sm:$0xff]
    %v2071 = vld [vmem:[%s2060 + $0x50] sm:$0xff]
    %v2072 = vld [vmem:[%s2060 + $0x58] sm:$0xff]
    %v2073 = vld [vmem:[%s2060 + $0x60] sm:$0xff]
    %v2074 = vld [vmem:[%s2060 + $0x68] sm:$0xff]
    %v2075 = vld [vmem:[%s2060 + $0x70] sm:$0xff]
    %v2076 = vld [vmem:[%s2060 + $0x78] sm:$0xff]
    %2077 = vmatprep.subr.mxu0 0.0
    %2078 = vmatpush1.msra.mxu0 %v2061
    %2079 = vmatprep.subr.mxu0 0.0
    %2080 = vmatpush1.msra.mxu0 %v2062
    %2081 = vmatprep.subr.mxu0 0.0
    %2082 = vmatpush1.msra.mxu0 %v2063
    %2083 = vmatprep.subr.mxu0 0.0
    %2084 = vmatpush1.msra.mxu0 %v2064
    %2085 = vmatprep.subr.mxu0 0.0
    %2086 = vmatpush1.msra.mxu0 %v2065
    %2087 = vmatprep.subr.mxu0 0.0
    %2088 = vmatpush1.msra.mxu0 %v2066
    %2089 = vmatprep.subr.mxu0 0.0
    %2090 = vmatpush1.msra.mxu0 %v2067
    %2091 = vmatprep.subr.mxu0 0.0
    %2092 = vmatpush1.msra.mxu0 %v2068
    %2093 = vmatprep.subr.mxu0 0.0
    %2094 = vmatpush1.msra.mxu0 %v2069
    %2095 = vmatprep.subr.mxu0 0.0
    %2096 = vmatpush1.msra.mxu0 %v2070
    %2097 = vmatprep.subr.mxu0 0.0
    %2098 = vmatpush1.msra.mxu0 %v2071
    %2099 = vmatprep.subr.mxu0 0.0
    %2100 = vmatpush1.msra.mxu0 %v2072
    %2101 = vmatprep.subr.mxu0 0.0
    %2102 = vmatpush1.msra.mxu0 %v2073
    %2103 = vmatprep.subr.mxu0 0.0
    %2104 = vmatpush1.msra.mxu0 %v2074
    %2105 = vmatprep.subr.mxu0 0.0
    %2106 = vmatpush1.msra.mxu0 %v2075
    %2107 = vmatprep.subr.mxu0 0.0
    %2108 = vmatpush1.msra.mxu0 %v2076
    %2109 = vmatprep.subr.mxu0 0.0
    %2110 = vmatpush1.msra.mxu0 0.0
    %2111 = vmatprep.subr.mxu0 0.0
    %2112 = vmatpush1.msra.mxu0 0.0
    %2113 = vmatprep.subr.mxu0 0.0
    %2114 = vmatpush1.msra.mxu0 0.0
    %2115 = vmatprep.subr.mxu0 0.0
    %2116 = vmatpush1.msra.mxu0 0.0
    %2117 = vmatprep.subr.mxu0 0.0
    %2118 = vmatpush1.msra.mxu0 0.0
    %2119 = vmatprep.subr.mxu0 0.0
    %2120 = vmatpush1.msra.mxu0 0.0
    %2121 = vmatprep.subr.mxu0 0.0
    %2122 = vmatpush1.msra.mxu0 0.0
    %2123 = vmatprep.subr.mxu0 0.0
    %2124 = vmatpush1.msra.mxu0 0.0
    %2125 = vmatprep.subr.mxu0 0.0
    %2126 = vmatpush1.msra.mxu0 0.0
    %2127 = vmatprep.subr.mxu0 0.0
    %2128 = vmatpush1.msra.mxu0 0.0
    %2129 = vmatprep.subr.mxu0 0.0
    %2130 = vmatpush1.msra.mxu0 0.0
    %2131 = vmatprep.subr.mxu0 0.0
    %2132 = vmatpush1.msra.mxu0 0.0
    %2133 = vmatprep.subr.mxu0 0.0
    %2134 = vmatpush1.msra.mxu0 0.0
    %2135 = vmatprep.subr.mxu0 0.0
    %2136 = vmatpush1.msra.mxu0 0.0
    %2137 = vmatprep.subr.mxu0 0.0
    %2138 = vmatpush1.msra.mxu0 0.0
    %2139 = vmatprep.subr.mxu0 0.0
    %2140 = vmatpush1.msra.mxu0 0.0
    %2141 = vmatprep.mubr.f32.mxu0 0.0
    %2142 = vmatmul.mubr.f32.gmra.mrb[0].mxu0 %v2059
    %v2143 = vpop.f32.mrb[0].mxu0
    %v2144 = vadd.f32 0.0, %v2143
    %v2145 = vpop.f32.mrb[0].mxu0
    %2146 = vdwg.mxu0
    %2147 = vmatprep.subr.mxu0 0.0
    %2148 = vmatpush1.msra.mxu0 %v2043
    %2149 = vmatprep.subr.mxu0 0.0
    %2150 = vmatpush1.msra.mxu0 %v2044
    %2151 = vmatprep.subr.mxu0 0.0
    %2152 = vmatpush1.msra.mxu0 %v2045
    %2153 = vmatprep.subr.mxu0 0.0
    %2154 = vmatpush1.msra.mxu0 %v2046
    %2155 = vmatprep.subr.mxu0 0.0
    %2156 = vmatpush1.msra.mxu0 %v2047
    %2157 = vmatprep.subr.mxu0 0.0
    %2158 = vmatpush1.msra.mxu0 %v2048
    %2159 = vmatprep.subr.mxu0 0.0
    %2160 = vmatpush1.msra.mxu0 %v2049
    %2161 = vmatprep.subr.mxu0 0.0
    %2162 = vmatpush1.msra.mxu0 %v2050
    %2163 = vmatprep.subr.mxu0 0.0
    %2164 = vmatpush1.msra.mxu0 %v2051
    %2165 = vmatprep.subr.mxu0 0.0
    %2166 = vmatpush1.msra.mxu0 %v2052
    %2167 = vmatprep.subr.mxu0 0.0
    %2168 = vmatpush1.msra.mxu0 %v2053
    %2169 = vmatprep.subr.mxu0 0.0
    %2170 = vmatpush1.msra.mxu0 %v2054
    %2171 = vmatprep.subr.mxu0 0.0
    %2172 = vmatpush1.msra.mxu0 %v2055
    %2173 = vmatprep.subr.mxu0 0.0
    %2174 = vmatpush1.msra.mxu0 %v2056
    %2175 = vmatprep.subr.mxu0 0.0
    %2176 = vmatpush1.msra.mxu0 %v2057
    %2177 = vmatprep.subr.mxu0 0.0
    %2178 = vmatpush1.msra.mxu0 %v2058
    %2179 = vmatprep.subr.mxu0 0.0
    %2180 = vmatpush1.msra.mxu0 0.0
    %2181 = vmatprep.subr.mxu0 0.0
    %2182 = vmatpush1.msra.mxu0 0.0
    %2183 = vmatprep.subr.mxu0 0.0
    %2184 = vmatpush1.msra.mxu0 0.0
    %2185 = vmatprep.subr.mxu0 0.0
    %2186 = vmatpush1.msra.mxu0 0.0
    %2187 = vmatprep.subr.mxu0 0.0
    %2188 = vmatpush1.msra.mxu0 0.0
    %2189 = vmatprep.subr.mxu0 0.0
    %2190 = vmatpush1.msra.mxu0 0.0
    %2191 = vmatprep.subr.mxu0 0.0
    %2192 = vmatpush1.msra.mxu0 0.0
    %2193 = vmatprep.subr.mxu0 0.0
    %2194 = vmatpush1.msra.mxu0 0.0
    %2195 = vmatprep.subr.mxu0 0.0
    %2196 = vmatpush1.msra.mxu0 0.0
    %2197 = vmatprep.subr.mxu0 0.0
    %2198 = vmatpush1.msra.mxu0 0.0
    %2199 = vmatprep.subr.mxu0 0.0
    %2200 = vmatpush1.msra.mxu0 0.0
    %2201 = vmatprep.subr.mxu0 0.0
    %2202 = vmatpush1.msra.mxu0 0.0
    %2203 = vmatprep.subr.mxu0 0.0
    %2204 = vmatpush1.msra.mxu0 0.0
    %2205 = vmatprep.subr.mxu0 0.0
    %2206 = vmatpush1.msra.mxu0 0.0
    %2207 = vmatprep.subr.mxu0 0.0
    %2208 = vmatpush1.msra.mxu0 0.0
    %2209 = vmatprep.subr.mxu0 0.0
    %2210 = vmatpush1.msra.mxu0 0.0
    %2211 = vmatprep.mubr.f32.mxu0 0.0
    %2212 = vmatmul.mubr.f32.gmra.mrb[0].mxu0 %v2042
    %v2213 = vpop.f32.mrb[0].mxu0
    %v2214 = vadd.f32 %v2144, %v2213
    %v2215 = vpop.f32.mrb[0].mxu0
    %2216 = vdwg.mxu0
    %v2217 = vld [vmem:[#allocation4 + $0x2] sm:$0xff]
    %s2218 = scalar_lea.vmem [#allocation6], 256
    %v2219 = vld [vmem:[%s2218] sm:$0xff]
    %v2220 = vld [vmem:[%s2218 + $0x8] sm:$0xff]
    %v2221 = vld [vmem:[%s2218 + $0x10] sm:$0xff]
    %v2222 = vld [vmem:[%s2218 + $0x18] sm:$0xff]
    %v2223 = vld [vmem:[%s2218 + $0x20] sm:$0xff]
    %v2224 = vld [vmem:[%s2218 + $0x28] sm:$0xff]
    %v2225 = vld [vmem:[%s2218 + $0x30] sm:$0xff]
    %v2226 = vld [vmem:[%s2218 + $0x38] sm:$0xff]
    %v2227 = vld [vmem:[%s2218 + $0x40] sm:$0xff]
    %v2228 = vld [vmem:[%s2218 + $0x48] sm:$0xff]
    %v2229 = vld [vmem:[%s2218 + $0x50] sm:$0xff]
    %v2230 = vld [vmem:[%s2218 + $0x58] sm:$0xff]
    %v2231 = vld [vmem:[%s2218 + $0x60] sm:$0xff]
    %v2232 = vld [vmem:[%s2218 + $0x68] sm:$0xff]
    %v2233 = vld [vmem:[%s2218 + $0x70] sm:$0xff]
    %v2234 = vld [vmem:[%s2218 + $0x78] sm:$0xff]
    %2235 = vmatprep.subr.mxu0 0.0
    %2236 = vmatpush1.msra.mxu0 %v2219
    %2237 = vmatprep.subr.mxu0 0.0
    %2238 = vmatpush1.msra.mxu0 %v2220
    %2239 = vmatprep.subr.mxu0 0.0
    %2240 = vmatpush1.msra.mxu0 %v2221
    %2241 = vmatprep.subr.mxu0 0.0
    %2242 = vmatpush1.msra.mxu0 %v2222
    %2243 = vmatprep.subr.mxu0 0.0
    %2244 = vmatpush1.msra.mxu0 %v2223
    %2245 = vmatprep.subr.mxu0 0.0
    %2246 = vmatpush1.msra.mxu0 %v2224
    %2247 = vmatprep.subr.mxu0 0.0
    %2248 = vmatpush1.msra.mxu0 %v2225
    %2249 = vmatprep.subr.mxu0 0.0
    %2250 = vmatpush1.msra.mxu0 %v2226
    %2251 = vmatprep.subr.mxu0 0.0
    %2252 = vmatpush1.msra.mxu0 %v2227
    %2253 = vmatprep.subr.mxu0 0.0
    %2254 = vmatpush1.msra.mxu0 %v2228
    %2255 = vmatprep.subr.mxu0 0.0
    %2256 = vmatpush1.msra.mxu0 %v2229
    %2257 = vmatprep.subr.mxu0 0.0
    %2258 = vmatpush1.msra.mxu0 %v2230
    %2259 = vmatprep.subr.mxu0 0.0
    %2260 = vmatpush1.msra.mxu0 %v2231
    %2261 = vmatprep.subr.mxu0 0.0
    %2262 = vmatpush1.msra.mxu0 %v2232
    %2263 = vmatprep.subr.mxu0 0.0
    %2264 = vmatpush1.msra.mxu0 %v2233
    %2265 = vmatprep.subr.mxu0 0.0
    %2266 = vmatpush1.msra.mxu0 %v2234
    %2267 = vmatprep.subr.mxu0 0.0
    %2268 = vmatpush1.msra.mxu0 0.0
    %2269 = vmatprep.subr.mxu0 0.0
    %2270 = vmatpush1.msra.mxu0 0.0
    %2271 = vmatprep.subr.mxu0 0.0
    %2272 = vmatpush1.msra.mxu0 0.0
    %2273 = vmatprep.subr.mxu0 0.0
    %2274 = vmatpush1.msra.mxu0 0.0
    %2275 = vmatprep.subr.mxu0 0.0
    %2276 = vmatpush1.msra.mxu0 0.0
    %2277 = vmatprep.subr.mxu0 0.0
    %2278 = vmatpush1.msra.mxu0 0.0
    %2279 = vmatprep.subr.mxu0 0.0
    %2280 = vmatpush1.msra.mxu0 0.0
    %2281 = vmatprep.subr.mxu0 0.0
    %2282 = vmatpush1.msra.mxu0 0.0
    %2283 = vmatprep.subr.mxu0 0.0
    %2284 = vmatpush1.msra.mxu0 0.0
    %2285 = vmatprep.subr.mxu0 0.0
    %2286 = vmatpush1.msra.mxu0 0.0
    %2287 = vmatprep.subr.mxu0 0.0
    %2288 = vmatpush1.msra.mxu0 0.0
    %2289 = vmatprep.subr.mxu0 0.0
    %2290 = vmatpush1.msra.mxu0 0.0
    %2291 = vmatprep.subr.mxu0 0.0
    %2292 = vmatpush1.msra.mxu0 0.0
    %2293 = vmatprep.subr.mxu0 0.0
    %2294 = vmatpush1.msra.mxu0 0.0
    %2295 = vmatprep.subr.mxu0 0.0
    %2296 = vmatpush1.msra.mxu0 0.0
    %2297 = vmatprep.subr.mxu0 0.0
    %2298 = vmatpush1.msra.mxu0 0.0
    %2299 = vmatprep.mubr.f32.mxu0 0.0
    %2300 = vmatmul.mubr.f32.gmra.mrb[0].mxu0 %v2217
    %v2301 = vpop.f32.mrb[0].mxu0
    %v2302 = vadd.f32 0.0, %v2301
    %v2303 = vpop.f32.mrb[0].mxu0
    %2304 = vdwg.mxu0
    %v2305 = vadd.f32 %v2214, %v2302
    %v2306 = vld [vmem:[#allocation4 + $0xe] sm:$0xff]
    %s2307 = scalar_lea.vmem [#allocation6], 384
    %v2308 = vld [vmem:[%s2307] sm:$0xff]
    %v2309 = vld [vmem:[%s2307 + $0x8] sm:$0xff]
    %v2310 = vld [vmem:[%s2307 + $0x10] sm:$0xff]
    %v2311 = vld [vmem:[%s2307 + $0x18] sm:$0xff]
    %v2312 = vld [vmem:[%s2307 + $0x20] sm:$0xff]
    %v2313 = vld [vmem:[%s2307 + $0x28] sm:$0xff]
    %v2314 = vld [vmem:[%s2307 + $0x30] sm:$0xff]
    %v2315 = vld [vmem:[%s2307 + $0x38] sm:$0xff]
    %v2316 = vld [vmem:[%s2307 + $0x40] sm:$0xff]
    %v2317 = vld [vmem:[%s2307 + $0x48] sm:$0xff]
    %v2318 = vld [vmem:[%s2307 + $0x50] sm:$0xff]
    %v2319 = vld [vmem:[%s2307 + $0x58] sm:$0xff]
    %v2320 = vld [vmem:[%s2307 + $0x60] sm:$0xff]
    %v2321 = vld [vmem:[%s2307 + $0x68] sm:$0xff]
    %v2322 = vld [vmem:[%s2307 + $0x70] sm:$0xff]
    %v2323 = vld [vmem:[%s2307 + $0x78] sm:$0xff]
    %2324 = vmatprep.subr.mxu0 0.0
    %2325 = vmatpush1.msra.mxu0 %v2308
    %2326 = vmatprep.subr.mxu0 0.0
    %2327 = vmatpush1.msra.mxu0 %v2309
    %2328 = vmatprep.subr.mxu0 0.0
    %2329 = vmatpush1.msra.mxu0 %v2310
    %2330 = vmatprep.subr.mxu0 0.0
    %2331 = vmatpush1.msra.mxu0 %v2311
    %2332 = vmatprep.subr.mxu0 0.0
    %2333 = vmatpush1.msra.mxu0 %v2312
    %2334 = vmatprep.subr.mxu0 0.0
    %2335 = vmatpush1.msra.mxu0 %v2313
    %2336 = vmatprep.subr.mxu0 0.0
    %2337 = vmatpush1.msra.mxu0 %v2314
    %2338 = vmatprep.subr.mxu0 0.0
    %2339 = vmatpush1.msra.mxu0 %v2315
    %2340 = vmatprep.subr.mxu0 0.0
    %2341 = vmatpush1.msra.mxu0 %v2316
    %2342 = vmatprep.subr.mxu0 0.0
    %2343 = vmatpush1.msra.mxu0 %v2317
    %2344 = vmatprep.subr.mxu0 0.0
    %2345 = vmatpush1.msra.mxu0 %v2318
    %2346 = vmatprep.subr.mxu0 0.0
    %2347 = vmatpush1.msra.mxu0 %v2319
    %2348 = vmatprep.subr.mxu0 0.0
    %2349 = vmatpush1.msra.mxu0 %v2320
    %2350 = vmatprep.subr.mxu0 0.0
    %2351 = vmatpush1.msra.mxu0 %v2321
    %2352 = vmatprep.subr.mxu0 0.0
    %2353 = vmatpush1.msra.mxu0 %v2322
    %2354 = vmatprep.subr.mxu0 0.0
    %2355 = vmatpush1.msra.mxu0 %v2323
    %2356 = vmatprep.subr.mxu0 0.0
    %2357 = vmatpush1.msra.mxu0 0.0
    %2358 = vmatprep.subr.mxu0 0.0
    %2359 = vmatpush1.msra.mxu0 0.0
    %2360 = vmatprep.subr.mxu0 0.0
    %2361 = vmatpush1.msra.mxu0 0.0
    %2362 = vmatprep.subr.mxu0 0.0
    %2363 = vmatpush1.msra.mxu0 0.0
    %2364 = vmatprep.subr.mxu0 0.0
    %2365 = vmatpush1.msra.mxu0 0.0
    %2366 = vmatprep.subr.mxu0 0.0
    %2367 = vmatpush1.msra.mxu0 0.0
    %2368 = vmatprep.subr.mxu0 0.0
    %2369 = vmatpush1.msra.mxu0 0.0
    %2370 = vmatprep.subr.mxu0 0.0
    %2371 = vmatpush1.msra.mxu0 0.0
    %2372 = vmatprep.subr.mxu0 0.0
    %2373 = vmatpush1.msra.mxu0 0.0
    %2374 = vmatprep.subr.mxu0 0.0
    %2375 = vmatpush1.msra.mxu0 0.0
    %2376 = vmatprep.subr.mxu0 0.0
    %2377 = vmatpush1.msra.mxu0 0.0
    %2378 = vmatprep.subr.mxu0 0.0
    %2379 = vmatpush1.msra.mxu0 0.0
    %2380 = vmatprep.subr.mxu0 0.0
    %2381 = vmatpush1.msra.mxu0 0.0
    %2382 = vmatprep.subr.mxu0 0.0
    %2383 = vmatpush1.msra.mxu0 0.0
    %2384 = vmatprep.subr.mxu0 0.0
    %2385 = vmatpush1.msra.mxu0 0.0
    %2386 = vmatprep.subr.mxu0 0.0
    %2387 = vmatpush1.msra.mxu0 0.0
    %2388 = vmatprep.mubr.f32.mxu0 0.0
    %2389 = vmatmul.mubr.f32.gmra.mrb[0].mxu0 %v2306
    %v2390 = vpop.f32.mrb[0].mxu0
    %v2391 = vadd.f32 0.0, %v2390
    %v2392 = vpop.f32.mrb[0].mxu0
    %2393 = vdwg.mxu0
    %v2394 = vadd.f32 %v2305, %v2391
    %v2395 = vld [vmem:[#allocation4 + $0x4] sm:$0xff]
    %s2396 = scalar_lea.vmem [#allocation6], 512
    %v2397 = vld [vmem:[%s2396] sm:$0xff]
    %v2398 = vld [vmem:[%s2396 + $0x8] sm:$0xff]
    %v2399 = vld [vmem:[%s2396 + $0x10] sm:$0xff]
    %v2400 = vld [vmem:[%s2396 + $0x18] sm:$0xff]
    %v2401 = vld [vmem:[%s2396 + $0x20] sm:$0xff]
    %v2402 = vld [vmem:[%s2396 + $0x28] sm:$0xff]
    %v2403 = vld [vmem:[%s2396 + $0x30] sm:$0xff]
    %v2404 = vld [vmem:[%s2396 + $0x38] sm:$0xff]
    %v2405 = vld [vmem:[%s2396 + $0x40] sm:$0xff]
    %v2406 = vld [vmem:[%s2396 + $0x48] sm:$0xff]
    %v2407 = vld [vmem:[%s2396 + $0x50] sm:$0xff]
    %v2408 = vld [vmem:[%s2396 + $0x58] sm:$0xff]
    %v2409 = vld [vmem:[%s2396 + $0x60] sm:$0xff]
    %v2410 = vld [vmem:[%s2396 + $0x68] sm:$0xff]
    %v2411 = vld [vmem:[%s2396 + $0x70] sm:$0xff]
    %v2412 = vld [vmem:[%s2396 + $0x78] sm:$0xff]
    %2413 = vmatprep.subr.mxu0 0.0
    %2414 = vmatpush1.msra.mxu0 %v2397
    %2415 = vmatprep.subr.mxu0 0.0
    %2416 = vmatpush1.msra.mxu0 %v2398
    %2417 = vmatprep.subr.mxu0 0.0
    %2418 = vmatpush1.msra.mxu0 %v2399
    %2419 = vmatprep.subr.mxu0 0.0
    %2420 = vmatpush1.msra.mxu0 %v2400
    %2421 = vmatprep.subr.mxu0 0.0
    %2422 = vmatpush1.msra.mxu0 %v2401
    %2423 = vmatprep.subr.mxu0 0.0
    %2424 = vmatpush1.msra.mxu0 %v2402
    %2425 = vmatprep.subr.mxu0 0.0
    %2426 = vmatpush1.msra.mxu0 %v2403
    %2427 = vmatprep.subr.mxu0 0.0
    %2428 = vmatpush1.msra.mxu0 %v2404
    %2429 = vmatprep.subr.mxu0 0.0
    %2430 = vmatpush1.msra.mxu0 %v2405
    %2431 = vmatprep.subr.mxu0 0.0
    %2432 = vmatpush1.msra.mxu0 %v2406
    %2433 = vmatprep.subr.mxu0 0.0
    %2434 = vmatpush1.msra.mxu0 %v2407
    %2435 = vmatprep.subr.mxu0 0.0
    %2436 = vmatpush1.msra.mxu0 %v2408
    %2437 = vmatprep.subr.mxu0 0.0
    %2438 = vmatpush1.msra.mxu0 %v2409
    %2439 = vmatprep.subr.mxu0 0.0
    %2440 = vmatpush1.msra.mxu0 %v2410
    %2441 = vmatprep.subr.mxu0 0.0
    %2442 = vmatpush1.msra.mxu0 %v2411
    %2443 = vmatprep.subr.mxu0 0.0
    %2444 = vmatpush1.msra.mxu0 %v2412
    %2445 = vmatprep.subr.mxu0 0.0
    %2446 = vmatpush1.msra.mxu0 0.0
    %2447 = vmatprep.subr.mxu0 0.0
    %2448 = vmatpush1.msra.mxu0 0.0
    %2449 = vmatprep.subr.mxu0 0.0
    %2450 = vmatpush1.msra.mxu0 0.0
    %2451 = vmatprep.subr.mxu0 0.0
    %2452 = vmatpush1.msra.mxu0 0.0
    %2453 = vmatprep.subr.mxu0 0.0
    %2454 = vmatpush1.msra.mxu0 0.0
    %2455 = vmatprep.subr.mxu0 0.0
    %2456 = vmatpush1.msra.mxu0 0.0
    %2457 = vmatprep.subr.mxu0 0.0
    %2458 = vmatpush1.msra.mxu0 0.0
    %2459 = vmatprep.subr.mxu0 0.0
    %2460 = vmatpush1.msra.mxu0 0.0
    %2461 = vmatprep.subr.mxu0 0.0
    %2462 = vmatpush1.msra.mxu0 0.0
    %2463 = vmatprep.subr.mxu0 0.0
    %2464 = vmatpush1.msra.mxu0 0.0
    %2465 = vmatprep.subr.mxu0 0.0
    %2466 = vmatpush1.msra.mxu0 0.0
    %2467 = vmatprep.subr.mxu0 0.0
    %2468 = vmatpush1.msra.mxu0 0.0
    %2469 = vmatprep.subr.mxu0 0.0
    %2470 = vmatpush1.msra.mxu0 0.0
    %2471 = vmatprep.subr.mxu0 0.0
    %2472 = vmatpush1.msra.mxu0 0.0
    %2473 = vmatprep.subr.mxu0 0.0
    %2474 = vmatpush1.msra.mxu0 0.0
    %2475 = vmatprep.subr.mxu0 0.0
    %2476 = vmatpush1.msra.mxu0 0.0
    %2477 = vmatprep.mubr.f32.mxu0 0.0
    %2478 = vmatmul.mubr.f32.gmra.mrb[0].mxu0 %v2395
    %v2479 = vpop.f32.mrb[0].mxu0
    %v2480 = vadd.f32 0.0, %v2479
    %v2481 = vpop.f32.mrb[0].mxu0
    %2482 = vdwg.mxu0
    %v2483 = vadd.f32 %v2394, %v2480
    %v2484 = vld [vmem:[%s10] sm:$0x7]
    %v2485 = vlaneseq
    %v2486 = vshrl.u32 %v2485, 7
    %v2487 = vsub.s32 0, %v2486
    %v2488 = vrot.slane %v2484, %v2487
    %v2489 = vadd.f32 %v2483, %v2488
    %vm2490 = vcmp.ge.f32.partialorder %v2489, 0.0
    %v2491 = vmul.f32 %v2489, 0.01
    %v2492 = vsel %vm2490, %v2489, %v2491
    %2493 = vst [vmem:[#allocation5 + $0x2] sm:$0x3] %v2492
    %2494 = vst [vmem:[#allocation5 + $0x8] sm:$0xc] %v2492
    %2495 = vst [vmem:[#allocation5] sm:$0x30] %v2492
    %2496 = vst [vmem:[#allocation5 + $0x6] sm:$0xc0] %v2492
    %v2497 = vld [vmem:[#allocation5 + $0x2] sm:$0xf]
    %v2498 = vld [vmem:[#allocation5 + $0xa] sm:$0xf]
    %v2499 = vld [vmem:[%s10] sm:$0x7]
    %vm2500 = vcmask 1043456
    %v2501 = vsel %vm2500, %v2497, 0.0
    %v2502 = vrot.slane %v2501, 4
    %v2503 = vadd.f32 %v2501, %v2502
    %v2504 = vrot.slane %v2503, 2
    %v2505 = vadd.f32 %v2503, %v2504
    %v2506 = vrot.slane %v2505, 1
    %v2507 = vadd.f32 %v2505, %v2506
    %v2508 = vsel %vm2500, %v2498, 0.0
    %v2509 = vrot.slane %v2508, 4
    %v2510 = vadd.f32 %v2508, %v2509
    %v2511 = vrot.slane %v2510, 2
    %v2512 = vadd.f32 %v2510, %v2511
    %v2513 = vrot.slane %v2512, 1
    %v2514 = vadd.f32 %v2512, %v2513
    %v2515 = vadd.f32 %v2507, %v2514
    %v2516 = vld [vmem:[%s11] sm:$0xff]
    %v2517 = vld [vmem:[%s11 + $0x8] sm:$0xff]
    %v2518 = vld [vmem:[%s11 + $0x10] sm:$0xff]
    %v2519 = vld [vmem:[%s11 + $0x18] sm:$0xff]
    %v2520 = vld [vmem:[%s11 + $0x20] sm:$0xff]
    %v2521 = vld [vmem:[%s11 + $0x28] sm:$0xff]
    %v2522 = vld [vmem:[%s11 + $0x30] sm:$0xff]
    %v2523 = vld [vmem:[%s11 + $0x38] sm:$0xff]
    %v2524 = vld [vmem:[%s11 + $0x40] sm:$0xff]
    %v2525 = vld [vmem:[%s11 + $0x48] sm:$0xff]
    %v2526 = vld [vmem:[%s11 + $0x50] sm:$0xff]
    %v2527 = vld [vmem:[%s11 + $0x58] sm:$0xff]
    %v2528 = vld [vmem:[%s11 + $0x60] sm:$0xff]
    %v2529 = vld [vmem:[%s11 + $0x68] sm:$0xff]
    %v2530 = vld [vmem:[%s11 + $0x70] sm:$0xff]
    %v2531 = vld [vmem:[%s11 + $0x78] sm:$0xff]
    %2532 = vmatprep.subr.mxu0 0.0
    %2533 = vmatpush1.msra.mxu0 %v2516
    %2534 = vmatprep.subr.mxu0 0.0
    %2535 = vmatpush1.msra.mxu0 %v2517
    %2536 = vmatprep.subr.mxu0 0.0
    %2537 = vmatpush1.msra.mxu0 %v2518
    %2538 = vmatprep.subr.mxu0 0.0
    %2539 = vmatpush1.msra.mxu0 %v2519
    %2540 = vmatprep.subr.mxu0 0.0
    %2541 = vmatpush1.msra.mxu0 %v2520
    %2542 = vmatprep.subr.mxu0 0.0
    %2543 = vmatpush1.msra.mxu0 %v2521
    %2544 = vmatprep.subr.mxu0 0.0
    %2545 = vmatpush1.msra.mxu0 %v2522
    %2546 = vmatprep.subr.mxu0 0.0
    %2547 = vmatpush1.msra.mxu0 %v2523
    %2548 = vmatprep.subr.mxu0 0.0
    %2549 = vmatpush1.msra.mxu0 %v2524
    %2550 = vmatprep.subr.mxu0 0.0
    %2551 = vmatpush1.msra.mxu0 %v2525
    %2552 = vmatprep.subr.mxu0 0.0
    %2553 = vmatpush1.msra.mxu0 %v2526
    %2554 = vmatprep.subr.mxu0 0.0
    %2555 = vmatpush1.msra.mxu0 %v2527
    %2556 = vmatprep.subr.mxu0 0.0
    %2557 = vmatpush1.msra.mxu0 %v2528
    %2558 = vmatprep.subr.mxu0 0.0
    %2559 = vmatpush1.msra.mxu0 %v2529
    %2560 = vmatprep.subr.mxu0 0.0
    %2561 = vmatpush1.msra.mxu0 %v2530
    %2562 = vmatprep.subr.mxu0 0.0
    %2563 = vmatpush1.msra.mxu0 %v2531
    %2564 = vmatprep.subr.mxu0 0.0
    %2565 = vmatpush1.msra.mxu0 0.0
    %2566 = vmatprep.subr.mxu0 0.0
    %2567 = vmatpush1.msra.mxu0 0.0
    %2568 = vmatprep.subr.mxu0 0.0
    %2569 = vmatpush1.msra.mxu0 0.0
    %2570 = vmatprep.subr.mxu0 0.0
    %2571 = vmatpush1.msra.mxu0 0.0
    %2572 = vmatprep.subr.mxu0 0.0
    %2573 = vmatpush1.msra.mxu0 0.0
    %2574 = vmatprep.subr.mxu0 0.0
    %2575 = vmatpush1.msra.mxu0 0.0
    %2576 = vmatprep.subr.mxu0 0.0
    %2577 = vmatpush1.msra.mxu0 0.0
    %2578 = vmatprep.subr.mxu0 0.0
    %2579 = vmatpush1.msra.mxu0 0.0
    %2580 = vmatprep.subr.mxu0 0.0
    %2581 = vmatpush1.msra.mxu0 0.0
    %2582 = vmatprep.subr.mxu0 0.0
    %2583 = vmatpush1.msra.mxu0 0.0
    %2584 = vmatprep.subr.mxu0 0.0
    %2585 = vmatpush1.msra.mxu0 0.0
    %2586 = vmatprep.subr.mxu0 0.0
    %2587 = vmatpush1.msra.mxu0 0.0
    %2588 = vmatprep.subr.mxu0 0.0
    %2589 = vmatpush1.msra.mxu0 0.0
    %2590 = vmatprep.subr.mxu0 0.0
    %2591 = vmatpush1.msra.mxu0 0.0
    %2592 = vmatprep.subr.mxu0 0.0
    %2593 = vmatpush1.msra.mxu0 0.0
    %2594 = vmatprep.subr.mxu0 0.0
    %2595 = vmatpush1.msra.mxu0 0.0
    %2596 = vmatprep.mubr.f32.mxu0 0.0
    %2597 = vmatmul.mubr.f32.gmra.mrb[0].mxu0 %v2515
    %v2598 = vpop.f32.mrb[0].mxu0
    %v2599 = vadd.f32 0.0, %v2598
    %v2600 = vpop.f32.mrb[0].mxu0
    %2601 = vdwg.mxu0
    %v2602 = vmul.f32 %v2599, 0.03125
    %v2603 = vld [vmem:[%s12] sm:$0xff]
    %v2604 = vld [vmem:[%s12 + $0x8] sm:$0xff]
    %v2605 = vld [vmem:[%s12 + $0x10] sm:$0xff]
    %v2606 = vld [vmem:[%s12 + $0x18] sm:$0xff]
    %vm2607 = vcmask 261120
    %v2609 = vsel %vm2607, %v2602, 0
    %2611 = vmatprep.subr.mxu0 0.0
    %2612 = vmatpush1.msra.mxu0 %v2603
    %2613 = vmatprep.subr.mxu0 0.0
    %2614 = vmatpush1.msra.mxu0 %v2604
    %2615 = vmatprep.subr.mxu0 0.0
    %2616 = vmatpush1.msra.mxu0 %v2605
    %2617 = vmatprep.subr.mxu0 0.0
    %2618 = vmatpush1.msra.mxu0 %v2606
    %2619 = vmatprep.subr.mxu0 0.0
    %2620 = vmatpush1.msra.mxu0 0.0
    %2621 = vmatprep.subr.mxu0 0.0
    %2622 = vmatpush1.msra.mxu0 0.0
    %2623 = vmatprep.subr.mxu0 0.0
    %2624 = vmatpush1.msra.mxu0 0.0
    %2625 = vmatprep.subr.mxu0 0.0
    %2626 = vmatpush1.msra.mxu0 0.0
    %2627 = vmatprep.subr.mxu0 0.0
    %2628 = vmatpush1.msra.mxu0 0.0
    %2629 = vmatprep.subr.mxu0 0.0
    %2630 = vmatpush1.msra.mxu0 0.0
    %2631 = vmatprep.subr.mxu0 0.0
    %2632 = vmatpush1.msra.mxu0 0.0
    %2633 = vmatprep.subr.mxu0 0.0
    %2634 = vmatpush1.msra.mxu0 0.0
    %2635 = vmatprep.subr.mxu0 0.0
    %2636 = vmatpush1.msra.mxu0 0.0
    %2637 = vmatprep.subr.mxu0 0.0
    %2638 = vmatpush1.msra.mxu0 0.0
    %2639 = vmatprep.subr.mxu0 0.0
    %2640 = vmatpush1.msra.mxu0 0.0
    %2641 = vmatprep.subr.mxu0 0.0
    %2642 = vmatpush1.msra.mxu0 0.0
    %2643 = vmatprep.subr.mxu0 0.0
    %2644 = vmatpush1.msra.mxu0 0.0
    %2645 = vmatprep.subr.mxu0 0.0
    %2646 = vmatpush1.msra.mxu0 0.0
    %2647 = vmatprep.subr.mxu0 0.0
    %2648 = vmatpush1.msra.mxu0 0.0
    %2649 = vmatprep.subr.mxu0 0.0
    %2650 = vmatpush1.msra.mxu0 0.0
    %2651 = vmatprep.subr.mxu0 0.0
    %2652 = vmatpush1.msra.mxu0 0.0
    %2653 = vmatprep.subr.mxu0 0.0
    %2654 = vmatpush1.msra.mxu0 0.0
    %2655 = vmatprep.subr.mxu0 0.0
    %2656 = vmatpush1.msra.mxu0 0.0
    %2657 = vmatprep.subr.mxu0 0.0
    %2658 = vmatpush1.msra.mxu0 0.0
    %2659 = vmatprep.subr.mxu0 0.0
    %2660 = vmatpush1.msra.mxu0 0.0
    %2661 = vmatprep.subr.mxu0 0.0
    %2662 = vmatpush1.msra.mxu0 0.0
    %2663 = vmatprep.subr.mxu0 0.0
    %2664 = vmatpush1.msra.mxu0 0.0
    %2665 = vmatprep.subr.mxu0 0.0
    %2666 = vmatpush1.msra.mxu0 0.0
    %2667 = vmatprep.subr.mxu0 0.0
    %2668 = vmatpush1.msra.mxu0 0.0
    %2669 = vmatprep.subr.mxu0 0.0
    %2670 = vmatpush1.msra.mxu0 0.0
    %2671 = vmatprep.subr.mxu0 0.0
    %2672 = vmatpush1.msra.mxu0 0.0
    %2673 = vmatprep.subr.mxu0 0.0
    %2674 = vmatpush1.msra.mxu0 0.0
    %2675 = vmatprep.mubr.f32.mxu0 0.0
    %2676 = vmatmul.mubr.f32.gmra.mrb[0].mxu0 %v2609
    %v2677 = vpop.f32.mrb[0].mxu0
    %v2678 = vadd.f32 0.0, %v2677
    %v2679 = vpop.f32.mrb[0].mxu0
    %2680 = vdwg.mxu0
    %v2681 = vlaneseq
    %v2682 = vshrl.u32 %v2681, 7
    %v2683 = vsub.s32 0, %v2682
    %v2684 = vrot.slane %v2678, %v2683
    %v2685 = vsub.f32 %v2497, %v2684
    %v2686 = vsub.f32 %v2498, %v2684
    %v2687 = vmul.f32 %v2685, %v2685
    %v2688 = vsel %vm2500, %v2687, 0.0
    %v2689 = vrot.slane %v2688, 4
    %v2690 = vadd.f32 %v2688, %v2689
    %v2691 = vrot.slane %v2690, 2
    %v2692 = vadd.f32 %v2690, %v2691
    %v2693 = vrot.slane %v2692, 1
    %v2694 = vadd.f32 %v2692, %v2693
    %v2695 = vmul.f32 %v2686, %v2686
    %v2696 = vsel %vm2500, %v2695, 0.0
    %v2697 = vrot.slane %v2696, 4
    %v2698 = vadd.f32 %v2696, %v2697
    %v2699 = vrot.slane %v2698, 2
    %v2700 = vadd.f32 %v2698, %v2699
    %v2701 = vrot.slane %v2700, 1
    %v2702 = vadd.f32 %v2700, %v2701
    %v2703 = vadd.f32 %v2694, %v2702
    %2704 = vmatprep.subr.mxu0 0.0
    %2705 = vmatpush1.msra.mxu0 %v2516
    %2706 = vmatprep.subr.mxu0 0.0
    %2707 = vmatpush1.msra.mxu0 %v2517
    %2708 = vmatprep.subr.mxu0 0.0
    %2709 = vmatpush1.msra.mxu0 %v2518
    %2710 = vmatprep.subr.mxu0 0.0
    %2711 = vmatpush1.msra.mxu0 %v2519
    %2712 = vmatprep.subr.mxu0 0.0
    %2713 = vmatpush1.msra.mxu0 %v2520
    %2714 = vmatprep.subr.mxu0 0.0
    %2715 = vmatpush1.msra.mxu0 %v2521
    %2716 = vmatprep.subr.mxu0 0.0
    %2717 = vmatpush1.msra.mxu0 %v2522
    %2718 = vmatprep.subr.mxu0 0.0
    %2719 = vmatpush1.msra.mxu0 %v2523
    %2720 = vmatprep.subr.mxu0 0.0
    %2721 = vmatpush1.msra.mxu0 %v2524
    %2722 = vmatprep.subr.mxu0 0.0
    %2723 = vmatpush1.msra.mxu0 %v2525
    %2724 = vmatprep.subr.mxu0 0.0
    %2725 = vmatpush1.msra.mxu0 %v2526
    %2726 = vmatprep.subr.mxu0 0.0
    %2727 = vmatpush1.msra.mxu0 %v2527
    %2728 = vmatprep.subr.mxu0 0.0
    %2729 = vmatpush1.msra.mxu0 %v2528
    %2730 = vmatprep.subr.mxu0 0.0
    %2731 = vmatpush1.msra.mxu0 %v2529
    %2732 = vmatprep.subr.mxu0 0.0
    %2733 = vmatpush1.msra.mxu0 %v2530
    %2734 = vmatprep.subr.mxu0 0.0
    %2735 = vmatpush1.msra.mxu0 %v2531
    %2736 = vmatprep.subr.mxu0 0.0
    %2737 = vmatpush1.msra.mxu0 0.0
    %2738 = vmatprep.subr.mxu0 0.0
    %2739 = vmatpush1.msra.mxu0 0.0
    %2740 = vmatprep.subr.mxu0 0.0
    %2741 = vmatpush1.msra.mxu0 0.0
    %2742 = vmatprep.subr.mxu0 0.0
    %2743 = vmatpush1.msra.mxu0 0.0
    %2744 = vmatprep.subr.mxu0 0.0
    %2745 = vmatpush1.msra.mxu0 0.0
    %2746 = vmatprep.subr.mxu0 0.0
    %2747 = vmatpush1.msra.mxu0 0.0
    %2748 = vmatprep.subr.mxu0 0.0
    %2749 = vmatpush1.msra.mxu0 0.0
    %2750 = vmatprep.subr.mxu0 0.0
    %2751 = vmatpush1.msra.mxu0 0.0
    %2752 = vmatprep.subr.mxu0 0.0
    %2753 = vmatpush1.msra.mxu0 0.0
    %2754 = vmatprep.subr.mxu0 0.0
    %2755 = vmatpush1.msra.mxu0 0.0
    %2756 = vmatprep.subr.mxu0 0.0
    %2757 = vmatpush1.msra.mxu0 0.0
    %2758 = vmatprep.subr.mxu0 0.0
    %2759 = vmatpush1.msra.mxu0 0.0
    %2760 = vmatprep.subr.mxu0 0.0
    %2761 = vmatpush1.msra.mxu0 0.0
    %2762 = vmatprep.subr.mxu0 0.0
    %2763 = vmatpush1.msra.mxu0 0.0
    %2764 = vmatprep.subr.mxu0 0.0
    %2765 = vmatpush1.msra.mxu0 0.0
    %2766 = vmatprep.subr.mxu0 0.0
    %2767 = vmatpush1.msra.mxu0 0.0
    %2768 = vmatprep.mubr.f32.mxu0 0.0
    %2769 = vmatmul.mubr.f32.gmra.mrb[0].mxu0 %v2703
    %v2770 = vpop.f32.mrb[0].mxu0
    %v2771 = vadd.f32 0.0, %v2770
    %v2772 = vpop.f32.mrb[0].mxu0
    %2773 = vdwg.mxu0
    %v2774 = vmul.f32 %v2771, 0.03125
    %v2775 = vadd.f32 %v2774, 1e-05
    %v2776 = vrsqrt.pop %v2775
    %v2778 = vsel %vm2607, %v2776, 0
    %2780 = vmatprep.subr.mxu0 0.0
    %2781 = vmatpush1.msra.mxu0 %v2603
    %2782 = vmatprep.subr.mxu0 0.0
    %2783 = vmatpush1.msra.mxu0 %v2604
    %2784 = vmatprep.subr.mxu0 0.0
    %2785 = vmatpush1.msra.mxu0 %v2605
    %2786 = vmatprep.subr.mxu0 0.0
    %2787 = vmatpush1.msra.mxu0 %v2606
    %2788 = vmatprep.subr.mxu0 0.0
    %2789 = vmatpush1.msra.mxu0 0.0
    %2790 = vmatprep.subr.mxu0 0.0
    %2791 = vmatpush1.msra.mxu0 0.0
    %2792 = vmatprep.subr.mxu0 0.0
    %2793 = vmatpush1.msra.mxu0 0.0
    %2794 = vmatprep.subr.mxu0 0.0
    %2795 = vmatpush1.msra.mxu0 0.0
    %2796 = vmatprep.subr.mxu0 0.0
    %2797 = vmatpush1.msra.mxu0 0.0
    %2798 = vmatprep.subr.mxu0 0.0
    %2799 = vmatpush1.msra.mxu0 0.0
    %2800 = vmatprep.subr.mxu0 0.0
    %2801 = vmatpush1.msra.mxu0 0.0
    %2802 = vmatprep.subr.mxu0 0.0
    %2803 = vmatpush1.msra.mxu0 0.0
    %2804 = vmatprep.subr.mxu0 0.0
    %2805 = vmatpush1.msra.mxu0 0.0
    %2806 = vmatprep.subr.mxu0 0.0
    %2807 = vmatpush1.msra.mxu0 0.0
    %2808 = vmatprep.subr.mxu0 0.0
    %2809 = vmatpush1.msra.mxu0 0.0
    %2810 = vmatprep.subr.mxu0 0.0
    %2811 = vmatpush1.msra.mxu0 0.0
    %2812 = vmatprep.subr.mxu0 0.0
    %2813 = vmatpush1.msra.mxu0 0.0
    %2814 = vmatprep.subr.mxu0 0.0
    %2815 = vmatpush1.msra.mxu0 0.0
    %2816 = vmatprep.subr.mxu0 0.0
    %2817 = vmatpush1.msra.mxu0 0.0
    %2818 = vmatprep.subr.mxu0 0.0
    %2819 = vmatpush1.msra.mxu0 0.0
    %2820 = vmatprep.subr.mxu0 0.0
    %2821 = vmatpush1.msra.mxu0 0.0
    %2822 = vmatprep.subr.mxu0 0.0
    %2823 = vmatpush1.msra.mxu0 0.0
    %2824 = vmatprep.subr.mxu0 0.0
    %2825 = vmatpush1.msra.mxu0 0.0
    %2826 = vmatprep.subr.mxu0 0.0
    %2827 = vmatpush1.msra.mxu0 0.0
    %2828 = vmatprep.subr.mxu0 0.0
    %2829 = vmatpush1.msra.mxu0 0.0
    %2830 = vmatprep.subr.mxu0 0.0
    %2831 = vmatpush1.msra.mxu0 0.0
    %2832 = vmatprep.subr.mxu0 0.0
    %2833 = vmatpush1.msra.mxu0 0.0
    %2834 = vmatprep.subr.mxu0 0.0
    %2835 = vmatpush1.msra.mxu0 0.0
    %2836 = vmatprep.subr.mxu0 0.0
    %2837 = vmatpush1.msra.mxu0 0.0
    %2838 = vmatprep.subr.mxu0 0.0
    %2839 = vmatpush1.msra.mxu0 0.0
    %2840 = vmatprep.subr.mxu0 0.0
    %2841 = vmatpush1.msra.mxu0 0.0
    %2842 = vmatprep.subr.mxu0 0.0
    %2843 = vmatpush1.msra.mxu0 0.0
    %2844 = vmatprep.mubr.f32.mxu0 0.0
    %2845 = vmatmul.mubr.f32.gmra.mrb[0].mxu0 %v2778
    %v2846 = vpop.f32.mrb[0].mxu0
    %v2847 = vadd.f32 0.0, %v2846
    %v2848 = vpop.f32.mrb[0].mxu0
    %2849 = vdwg.mxu0
    %v2851 = vrot.slane %v2499, 1
    %v2853 = vmul.f32 %v2847, %v2851
    %v2854 = vlaneseq
    %v2855 = vshrl.u32 %v2854, 7
    %v2856 = vsub.s32 0, %v2855
    %v2857 = vrot.slane %v2853, %v2856
    %v2858 = vmul.f32 %v2685, %v2857
    %v2859 = vlaneseq
    %v2860 = vshrl.u32 %v2859, 7
    %v2861 = vsub.s32 2, %v2860
    %v2862 = vrot.slane %v2499, %v2861
    %v2863 = vadd.f32 %v2858, %v2862
    %v2864 = vmul.f32 %v2686, %v2857
    %v2865 = vadd.f32 %v2864, %v2862
    %2866 = vst [vmem:[#allocation5 + $0x2] sm:$0xf] %v2863
    %2867 = vst [vmem:[#allocation5 + $0xa] sm:$0xf] %v2865
    %v2868 = vld [vmem:[#allocation5] sm:$0xf]
    %v2869 = vld [vmem:[#allocation9] sm:$0xff]
    %v2870 = vld [vmem:[#allocation9 + $0x8] sm:$0xff]
    %v2871 = vld [vmem:[#allocation9 + $0x10] sm:$0xff]
    %v2872 = vld [vmem:[#allocation9 + $0x18] sm:$0xff]
    %v2873 = vld [vmem:[#allocation9 + $0x20] sm:$0xff]
    %v2874 = vld [vmem:[#allocation9 + $0x28] sm:$0xff]
    %v2875 = vld [vmem:[#allocation9 + $0x30] sm:$0xff]
    %v2876 = vld [vmem:[#allocation9 + $0x38] sm:$0xff]
    %v2877 = vld [vmem:[#allocation9 + $0x40] sm:$0xff]
    %v2878 = vld [vmem:[#allocation9 + $0x48] sm:$0xff]
    %v2879 = vld [vmem:[#allocation9 + $0x50] sm:$0xff]
    %v2880 = vld [vmem:[#allocation9 + $0x58] sm:$0xff]
    %v2881 = vld [vmem:[#allocation9 + $0x60] sm:$0xff]
    %v2882 = vld [vmem:[#allocation9 + $0x68] sm:$0xff]
    %v2883 = vld [vmem:[#allocation9 + $0x70] sm:$0xff]
    %v2884 = vld [vmem:[#allocation9 + $0x78] sm:$0xff]
    %v2885 = vld [vmem:[#allocation5 + $0x8] sm:$0xf]
    %s2886 = scalar_lea.vmem [#allocation9], 128
    %v2887 = vld [vmem:[%s2886] sm:$0xff]
    %v2888 = vld [vmem:[%s2886 + $0x8] sm:$0xff]
    %v2889 = vld [vmem:[%s2886 + $0x10] sm:$0xff]
    %v2890 = vld [vmem:[%s2886 + $0x18] sm:$0xff]
    %v2891 = vld [vmem:[%s2886 + $0x20] sm:$0xff]
    %v2892 = vld [vmem:[%s2886 + $0x28] sm:$0xff]
    %v2893 = vld [vmem:[%s2886 + $0x30] sm:$0xff]
    %v2894 = vld [vmem:[%s2886 + $0x38] sm:$0xff]
    %v2895 = vld [vmem:[%s2886 + $0x40] sm:$0xff]
    %v2896 = vld [vmem:[%s2886 + $0x48] sm:$0xff]
    %v2897 = vld [vmem:[%s2886 + $0x50] sm:$0xff]
    %v2898 = vld [vmem:[%s2886 + $0x58] sm:$0xff]
    %v2899 = vld [vmem:[%s2886 + $0x60] sm:$0xff]
    %v2900 = vld [vmem:[%s2886 + $0x68] sm:$0xff]
    %v2901 = vld [vmem:[%s2886 + $0x70] sm:$0xff]
    %v2902 = vld [vmem:[%s2886 + $0x78] sm:$0xff]
    %2903 = vmatprep.subr.mxu0 0.0
    %2904 = vmatpush1.msra.mxu0 %v2887
    %2905 = vmatprep.subr.mxu0 0.0
    %2906 = vmatpush1.msra.mxu0 %v2888
    %2907 = vmatprep.subr.mxu0 0.0
    %2908 = vmatpush1.msra.mxu0 %v2889
    %2909 = vmatprep.subr.mxu0 0.0
    %2910 = vmatpush1.msra.mxu0 %v2890
    %2911 = vmatprep.subr.mxu0 0.0
    %2912 = vmatpush1.msra.mxu0 %v2891
    %2913 = vmatprep.subr.mxu0 0.0
    %2914 = vmatpush1.msra.mxu0 %v2892
    %2915 = vmatprep.subr.mxu0 0.0
    %2916 = vmatpush1.msra.mxu0 %v2893
    %2917 = vmatprep.subr.mxu0 0.0
    %2918 = vmatpush1.msra.mxu0 %v2894
    %2919 = vmatprep.subr.mxu0 0.0
    %2920 = vmatpush1.msra.mxu0 %v2895
    %2921 = vmatprep.subr.mxu0 0.0
    %2922 = vmatpush1.msra.mxu0 %v2896
    %2923 = vmatprep.subr.mxu0 0.0
    %2924 = vmatpush1.msra.mxu0 %v2897
    %2925 = vmatprep.subr.mxu0 0.0
    %2926 = vmatpush1.msra.mxu0 %v2898
    %2927 = vmatprep.subr.mxu0 0.0
    %2928 = vmatpush1.msra.mxu0 %v2899
    %2929 = vmatprep.subr.mxu0 0.0
    %2930 = vmatpush1.msra.mxu0 %v2900
    %2931 = vmatprep.subr.mxu0 0.0
    %2932 = vmatpush1.msra.mxu0 %v2901
    %2933 = vmatprep.subr.mxu0 0.0
    %2934 = vmatpush1.msra.mxu0 %v2902
    %2935 = vmatprep.subr.mxu0 0.0
    %2936 = vmatpush1.msra.mxu0 0.0
    %2937 = vmatprep.subr.mxu0 0.0
    %2938 = vmatpush1.msra.mxu0 0.0
    %2939 = vmatprep.subr.mxu0 0.0
    %2940 = vmatpush1.msra.mxu0 0.0
    %2941 = vmatprep.subr.mxu0 0.0
    %2942 = vmatpush1.msra.mxu0 0.0
    %2943 = vmatprep.subr.mxu0 0.0
    %2944 = vmatpush1.msra.mxu0 0.0
    %2945 = vmatprep.subr.mxu0 0.0
    %2946 = vmatpush1.msra.mxu0 0.0
    %2947 = vmatprep.subr.mxu0 0.0
    %2948 = vmatpush1.msra.mxu0 0.0
    %2949 = vmatprep.subr.mxu0 0.0
    %2950 = vmatpush1.msra.mxu0 0.0
    %2951 = vmatprep.subr.mxu0 0.0
    %2952 = vmatpush1.msra.mxu0 0.0
    %2953 = vmatprep.subr.mxu0 0.0
    %2954 = vmatpush1.msra.mxu0 0.0
    %2955 = vmatprep.subr.mxu0 0.0
    %2956 = vmatpush1.msra.mxu0 0.0
    %2957 = vmatprep.subr.mxu0 0.0
    %2958 = vmatpush1.msra.mxu0 0.0
    %2959 = vmatprep.subr.mxu0 0.0
    %2960 = vmatpush1.msra.mxu0 0.0
    %2961 = vmatprep.subr.mxu0 0.0
    %2962 = vmatpush1.msra.mxu0 0.0
    %2963 = vmatprep.subr.mxu0 0.0
    %2964 = vmatpush1.msra.mxu0 0.0
    %2965 = vmatprep.subr.mxu0 0.0
    %2966 = vmatpush1.msra.mxu0 0.0
    %2967 = vmatprep.mubr.f32.mxu0 0.0
    %2968 = vmatmul.mubr.f32.gmra.mrb[0].mxu0 %v2885
    %v2969 = vpop.f32.mrb[0].mxu0
    %v2970 = vadd.f32 0.0, %v2969
    %v2971 = vpop.f32.mrb[0].mxu0
    %2972 = vdwg.mxu0
    %2973 = vmatprep.subr.mxu0 0.0
    %2974 = vmatpush1.msra.mxu0 %v2869
    %2975 = vmatprep.subr.mxu0 0.0
    %2976 = vmatpush1.msra.mxu0 %v2870
    %2977 = vmatprep.subr.mxu0 0.0
    %2978 = vmatpush1.msra.mxu0 %v2871
    %2979 = vmatprep.subr.mxu0 0.0
    %2980 = vmatpush1.msra.mxu0 %v2872
    %2981 = vmatprep.subr.mxu0 0.0
    %2982 = vmatpush1.msra.mxu0 %v2873
    %2983 = vmatprep.subr.mxu0 0.0
    %2984 = vmatpush1.msra.mxu0 %v2874
    %2985 = vmatprep.subr.mxu0 0.0
    %2986 = vmatpush1.msra.mxu0 %v2875
    %2987 = vmatprep.subr.mxu0 0.0
    %2988 = vmatpush1.msra.mxu0 %v2876
    %2989 = vmatprep.subr.mxu0 0.0
    %2990 = vmatpush1.msra.mxu0 %v2877
    %2991 = vmatprep.subr.mxu0 0.0
    %2992 = vmatpush1.msra.mxu0 %v2878
    %2993 = vmatprep.subr.mxu0 0.0
    %2994 = vmatpush1.msra.mxu0 %v2879
    %2995 = vmatprep.subr.mxu0 0.0
    %2996 = vmatpush1.msra.mxu0 %v2880
    %2997 = vmatprep.subr.mxu0 0.0
    %2998 = vmatpush1.msra.mxu0 %v2881
    %2999 = vmatprep.subr.mxu0 0.0
    %3000 = vmatpush1.msra.mxu0 %v2882
    %3001 = vmatprep.subr.mxu0 0.0
    %3002 = vmatpush1.msra.mxu0 %v2883
    %3003 = vmatprep.subr.mxu0 0.0
    %3004 = vmatpush1.msra.mxu0 %v2884
    %3005 = vmatprep.subr.mxu0 0.0
    %3006 = vmatpush1.msra.mxu0 0.0
    %3007 = vmatprep.subr.mxu0 0.0
    %3008 = vmatpush1.msra.mxu0 0.0
    %3009 = vmatprep.subr.mxu0 0.0
    %3010 = vmatpush1.msra.mxu0 0.0
    %3011 = vmatprep.subr.mxu0 0.0
    %3012 = vmatpush1.msra.mxu0 0.0
    %3013 = vmatprep.subr.mxu0 0.0
    %3014 = vmatpush1.msra.mxu0 0.0
    %3015 = vmatprep.subr.mxu0 0.0
    %3016 = vmatpush1.msra.mxu0 0.0
    %3017 = vmatprep.subr.mxu0 0.0
    %3018 = vmatpush1.msra.mxu0 0.0
    %3019 = vmatprep.subr.mxu0 0.0
    %3020 = vmatpush1.msra.mxu0 0.0
    %3021 = vmatprep.subr.mxu0 0.0
    %3022 = vmatpush1.msra.mxu0 0.0
    %3023 = vmatprep.subr.mxu0 0.0
    %3024 = vmatpush1.msra.mxu0 0.0
    %3025 = vmatprep.subr.mxu0 0.0
    %3026 = vmatpush1.msra.mxu0 0.0
    %3027 = vmatprep.subr.mxu0 0.0
    %3028 = vmatpush1.msra.mxu0 0.0
    %3029 = vmatprep.subr.mxu0 0.0
    %3030 = vmatpush1.msra.mxu0 0.0
    %3031 = vmatprep.subr.mxu0 0.0
    %3032 = vmatpush1.msra.mxu0 0.0
    %3033 = vmatprep.subr.mxu0 0.0
    %3034 = vmatpush1.msra.mxu0 0.0
    %3035 = vmatprep.subr.mxu0 0.0
    %3036 = vmatpush1.msra.mxu0 0.0
    %3037 = vmatprep.mubr.f32.mxu0 0.0
    %3038 = vmatmul.mubr.f32.gmra.mrb[0].mxu0 %v2868
    %v3039 = vpop.f32.mrb[0].mxu0
    %v3040 = vadd.f32 %v2970, %v3039
    %v3041 = vpop.f32.mrb[0].mxu0
    %3042 = vdwg.mxu0
    %v3043 = vld [vmem:[#allocation5 + $0x2] sm:$0xf]
    %s3044 = scalar_lea.vmem [#allocation9], 256
    %v3045 = vld [vmem:[%s3044] sm:$0xff]
    %v3046 = vld [vmem:[%s3044 + $0x8] sm:$0xff]
    %v3047 = vld [vmem:[%s3044 + $0x10] sm:$0xff]
    %v3048 = vld [vmem:[%s3044 + $0x18] sm:$0xff]
    %v3049 = vld [vmem:[%s3044 + $0x20] sm:$0xff]
    %v3050 = vld [vmem:[%s3044 + $0x28] sm:$0xff]
    %v3051 = vld [vmem:[%s3044 + $0x30] sm:$0xff]
    %v3052 = vld [vmem:[%s3044 + $0x38] sm:$0xff]
    %v3053 = vld [vmem:[%s3044 + $0x40] sm:$0xff]
    %v3054 = vld [vmem:[%s3044 + $0x48] sm:$0xff]
    %v3055 = vld [vmem:[%s3044 + $0x50] sm:$0xff]
    %v3056 = vld [vmem:[%s3044 + $0x58] sm:$0xff]
    %v3057 = vld [vmem:[%s3044 + $0x60] sm:$0xff]
    %v3058 = vld [vmem:[%s3044 + $0x68] sm:$0xff]
    %v3059 = vld [vmem:[%s3044 + $0x70] sm:$0xff]
    %v3060 = vld [vmem:[%s3044 + $0x78] sm:$0xff]
    %3061 = vmatprep.subr.mxu0 0.0
    %3062 = vmatpush1.msra.mxu0 %v3045
    %3063 = vmatprep.subr.mxu0 0.0
    %3064 = vmatpush1.msra.mxu0 %v3046
    %3065 = vmatprep.subr.mxu0 0.0
    %3066 = vmatpush1.msra.mxu0 %v3047
    %3067 = vmatprep.subr.mxu0 0.0
    %3068 = vmatpush1.msra.mxu0 %v3048
    %3069 = vmatprep.subr.mxu0 0.0
    %3070 = vmatpush1.msra.mxu0 %v3049
    %3071 = vmatprep.subr.mxu0 0.0
    %3072 = vmatpush1.msra.mxu0 %v3050
    %3073 = vmatprep.subr.mxu0 0.0
    %3074 = vmatpush1.msra.mxu0 %v3051
    %3075 = vmatprep.subr.mxu0 0.0
    %3076 = vmatpush1.msra.mxu0 %v3052
    %3077 = vmatprep.subr.mxu0 0.0
    %3078 = vmatpush1.msra.mxu0 %v3053
    %3079 = vmatprep.subr.mxu0 0.0
    %3080 = vmatpush1.msra.mxu0 %v3054
    %3081 = vmatprep.subr.mxu0 0.0
    %3082 = vmatpush1.msra.mxu0 %v3055
    %3083 = vmatprep.subr.mxu0 0.0
    %3084 = vmatpush1.msra.mxu0 %v3056
    %3085 = vmatprep.subr.mxu0 0.0
    %3086 = vmatpush1.msra.mxu0 %v3057
    %3087 = vmatprep.subr.mxu0 0.0
    %3088 = vmatpush1.msra.mxu0 %v3058
    %3089 = vmatprep.subr.mxu0 0.0
    %3090 = vmatpush1.msra.mxu0 %v3059
    %3091 = vmatprep.subr.mxu0 0.0
    %3092 = vmatpush1.msra.mxu0 %v3060
    %3093 = vmatprep.subr.mxu0 0.0
    %3094 = vmatpush1.msra.mxu0 0.0
    %3095 = vmatprep.subr.mxu0 0.0
    %3096 = vmatpush1.msra.mxu0 0.0
    %3097 = vmatprep.subr.mxu0 0.0
    %3098 = vmatpush1.msra.mxu0 0.0
    %3099 = vmatprep.subr.mxu0 0.0
    %3100 = vmatpush1.msra.mxu0 0.0
    %3101 = vmatprep.subr.mxu0 0.0
    %3102 = vmatpush1.msra.mxu0 0.0
    %3103 = vmatprep.subr.mxu0 0.0
    %3104 = vmatpush1.msra.mxu0 0.0
    %3105 = vmatprep.subr.mxu0 0.0
    %3106 = vmatpush1.msra.mxu0 0.0
    %3107 = vmatprep.subr.mxu0 0.0
    %3108 = vmatpush1.msra.mxu0 0.0
    %3109 = vmatprep.subr.mxu0 0.0
    %3110 = vmatpush1.msra.mxu0 0.0
    %3111 = vmatprep.subr.mxu0 0.0
    %3112 = vmatpush1.msra.mxu0 0.0
    %3113 = vmatprep.subr.mxu0 0.0
    %3114 = vmatpush1.msra.mxu0 0.0
    %3115 = vmatprep.subr.mxu0 0.0
    %3116 = vmatpush1.msra.mxu0 0.0
    %3117 = vmatprep.subr.mxu0 0.0
    %3118 = vmatpush1.msra.mxu0 0.0
    %3119 = vmatprep.subr.mxu0 0.0
    %3120 = vmatpush1.msra.mxu0 0.0
    %3121 = vmatprep.subr.mxu0 0.0
    %3122 = vmatpush1.msra.mxu0 0.0
    %3123 = vmatprep.subr.mxu0 0.0
    %3124 = vmatpush1.msra.mxu0 0.0
    %3125 = vmatprep.mubr.f32.mxu0 0.0
    %3126 = vmatmul.mubr.f32.gmra.mrb[0].mxu0 %v3043
    %v3127 = vpop.f32.mrb[0].mxu0
    %v3128 = vadd.f32 0.0, %v3127
    %v3129 = vpop.f32.mrb[0].mxu0
    %3130 = vdwg.mxu0
    %v3131 = vadd.f32 %v3040, %v3128
    %v3132 = vld [vmem:[#allocation5 + $0xa] sm:$0xf]
    %s3133 = scalar_lea.vmem [#allocation9], 384
    %v3134 = vld [vmem:[%s3133] sm:$0xff]
    %v3135 = vld [vmem:[%s3133 + $0x8] sm:$0xff]
    %v3136 = vld [vmem:[%s3133 + $0x10] sm:$0xff]
    %v3137 = vld [vmem:[%s3133 + $0x18] sm:$0xff]
    %v3138 = vld [vmem:[%s3133 + $0x20] sm:$0xff]
    %v3139 = vld [vmem:[%s3133 + $0x28] sm:$0xff]
    %v3140 = vld [vmem:[%s3133 + $0x30] sm:$0xff]
    %v3141 = vld [vmem:[%s3133 + $0x38] sm:$0xff]
    %v3142 = vld [vmem:[%s3133 + $0x40] sm:$0xff]
    %v3143 = vld [vmem:[%s3133 + $0x48] sm:$0xff]
    %v3144 = vld [vmem:[%s3133 + $0x50] sm:$0xff]
    %v3145 = vld [vmem:[%s3133 + $0x58] sm:$0xff]
    %v3146 = vld [vmem:[%s3133 + $0x60] sm:$0xff]
    %v3147 = vld [vmem:[%s3133 + $0x68] sm:$0xff]
    %v3148 = vld [vmem:[%s3133 + $0x70] sm:$0xff]
    %v3149 = vld [vmem:[%s3133 + $0x78] sm:$0xff]
    %3150 = vmatprep.subr.mxu0 0.0
    %3151 = vmatpush1.msra.mxu0 %v3134
    %3152 = vmatprep.subr.mxu0 0.0
    %3153 = vmatpush1.msra.mxu0 %v3135
    %3154 = vmatprep.subr.mxu0 0.0
    %3155 = vmatpush1.msra.mxu0 %v3136
    %3156 = vmatprep.subr.mxu0 0.0
    %3157 = vmatpush1.msra.mxu0 %v3137
    %3158 = vmatprep.subr.mxu0 0.0
    %3159 = vmatpush1.msra.mxu0 %v3138
    %3160 = vmatprep.subr.mxu0 0.0
    %3161 = vmatpush1.msra.mxu0 %v3139
    %3162 = vmatprep.subr.mxu0 0.0
    %3163 = vmatpush1.msra.mxu0 %v3140
    %3164 = vmatprep.subr.mxu0 0.0
    %3165 = vmatpush1.msra.mxu0 %v3141
    %3166 = vmatprep.subr.mxu0 0.0
    %3167 = vmatpush1.msra.mxu0 %v3142
    %3168 = vmatprep.subr.mxu0 0.0
    %3169 = vmatpush1.msra.mxu0 %v3143
    %3170 = vmatprep.subr.mxu0 0.0
    %3171 = vmatpush1.msra.mxu0 %v3144
    %3172 = vmatprep.subr.mxu0 0.0
    %3173 = vmatpush1.msra.mxu0 %v3145
    %3174 = vmatprep.subr.mxu0 0.0
    %3175 = vmatpush1.msra.mxu0 %v3146
    %3176 = vmatprep.subr.mxu0 0.0
    %3177 = vmatpush1.msra.mxu0 %v3147
    %3178 = vmatprep.subr.mxu0 0.0
    %3179 = vmatpush1.msra.mxu0 %v3148
    %3180 = vmatprep.subr.mxu0 0.0
    %3181 = vmatpush1.msra.mxu0 %v3149
    %3182 = vmatprep.subr.mxu0 0.0
    %3183 = vmatpush1.msra.mxu0 0.0
    %3184 = vmatprep.subr.mxu0 0.0
    %3185 = vmatpush1.msra.mxu0 0.0
    %3186 = vmatprep.subr.mxu0 0.0
    %3187 = vmatpush1.msra.mxu0 0.0
    %3188 = vmatprep.subr.mxu0 0.0
    %3189 = vmatpush1.msra.mxu0 0.0
    %3190 = vmatprep.subr.mxu0 0.0
    %3191 = vmatpush1.msra.mxu0 0.0
    %3192 = vmatprep.subr.mxu0 0.0
    %3193 = vmatpush1.msra.mxu0 0.0
    %3194 = vmatprep.subr.mxu0 0.0
    %3195 = vmatpush1.msra.mxu0 0.0
    %3196 = vmatprep.subr.mxu0 0.0
    %3197 = vmatpush1.msra.mxu0 0.0
    %3198 = vmatprep.subr.mxu0 0.0
    %3199 = vmatpush1.msra.mxu0 0.0
    %3200 = vmatprep.subr.mxu0 0.0
    %3201 = vmatpush1.msra.mxu0 0.0
    %3202 = vmatprep.subr.mxu0 0.0
    %3203 = vmatpush1.msra.mxu0 0.0
    %3204 = vmatprep.subr.mxu0 0.0
    %3205 = vmatpush1.msra.mxu0 0.0
    %3206 = vmatprep.subr.mxu0 0.0
    %3207 = vmatpush1.msra.mxu0 0.0
    %3208 = vmatprep.subr.mxu0 0.0
    %3209 = vmatpush1.msra.mxu0 0.0
    %3210 = vmatprep.subr.mxu0 0.0
    %3211 = vmatpush1.msra.mxu0 0.0
    %3212 = vmatprep.subr.mxu0 0.0
    %3213 = vmatpush1.msra.mxu0 0.0
    %3214 = vmatprep.mubr.f32.mxu0 0.0
    %3215 = vmatmul.mubr.f32.gmra.mrb[0].mxu0 %v3132
    %v3216 = vpop.f32.mrb[0].mxu0
    %v3217 = vadd.f32 0.0, %v3216
    %v3218 = vpop.f32.mrb[0].mxu0
    %3219 = vdwg.mxu0
    %v3220 = vadd.f32 %v3131, %v3217
    %v3221 = vld [vmem:[#allocation5 + $0x4] sm:$0xf]
    %s3222 = scalar_lea.vmem [#allocation9], 512
    %v3223 = vld [vmem:[%s3222] sm:$0xff]
    %v3224 = vld [vmem:[%s3222 + $0x8] sm:$0xff]
    %v3225 = vld [vmem:[%s3222 + $0x10] sm:$0xff]
    %v3226 = vld [vmem:[%s3222 + $0x18] sm:$0xff]
    %v3227 = vld [vmem:[%s3222 + $0x20] sm:$0xff]
    %v3228 = vld [vmem:[%s3222 + $0x28] sm:$0xff]
    %v3229 = vld [vmem:[%s3222 + $0x30] sm:$0xff]
    %v3230 = vld [vmem:[%s3222 + $0x38] sm:$0xff]
    %v3231 = vld [vmem:[%s3222 + $0x40] sm:$0xff]
    %v3232 = vld [vmem:[%s3222 + $0x48] sm:$0xff]
    %v3233 = vld [vmem:[%s3222 + $0x50] sm:$0xff]
    %v3234 = vld [vmem:[%s3222 + $0x58] sm:$0xff]
    %v3235 = vld [vmem:[%s3222 + $0x60] sm:$0xff]
    %v3236 = vld [vmem:[%s3222 + $0x68] sm:$0xff]
    %v3237 = vld [vmem:[%s3222 + $0x70] sm:$0xff]
    %v3238 = vld [vmem:[%s3222 + $0x78] sm:$0xff]
    %3239 = vmatprep.subr.mxu0 0.0
    %3240 = vmatpush1.msra.mxu0 %v3223
    %3241 = vmatprep.subr.mxu0 0.0
    %3242 = vmatpush1.msra.mxu0 %v3224
    %3243 = vmatprep.subr.mxu0 0.0
    %3244 = vmatpush1.msra.mxu0 %v3225
    %3245 = vmatprep.subr.mxu0 0.0
    %3246 = vmatpush1.msra.mxu0 %v3226
    %3247 = vmatprep.subr.mxu0 0.0
    %3248 = vmatpush1.msra.mxu0 %v3227
    %3249 = vmatprep.subr.mxu0 0.0
    %3250 = vmatpush1.msra.mxu0 %v3228
    %3251 = vmatprep.subr.mxu0 0.0
    %3252 = vmatpush1.msra.mxu0 %v3229
    %3253 = vmatprep.subr.mxu0 0.0
    %3254 = vmatpush1.msra.mxu0 %v3230
    %3255 = vmatprep.subr.mxu0 0.0
    %3256 = vmatpush1.msra.mxu0 %v3231
    %3257 = vmatprep.subr.mxu0 0.0
    %3258 = vmatpush1.msra.mxu0 %v3232
    %3259 = vmatprep.subr.mxu0 0.0
    %3260 = vmatpush1.msra.mxu0 %v3233
    %3261 = vmatprep.subr.mxu0 0.0
    %3262 = vmatpush1.msra.mxu0 %v3234
    %3263 = vmatprep.subr.mxu0 0.0
    %3264 = vmatpush1.msra.mxu0 %v3235
    %3265 = vmatprep.subr.mxu0 0.0
    %3266 = vmatpush1.msra.mxu0 %v3236
    %3267 = vmatprep.subr.mxu0 0.0
    %3268 = vmatpush1.msra.mxu0 %v3237
    %3269 = vmatprep.subr.mxu0 0.0
    %3270 = vmatpush1.msra.mxu0 %v3238
    %3271 = vmatprep.subr.mxu0 0.0
    %3272 = vmatpush1.msra.mxu0 0.0
    %3273 = vmatprep.subr.mxu0 0.0
    %3274 = vmatpush1.msra.mxu0 0.0
    %3275 = vmatprep.subr.mxu0 0.0
    %3276 = vmatpush1.msra.mxu0 0.0
    %3277 = vmatprep.subr.mxu0 0.0
    %3278 = vmatpush1.msra.mxu0 0.0
    %3279 = vmatprep.subr.mxu0 0.0
    %3280 = vmatpush1.msra.mxu0 0.0
    %3281 = vmatprep.subr.mxu0 0.0
    %3282 = vmatpush1.msra.mxu0 0.0
    %3283 = vmatprep.subr.mxu0 0.0
    %3284 = vmatpush1.msra.mxu0 0.0
    %3285 = vmatprep.subr.mxu0 0.0
    %3286 = vmatpush1.msra.mxu0 0.0
    %3287 = vmatprep.subr.mxu0 0.0
    %3288 = vmatpush1.msra.mxu0 0.0
    %3289 = vmatprep.subr.mxu0 0.0
    %3290 = vmatpush1.msra.mxu0 0.0
    %3291 = vmatprep.subr.mxu0 0.0
    %3292 = vmatpush1.msra.mxu0 0.0
    %3293 = vmatprep.subr.mxu0 0.0
    %3294 = vmatpush1.msra.mxu0 0.0
    %3295 = vmatprep.subr.mxu0 0.0
    %3296 = vmatpush1.msra.mxu0 0.0
    %3297 = vmatprep.subr.mxu0 0.0
    %3298 = vmatpush1.msra.mxu0 0.0
    %3299 = vmatprep.subr.mxu0 0.0
    %3300 = vmatpush1.msra.mxu0 0.0
    %3301 = vmatprep.subr.mxu0 0.0
    %3302 = vmatpush1.msra.mxu0 0.0
    %3303 = vmatprep.mubr.f32.mxu0 0.0
    %3304 = vmatmul.mubr.f32.gmra.mrb[0].mxu0 %v3221
    %v3305 = vpop.f32.mrb[0].mxu0
    %v3306 = vadd.f32 0.0, %v3305
    %v3307 = vpop.f32.mrb[0].mxu0
    %3308 = vdwg.mxu0
    %v3309 = vadd.f32 %v3220, %v3306
    %v3310 = vld [vmem:[%s14] sm:$0x7]
    %v3311 = vlaneseq
    %v3312 = vshrl.u32 %v3311, 7
    %v3313 = vsub.s32 0, %v3312
    %v3314 = vrot.slane %v3310, %v3313
    %v3315 = vadd.f32 %v3309, %v3314
    %vm3316 = vcmp.ge.f32.partialorder %v3315, 0.0
    %v3317 = vmul.f32 %v3315, 0.01
    %v3318 = vsel %vm3316, %v3315, %v3317
    %v3319 = vsel %vm2500, %v3318, 0.0
    %v3320 = vrot.slane %v3319, 4
    %v3321 = vadd.f32 %v3319, %v3320
    %v3322 = vrot.slane %v3321, 2
    %v3323 = vadd.f32 %v3321, %v3322
    %v3324 = vrot.slane %v3323, 1
    %v3325 = vadd.f32 %v3323, %v3324
    %v3326 = vld [vmem:[%s15] sm:$0xff]
    %v3327 = vld [vmem:[%s15 + $0x8] sm:$0xff]
    %v3328 = vld [vmem:[%s15 + $0x10] sm:$0xff]
    %v3329 = vld [vmem:[%s15 + $0x18] sm:$0xff]
    %v3330 = vld [vmem:[%s15 + $0x20] sm:$0xff]
    %v3331 = vld [vmem:[%s15 + $0x28] sm:$0xff]
    %v3332 = vld [vmem:[%s15 + $0x30] sm:$0xff]
    %v3333 = vld [vmem:[%s15 + $0x38] sm:$0xff]
    %v3334 = vld [vmem:[%s15 + $0x40] sm:$0xff]
    %v3335 = vld [vmem:[%s15 + $0x48] sm:$0xff]
    %v3336 = vld [vmem:[%s15 + $0x50] sm:$0xff]
    %v3337 = vld [vmem:[%s15 + $0x58] sm:$0xff]
    %v3338 = vld [vmem:[%s15 + $0x60] sm:$0xff]
    %v3339 = vld [vmem:[%s15 + $0x68] sm:$0xff]
    %v3340 = vld [vmem:[%s15 + $0x70] sm:$0xff]
    %v3341 = vld [vmem:[%s15 + $0x78] sm:$0xff]
    %3342 = vmatprep.subr.mxu0 0.0
    %3343 = vmatpush1.msra.mxu0 %v3326
    %3344 = vmatprep.subr.mxu0 0.0
    %3345 = vmatpush1.msra.mxu0 %v3327
    %3346 = vmatprep.subr.mxu0 0.0
    %3347 = vmatpush1.msra.mxu0 %v3328
    %3348 = vmatprep.subr.mxu0 0.0
    %3349 = vmatpush1.msra.mxu0 %v3329
    %3350 = vmatprep.subr.mxu0 0.0
    %3351 = vmatpush1.msra.mxu0 %v3330
    %3352 = vmatprep.subr.mxu0 0.0
    %3353 = vmatpush1.msra.mxu0 %v3331
    %3354 = vmatprep.subr.mxu0 0.0
    %3355 = vmatpush1.msra.mxu0 %v3332
    %3356 = vmatprep.subr.mxu0 0.0
    %3357 = vmatpush1.msra.mxu0 %v3333
    %3358 = vmatprep.subr.mxu0 0.0
    %3359 = vmatpush1.msra.mxu0 %v3334
    %3360 = vmatprep.subr.mxu0 0.0
    %3361 = vmatpush1.msra.mxu0 %v3335
    %3362 = vmatprep.subr.mxu0 0.0
    %3363 = vmatpush1.msra.mxu0 %v3336
    %3364 = vmatprep.subr.mxu0 0.0
    %3365 = vmatpush1.msra.mxu0 %v3337
    %3366 = vmatprep.subr.mxu0 0.0
    %3367 = vmatpush1.msra.mxu0 %v3338
    %3368 = vmatprep.subr.mxu0 0.0
    %3369 = vmatpush1.msra.mxu0 %v3339
    %3370 = vmatprep.subr.mxu0 0.0
    %3371 = vmatpush1.msra.mxu0 %v3340
    %3372 = vmatprep.subr.mxu0 0.0
    %3373 = vmatpush1.msra.mxu0 %v3341
    %3374 = vmatprep.subr.mxu0 0.0
    %3375 = vmatpush1.msra.mxu0 0.0
    %3376 = vmatprep.subr.mxu0 0.0
    %3377 = vmatpush1.msra.mxu0 0.0
    %3378 = vmatprep.subr.mxu0 0.0
    %3379 = vmatpush1.msra.mxu0 0.0
    %3380 = vmatprep.subr.mxu0 0.0
    %3381 = vmatpush1.msra.mxu0 0.0
    %3382 = vmatprep.subr.mxu0 0.0
    %3383 = vmatpush1.msra.mxu0 0.0
    %3384 = vmatprep.subr.mxu0 0.0
    %3385 = vmatpush1.msra.mxu0 0.0
    %3386 = vmatprep.subr.mxu0 0.0
    %3387 = vmatpush1.msra.mxu0 0.0
    %3388 = vmatprep.subr.mxu0 0.0
    %3389 = vmatpush1.msra.mxu0 0.0
    %3390 = vmatprep.subr.mxu0 0.0
    %3391 = vmatpush1.msra.mxu0 0.0
    %3392 = vmatprep.subr.mxu0 0.0
    %3393 = vmatpush1.msra.mxu0 0.0
    %3394 = vmatprep.subr.mxu0 0.0
    %3395 = vmatpush1.msra.mxu0 0.0
    %3396 = vmatprep.subr.mxu0 0.0
    %3397 = vmatpush1.msra.mxu0 0.0
    %3398 = vmatprep.subr.mxu0 0.0
    %3399 = vmatpush1.msra.mxu0 0.0
    %3400 = vmatprep.subr.mxu0 0.0
    %3401 = vmatpush1.msra.mxu0 0.0
    %3402 = vmatprep.subr.mxu0 0.0
    %3403 = vmatpush1.msra.mxu0 0.0
    %3404 = vmatprep.subr.mxu0 0.0
    %3405 = vmatpush1.msra.mxu0 0.0
    %3406 = vmatprep.mubr.f32.mxu0 0.0
    %3407 = vmatmul.mubr.f32.gmra.mrb[0].mxu0 %v3325
    %v3408 = vpop.f32.mrb[0].mxu0
    %v3409 = vadd.f32 0.0, %v3408
    %v3410 = vpop.f32.mrb[0].mxu0
    %3411 = vdwg.mxu0
    %v3412 = vmul.f32 %v3409, 0.125
    %v3413 = vld [vmem:[%s16] sm:$0xff]
    %v3414 = vld [vmem:[%s16 + $0x8] sm:$0xff]
    %v3415 = vld [vmem:[%s16 + $0x10] sm:$0xff]
    %v3416 = vld [vmem:[%s16 + $0x18] sm:$0xff]
    %v3417 = vld [vmem:[%s16 + $0x20] sm:$0xff]
    %v3418 = vld [vmem:[%s16 + $0x28] sm:$0xff]
    %v3419 = vld [vmem:[%s16 + $0x30] sm:$0xff]
    %v3420 = vld [vmem:[%s16 + $0x38] sm:$0xff]
    %vm3421 = vcmask 523264
    %v3423 = vsel %vm3421, %v3412, 0
    %3425 = vmatprep.subr.mxu0 0.0
    %3426 = vmatpush1.msra.mxu0 %v3413
    %3427 = vmatprep.subr.mxu0 0.0
    %3428 = vmatpush1.msra.mxu0 %v3414
    %3429 = vmatprep.subr.mxu0 0.0
    %3430 = vmatpush1.msra.mxu0 %v3415
    %3431 = vmatprep.subr.mxu0 0.0
    %3432 = vmatpush1.msra.mxu0 %v3416
    %3433 = vmatprep.subr.mxu0 0.0
    %3434 = vmatpush1.msra.mxu0 %v3417
    %3435 = vmatprep.subr.mxu0 0.0
    %3436 = vmatpush1.msra.mxu0 %v3418
    %3437 = vmatprep.subr.mxu0 0.0
    %3438 = vmatpush1.msra.mxu0 %v3419
    %3439 = vmatprep.subr.mxu0 0.0
    %3440 = vmatpush1.msra.mxu0 %v3420
    %3441 = vmatprep.subr.mxu0 0.0
    %3442 = vmatpush1.msra.mxu0 0.0
    %3443 = vmatprep.subr.mxu0 0.0
    %3444 = vmatpush1.msra.mxu0 0.0
    %3445 = vmatprep.subr.mxu0 0.0
    %3446 = vmatpush1.msra.mxu0 0.0
    %3447 = vmatprep.subr.mxu0 0.0
    %3448 = vmatpush1.msra.mxu0 0.0
    %3449 = vmatprep.subr.mxu0 0.0
    %3450 = vmatpush1.msra.mxu0 0.0
    %3451 = vmatprep.subr.mxu0 0.0
    %3452 = vmatpush1.msra.mxu0 0.0
    %3453 = vmatprep.subr.mxu0 0.0
    %3454 = vmatpush1.msra.mxu0 0.0
    %3455 = vmatprep.subr.mxu0 0.0
    %3456 = vmatpush1.msra.mxu0 0.0
    %3457 = vmatprep.subr.mxu0 0.0
    %3458 = vmatpush1.msra.mxu0 0.0
    %3459 = vmatprep.subr.mxu0 0.0
    %3460 = vmatpush1.msra.mxu0 0.0
    %3461 = vmatprep.subr.mxu0 0.0
    %3462 = vmatpush1.msra.mxu0 0.0
    %3463 = vmatprep.subr.mxu0 0.0
    %3464 = vmatpush1.msra.mxu0 0.0
    %3465 = vmatprep.subr.mxu0 0.0
    %3466 = vmatpush1.msra.mxu0 0.0
    %3467 = vmatprep.subr.mxu0 0.0
    %3468 = vmatpush1.msra.mxu0 0.0
    %3469 = vmatprep.subr.mxu0 0.0
    %3470 = vmatpush1.msra.mxu0 0.0
    %3471 = vmatprep.subr.mxu0 0.0
    %3472 = vmatpush1.msra.mxu0 0.0
    %3473 = vmatprep.subr.mxu0 0.0
    %3474 = vmatpush1.msra.mxu0 0.0
    %3475 = vmatprep.subr.mxu0 0.0
    %3476 = vmatpush1.msra.mxu0 0.0
    %3477 = vmatprep.subr.mxu0 0.0
    %3478 = vmatpush1.msra.mxu0 0.0
    %3479 = vmatprep.subr.mxu0 0.0
    %3480 = vmatpush1.msra.mxu0 0.0
    %3481 = vmatprep.subr.mxu0 0.0
    %3482 = vmatpush1.msra.mxu0 0.0
    %3483 = vmatprep.subr.mxu0 0.0
    %3484 = vmatpush1.msra.mxu0 0.0
    %3485 = vmatprep.subr.mxu0 0.0
    %3486 = vmatpush1.msra.mxu0 0.0
    %3487 = vmatprep.subr.mxu0 0.0
    %3488 = vmatpush1.msra.mxu0 0.0
    %3489 = vmatprep.mubr.f32.mxu0 0.0
    %3490 = vmatmul.mubr.f32.gmra.mrb[0].mxu0 %v3423
    %v3491 = vpop.f32.mrb[0].mxu0
    %v3492 = vadd.f32 0.0, %v3491
    %v3493 = vpop.f32.mrb[0].mxu0
    %3494 = vdwg.mxu0
    %v3495 = vlaneseq
    %v3496 = vshrl.u32 %v3495, 7
    %v3497 = vsub.s32 0, %v3496
    %v3498 = vrot.slane %v3492, %v3497
    %v3499 = vsub.f32 %v3318, %v3498
    %v3500 = vmul.f32 %v3499, %v3499
    %v3501 = vsel %vm2500, %v3500, 0.0
    %v3502 = vrot.slane %v3501, 4
    %v3503 = vadd.f32 %v3501, %v3502
    %v3504 = vrot.slane %v3503, 2
    %v3505 = vadd.f32 %v3503, %v3504
    %v3506 = vrot.slane %v3505, 1
    %v3507 = vadd.f32 %v3505, %v3506
    %3508 = vmatprep.subr.mxu0 0.0
    %3509 = vmatpush1.msra.mxu0 %v3326
    %3510 = vmatprep.subr.mxu0 0.0
    %3511 = vmatpush1.msra.mxu0 %v3327
    %3512 = vmatprep.subr.mxu0 0.0
    %3513 = vmatpush1.msra.mxu0 %v3328
    %3514 = vmatprep.subr.mxu0 0.0
    %3515 = vmatpush1.msra.mxu0 %v3329
    %3516 = vmatprep.subr.mxu0 0.0
    %3517 = vmatpush1.msra.mxu0 %v3330
    %3518 = vmatprep.subr.mxu0 0.0
    %3519 = vmatpush1.msra.mxu0 %v3331
    %3520 = vmatprep.subr.mxu0 0.0
    %3521 = vmatpush1.msra.mxu0 %v3332
    %3522 = vmatprep.subr.mxu0 0.0
    %3523 = vmatpush1.msra.mxu0 %v3333
    %3524 = vmatprep.subr.mxu0 0.0
    %3525 = vmatpush1.msra.mxu0 %v3334
    %3526 = vmatprep.subr.mxu0 0.0
    %3527 = vmatpush1.msra.mxu0 %v3335
    %3528 = vmatprep.subr.mxu0 0.0
    %3529 = vmatpush1.msra.mxu0 %v3336
    %3530 = vmatprep.subr.mxu0 0.0
    %3531 = vmatpush1.msra.mxu0 %v3337
    %3532 = vmatprep.subr.mxu0 0.0
    %3533 = vmatpush1.msra.mxu0 %v3338
    %3534 = vmatprep.subr.mxu0 0.0
    %3535 = vmatpush1.msra.mxu0 %v3339
    %3536 = vmatprep.subr.mxu0 0.0
    %3537 = vmatpush1.msra.mxu0 %v3340
    %3538 = vmatprep.subr.mxu0 0.0
    %3539 = vmatpush1.msra.mxu0 %v3341
    %3540 = vmatprep.subr.mxu0 0.0
    %3541 = vmatpush1.msra.mxu0 0.0
    %3542 = vmatprep.subr.mxu0 0.0
    %3543 = vmatpush1.msra.mxu0 0.0
    %3544 = vmatprep.subr.mxu0 0.0
    %3545 = vmatpush1.msra.mxu0 0.0
    %3546 = vmatprep.subr.mxu0 0.0
    %3547 = vmatpush1.msra.mxu0 0.0
    %3548 = vmatprep.subr.mxu0 0.0
    %3549 = vmatpush1.msra.mxu0 0.0
    %3550 = vmatprep.subr.mxu0 0.0
    %3551 = vmatpush1.msra.mxu0 0.0
    %3552 = vmatprep.subr.mxu0 0.0
    %3553 = vmatpush1.msra.mxu0 0.0
    %3554 = vmatprep.subr.mxu0 0.0
    %3555 = vmatpush1.msra.mxu0 0.0
    %3556 = vmatprep.subr.mxu0 0.0
    %3557 = vmatpush1.msra.mxu0 0.0
    %3558 = vmatprep.subr.mxu0 0.0
    %3559 = vmatpush1.msra.mxu0 0.0
    %3560 = vmatprep.subr.mxu0 0.0
    %3561 = vmatpush1.msra.mxu0 0.0
    %3562 = vmatprep.subr.mxu0 0.0
    %3563 = vmatpush1.msra.mxu0 0.0
    %3564 = vmatprep.subr.mxu0 0.0
    %3565 = vmatpush1.msra.mxu0 0.0
    %3566 = vmatprep.subr.mxu0 0.0
    %3567 = vmatpush1.msra.mxu0 0.0
    %3568 = vmatprep.subr.mxu0 0.0
    %3569 = vmatpush1.msra.mxu0 0.0
    %3570 = vmatprep.subr.mxu0 0.0
    %3571 = vmatpush1.msra.mxu0 0.0
    %3572 = vmatprep.mubr.f32.mxu0 0.0
    %3573 = vmatmul.mubr.f32.gmra.mrb[0].mxu0 %v3507
    %v3574 = vpop.f32.mrb[0].mxu0
    %v3575 = vadd.f32 0.0, %v3574
    %v3576 = vpop.f32.mrb[0].mxu0
    %3577 = vdwg.mxu0
    %v3578 = vmul.f32 %v3575, 0.125
    %v3579 = vadd.f32 %v3578, 1e-05
    %v3580 = vrsqrt.pop %v3579
    %v3582 = vsel %vm3421, %v3580, 0
    %3584 = vmatprep.subr.mxu0 0.0
    %3585 = vmatpush1.msra.mxu0 %v3413
    %3586 = vmatprep.subr.mxu0 0.0
    %3587 = vmatpush1.msra.mxu0 %v3414
    %3588 = vmatprep.subr.mxu0 0.0
    %3589 = vmatpush1.msra.mxu0 %v3415
    %3590 = vmatprep.subr.mxu0 0.0
    %3591 = vmatpush1.msra.mxu0 %v3416
    %3592 = vmatprep.subr.mxu0 0.0
    %3593 = vmatpush1.msra.mxu0 %v3417
    %3594 = vmatprep.subr.mxu0 0.0
    %3595 = vmatpush1.msra.mxu0 %v3418
    %3596 = vmatprep.subr.mxu0 0.0
    %3597 = vmatpush1.msra.mxu0 %v3419
    %3598 = vmatprep.subr.mxu0 0.0
    %3599 = vmatpush1.msra.mxu0 %v3420
    %3600 = vmatprep.subr.mxu0 0.0
    %3601 = vmatpush1.msra.mxu0 0.0
    %3602 = vmatprep.subr.mxu0 0.0
    %3603 = vmatpush1.msra.mxu0 0.0
    %3604 = vmatprep.subr.mxu0 0.0
    %3605 = vmatpush1.msra.mxu0 0.0
    %3606 = vmatprep.subr.mxu0 0.0
    %3607 = vmatpush1.msra.mxu0 0.0
    %3608 = vmatprep.subr.mxu0 0.0
    %3609 = vmatpush1.msra.mxu0 0.0
    %3610 = vmatprep.subr.mxu0 0.0
    %3611 = vmatpush1.msra.mxu0 0.0
    %3612 = vmatprep.subr.mxu0 0.0
    %3613 = vmatpush1.msra.mxu0 0.0
    %3614 = vmatprep.subr.mxu0 0.0
    %3615 = vmatpush1.msra.mxu0 0.0
    %3616 = vmatprep.subr.mxu0 0.0
    %3617 = vmatpush1.msra.mxu0 0.0
    %3618 = vmatprep.subr.mxu0 0.0
    %3619 = vmatpush1.msra.mxu0 0.0
    %3620 = vmatprep.subr.mxu0 0.0
    %3621 = vmatpush1.msra.mxu0 0.0
    %3622 = vmatprep.subr.mxu0 0.0
    %3623 = vmatpush1.msra.mxu0 0.0
    %3624 = vmatprep.subr.mxu0 0.0
    %3625 = vmatpush1.msra.mxu0 0.0
    %3626 = vmatprep.subr.mxu0 0.0
    %3627 = vmatpush1.msra.mxu0 0.0
    %3628 = vmatprep.subr.mxu0 0.0
    %3629 = vmatpush1.msra.mxu0 0.0
    %3630 = vmatprep.subr.mxu0 0.0
    %3631 = vmatpush1.msra.mxu0 0.0
    %3632 = vmatprep.subr.mxu0 0.0
    %3633 = vmatpush1.msra.mxu0 0.0
    %3634 = vmatprep.subr.mxu0 0.0
    %3635 = vmatpush1.msra.mxu0 0.0
    %3636 = vmatprep.subr.mxu0 0.0
    %3637 = vmatpush1.msra.mxu0 0.0
    %3638 = vmatprep.subr.mxu0 0.0
    %3639 = vmatpush1.msra.mxu0 0.0
    %3640 = vmatprep.subr.mxu0 0.0
    %3641 = vmatpush1.msra.mxu0 0.0
    %3642 = vmatprep.subr.mxu0 0.0
    %3643 = vmatpush1.msra.mxu0 0.0
    %3644 = vmatprep.subr.mxu0 0.0
    %3645 = vmatpush1.msra.mxu0 0.0
    %3646 = vmatprep.subr.mxu0 0.0
    %3647 = vmatpush1.msra.mxu0 0.0
    %3648 = vmatprep.mubr.f32.mxu0 0.0
    %3649 = vmatmul.mubr.f32.gmra.mrb[0].mxu0 %v3582
    %v3650 = vpop.f32.mrb[0].mxu0
    %v3651 = vadd.f32 0.0, %v3650
    %v3652 = vpop.f32.mrb[0].mxu0
    %3653 = vdwg.mxu0
    %v3655 = vrot.slane %v3310, 1
    %v3657 = vmul.f32 %v3651, %v3655
    %v3658 = vlaneseq
    %v3659 = vshrl.u32 %v3658, 7
    %v3660 = vsub.s32 0, %v3659
    %v3661 = vrot.slane %v3657, %v3660
    %v3662 = vmul.f32 %v3499, %v3661
    %v3663 = vlaneseq
    %v3664 = vshrl.u32 %v3663, 7
    %v3665 = vsub.s32 2, %v3664
    %v3666 = vrot.slane %v3310, %v3665
    %v3667 = vadd.f32 %v3662, %v3666
    %v3668 = vld [vmem:[%s18] sm:$0x7]
    %v3669 = vld [vmem:[%s17] sm:$0xff]
    %v3670 = vld [vmem:[%s17 + $0x8] sm:$0xff]
    %v3671 = vld [vmem:[%s17 + $0x10] sm:$0xff]
    %v3672 = vld [vmem:[%s17 + $0x18] sm:$0xff]
    %v3673 = vld [vmem:[%s17 + $0x20] sm:$0xff]
    %v3674 = vld [vmem:[%s17 + $0x28] sm:$0xff]
    %v3675 = vld [vmem:[%s17 + $0x30] sm:$0xff]
    %v3676 = vld [vmem:[%s17 + $0x38] sm:$0xff]
    %v3677 = vld [vmem:[%s17 + $0x40] sm:$0xff]
    %v3678 = vld [vmem:[%s17 + $0x48] sm:$0xff]
    %v3679 = vld [vmem:[%s17 + $0x50] sm:$0xff]
    %v3680 = vld [vmem:[%s17 + $0x58] sm:$0xff]
    %v3681 = vld [vmem:[%s17 + $0x60] sm:$0xff]
    %v3682 = vld [vmem:[%s17 + $0x68] sm:$0xff]
    %v3683 = vld [vmem:[%s17 + $0x70] sm:$0xff]
    %v3684 = vld [vmem:[%s17 + $0x78] sm:$0xff]
    %v3685 = vld [vmem:[%s17 + $0x80] sm:$0xff]
    %v3686 = vld [vmem:[%s17 + $0x88] sm:$0xff]
    %v3687 = vld [vmem:[%s17 + $0x90] sm:$0xff]
    %v3688 = vld [vmem:[%s17 + $0x98] sm:$0xff]
    %v3689 = vld [vmem:[%s17 + $0xa0] sm:$0xff]
    %v3690 = vld [vmem:[%s17 + $0xa8] sm:$0xff]
    %v3691 = vld [vmem:[%s17 + $0xb0] sm:$0xff]
    %v3692 = vld [vmem:[%s17 + $0xb8] sm:$0xff]
    %v3693 = vld [vmem:[%s17 + $0xc0] sm:$0xff]
    %v3694 = vld [vmem:[%s17 + $0xc8] sm:$0xff]
    %v3695 = vld [vmem:[%s17 + $0xd0] sm:$0xff]
    %v3696 = vld [vmem:[%s17 + $0xd8] sm:$0xff]
    %v3697 = vld [vmem:[%s17 + $0xe0] sm:$0xff]
    %v3698 = vld [vmem:[%s17 + $0xe8] sm:$0xff]
    %v3699 = vld [vmem:[%s17 + $0xf0] sm:$0xff]
    %v3700 = vld [vmem:[%s17 + $0xf8] sm:$0xff]
    %v3702 = vrot.slane %v3667, 2
    %3704 = vmatprep.subr.mxu0 0.0
    %3705 = vmatpush1.msra.mxu0 %v3685
    %3706 = vmatprep.subr.mxu0 0.0
    %3707 = vmatpush1.msra.mxu0 %v3686
    %3708 = vmatprep.subr.mxu0 0.0
    %3709 = vmatpush1.msra.mxu0 %v3687
    %3710 = vmatprep.subr.mxu0 0.0
    %3711 = vmatpush1.msra.mxu0 %v3688
    %3712 = vmatprep.subr.mxu0 0.0
    %3713 = vmatpush1.msra.mxu0 %v3689
    %3714 = vmatprep.subr.mxu0 0.0
    %3715 = vmatpush1.msra.mxu0 %v3690
    %3716 = vmatprep.subr.mxu0 0.0
    %3717 = vmatpush1.msra.mxu0 %v3691
    %3718 = vmatprep.subr.mxu0 0.0
    %3719 = vmatpush1.msra.mxu0 %v3692
    %3720 = vmatprep.subr.mxu0 0.0
    %3721 = vmatpush1.msra.mxu0 %v3693
    %3722 = vmatprep.subr.mxu0 0.0
    %3723 = vmatpush1.msra.mxu0 %v3694
    %3724 = vmatprep.subr.mxu0 0.0
    %3725 = vmatpush1.msra.mxu0 %v3695
    %3726 = vmatprep.subr.mxu0 0.0
    %3727 = vmatpush1.msra.mxu0 %v3696
    %3728 = vmatprep.subr.mxu0 0.0
    %3729 = vmatpush1.msra.mxu0 %v3697
    %3730 = vmatprep.subr.mxu0 0.0
    %3731 = vmatpush1.msra.mxu0 %v3698
    %3732 = vmatprep.subr.mxu0 0.0
    %3733 = vmatpush1.msra.mxu0 %v3699
    %3734 = vmatprep.subr.mxu0 0.0
    %3735 = vmatpush1.msra.mxu0 %v3700
    %3736 = vmatprep.subr.mxu0 0.0
    %3737 = vmatpush1.msra.mxu0 0.0
    %3738 = vmatprep.subr.mxu0 0.0
    %3739 = vmatpush1.msra.mxu0 0.0
    %3740 = vmatprep.subr.mxu0 0.0
    %3741 = vmatpush1.msra.mxu0 0.0
    %3742 = vmatprep.subr.mxu0 0.0
    %3743 = vmatpush1.msra.mxu0 0.0
    %3744 = vmatprep.subr.mxu0 0.0
    %3745 = vmatpush1.msra.mxu0 0.0
    %3746 = vmatprep.subr.mxu0 0.0
    %3747 = vmatpush1.msra.mxu0 0.0
    %3748 = vmatprep.subr.mxu0 0.0
    %3749 = vmatpush1.msra.mxu0 0.0
    %3750 = vmatprep.subr.mxu0 0.0
    %3751 = vmatpush1.msra.mxu0 0.0
    %3752 = vmatprep.subr.mxu0 0.0
    %3753 = vmatpush1.msra.mxu0 0.0
    %3754 = vmatprep.subr.mxu0 0.0
    %3755 = vmatpush1.msra.mxu0 0.0
    %3756 = vmatprep.subr.mxu0 0.0
    %3757 = vmatpush1.msra.mxu0 0.0
    %3758 = vmatprep.subr.mxu0 0.0
    %3759 = vmatpush1.msra.mxu0 0.0
    %3760 = vmatprep.subr.mxu0 0.0
    %3761 = vmatpush1.msra.mxu0 0.0
    %3762 = vmatprep.subr.mxu0 0.0
    %3763 = vmatpush1.msra.mxu0 0.0
    %3764 = vmatprep.subr.mxu0 0.0
    %3765 = vmatpush1.msra.mxu0 0.0
    %3766 = vmatprep.subr.mxu0 0.0
    %3767 = vmatpush1.msra.mxu0 0.0
    %3768 = vmatprep.mubr.f32.mxu0 0.0
    %3769 = vmatmul.mubr.f32.gmra.mrb[0].mxu0 %v3702
    %v3770 = vpop.f32.mrb[0].mxu0
    %v3771 = vadd.f32 0.0, %v3770
    %v3772 = vpop.f32.mrb[0].mxu0
    %3773 = vdwg.mxu0
    %3774 = vmatprep.subr.mxu0 0.0
    %3775 = vmatpush1.msra.mxu0 %v3669
    %3776 = vmatprep.subr.mxu0 0.0
    %3777 = vmatpush1.msra.mxu0 %v3670
    %3778 = vmatprep.subr.mxu0 0.0
    %3779 = vmatpush1.msra.mxu0 %v3671
    %3780 = vmatprep.subr.mxu0 0.0
    %3781 = vmatpush1.msra.mxu0 %v3672
    %3782 = vmatprep.subr.mxu0 0.0
    %3783 = vmatpush1.msra.mxu0 %v3673
    %3784 = vmatprep.subr.mxu0 0.0
    %3785 = vmatpush1.msra.mxu0 %v3674
    %3786 = vmatprep.subr.mxu0 0.0
    %3787 = vmatpush1.msra.mxu0 %v3675
    %3788 = vmatprep.subr.mxu0 0.0
    %3789 = vmatpush1.msra.mxu0 %v3676
    %3790 = vmatprep.subr.mxu0 0.0
    %3791 = vmatpush1.msra.mxu0 %v3677
    %3792 = vmatprep.subr.mxu0 0.0
    %3793 = vmatpush1.msra.mxu0 %v3678
    %3794 = vmatprep.subr.mxu0 0.0
    %3795 = vmatpush1.msra.mxu0 %v3679
    %3796 = vmatprep.subr.mxu0 0.0
    %3797 = vmatpush1.msra.mxu0 %v3680
    %3798 = vmatprep.subr.mxu0 0.0
    %3799 = vmatpush1.msra.mxu0 %v3681
    %3800 = vmatprep.subr.mxu0 0.0
    %3801 = vmatpush1.msra.mxu0 %v3682
    %3802 = vmatprep.subr.mxu0 0.0
    %3803 = vmatpush1.msra.mxu0 %v3683
    %3804 = vmatprep.subr.mxu0 0.0
    %3805 = vmatpush1.msra.mxu0 %v3684
    %3806 = vmatprep.subr.mxu0 0.0
    %3807 = vmatpush1.msra.mxu0 0.0
    %3808 = vmatprep.subr.mxu0 0.0
    %3809 = vmatpush1.msra.mxu0 0.0
    %3810 = vmatprep.subr.mxu0 0.0
    %3811 = vmatpush1.msra.mxu0 0.0
    %3812 = vmatprep.subr.mxu0 0.0
    %3813 = vmatpush1.msra.mxu0 0.0
    %3814 = vmatprep.subr.mxu0 0.0
    %3815 = vmatpush1.msra.mxu0 0.0
    %3816 = vmatprep.subr.mxu0 0.0
    %3817 = vmatpush1.msra.mxu0 0.0
    %3818 = vmatprep.subr.mxu0 0.0
    %3819 = vmatpush1.msra.mxu0 0.0
    %3820 = vmatprep.subr.mxu0 0.0
    %3821 = vmatpush1.msra.mxu0 0.0
    %3822 = vmatprep.subr.mxu0 0.0
    %3823 = vmatpush1.msra.mxu0 0.0
    %3824 = vmatprep.subr.mxu0 0.0
    %3825 = vmatpush1.msra.mxu0 0.0
    %3826 = vmatprep.subr.mxu0 0.0
    %3827 = vmatpush1.msra.mxu0 0.0
    %3828 = vmatprep.subr.mxu0 0.0
    %3829 = vmatpush1.msra.mxu0 0.0
    %3830 = vmatprep.subr.mxu0 0.0
    %3831 = vmatpush1.msra.mxu0 0.0
    %3832 = vmatprep.subr.mxu0 0.0
    %3833 = vmatpush1.msra.mxu0 0.0
    %3834 = vmatprep.subr.mxu0 0.0
    %3835 = vmatpush1.msra.mxu0 0.0
    %3836 = vmatprep.subr.mxu0 0.0
    %3837 = vmatpush1.msra.mxu0 0.0
    %3838 = vmatprep.mubr.f32.mxu0 0.0
    %3839 = vmatmul.mubr.f32.gmra.mrb[0].mxu0 %v3667
    %v3840 = vpop.f32.mrb[0].mxu0
    %v3841 = vadd.f32 %v3771, %v3840
    %v3842 = vpop.f32.mrb[0].mxu0
    %3843 = vdwg.mxu0
    %v3844 = vlaneseq
    %v3845 = vshrl.u32 %v3844, 7
    %v3846 = vsub.s32 0, %v3845
    %v3847 = vrot.slane %v3668, %v3846
    %v3848 = vadd.f32 %v3841, %v3847
    %vm3849 = vcmp.ge.f32.partialorder %v3848, 0.0
    %v3850 = vmul.f32 %v3848, 0.01
    %v3851 = vsel %vm3849, %v3848, %v3850
    %vm3852 = vcmask 517120
    %v3853 = vsel %vm3852, %v3851, 0.0
    %v3854 = vrot.slane %v3853, 4
    %v3855 = vadd.f32 %v3853, %v3854
    %v3856 = vrot.slane %v3855, 2
    %v3857 = vadd.f32 %v3855, %v3856
    %v3858 = vrot.slane %v3857, 1
    %v3859 = vadd.f32 %v3857, %v3858
    %v3860 = vrcp.pop 2.0
    %v3861 = vmul.f32 %v3859, %v3860
    %v3862 = vsub.f32 %v3851, %v3861
    %v3863 = vmul.f32 %v3862, %v3862
    %v3864 = vsel %vm3852, %v3863, 0.0
    %v3865 = vrot.slane %v3864, 4
    %v3866 = vadd.f32 %v3864, %v3865
    %v3867 = vrot.slane %v3866, 2
    %v3868 = vadd.f32 %v3866, %v3867
    %v3869 = vrot.slane %v3868, 1
    %v3870 = vadd.f32 %v3868, %v3869
    %v3871 = vmul.f32 %v3870, %v3860
    %v3872 = vadd.f32 %v3871, 1e-05
    %v3873 = vrsqrt.pop %v3872
    %v3874 = vmul.f32 %v3862, %v3873
    %v3875 = vlaneseq
    %v3876 = vshrl.u32 %v3875, 7
    %v3877 = vsub.s32 1, %v3876
    %v3878 = vrot.slane %v3668, %v3877
    %v3879 = vmul.f32 %v3874, %v3878
    %v3880 = vlaneseq
    %v3881 = vshrl.u32 %v3880, 7
    %v3882 = vsub.s32 2, %v3881
    %v3883 = vrot.slane %v3668, %v3882
    %v3884 = vadd.f32 %v3879, %v3883
    %v3885 = vld [vmem:[%s19] sm:$0xff]
    %v3886 = vld [vmem:[%s19 + $0x8] sm:$0xff]
    %v3887 = vld [vmem:[%s19 + $0x10] sm:$0xff]
    %v3888 = vld [vmem:[%s19 + $0x18] sm:$0xff]
    %v3889 = vld [vmem:[%s19 + $0x20] sm:$0xff]
    %v3890 = vld [vmem:[%s19 + $0x28] sm:$0xff]
    %v3891 = vld [vmem:[%s19 + $0x30] sm:$0xff]
    %v3892 = vld [vmem:[%s19 + $0x38] sm:$0xff]
    %v3893 = vld [vmem:[%s20] sm:$0x1]
    %v3895 = vlaneseq
    %v3896 = vshrl.u32 %v3895, 7
    %v3897 = vsub.s32 0, %v3896
    %v3898 = vrot.slane %v3893, %v3897
    %v3901 = vsel %vm3421, %v3884, 0
    %3903 = vmatprep.subr.mxu0 0.0
    %3904 = vmatpush1.msra.mxu0 %v3885
    %3905 = vmatprep.subr.mxu0 0.0
    %3906 = vmatpush1.msra.mxu0 %v3886
    %3907 = vmatprep.subr.mxu0 0.0
    %3908 = vmatpush1.msra.mxu0 %v3887
    %3909 = vmatprep.subr.mxu0 0.0
    %3910 = vmatpush1.msra.mxu0 %v3888
    %3911 = vmatprep.subr.mxu0 0.0
    %3912 = vmatpush1.msra.mxu0 %v3889
    %3913 = vmatprep.subr.mxu0 0.0
    %3914 = vmatpush1.msra.mxu0 %v3890
    %3915 = vmatprep.subr.mxu0 0.0
    %3916 = vmatpush1.msra.mxu0 %v3891
    %3917 = vmatprep.subr.mxu0 0.0
    %3918 = vmatpush1.msra.mxu0 %v3892
    %3919 = vmatprep.subr.mxu0 0.0
    %3920 = vmatpush1.msra.mxu0 0.0
    %3921 = vmatprep.subr.mxu0 0.0
    %3922 = vmatpush1.msra.mxu0 0.0
    %3923 = vmatprep.subr.mxu0 0.0
    %3924 = vmatpush1.msra.mxu0 0.0
    %3925 = vmatprep.subr.mxu0 0.0
    %3926 = vmatpush1.msra.mxu0 0.0
    %3927 = vmatprep.subr.mxu0 0.0
    %3928 = vmatpush1.msra.mxu0 0.0
    %3929 = vmatprep.subr.mxu0 0.0
    %3930 = vmatpush1.msra.mxu0 0.0
    %3931 = vmatprep.subr.mxu0 0.0
    %3932 = vmatpush1.msra.mxu0 0.0
    %3933 = vmatprep.subr.mxu0 0.0
    %3934 = vmatpush1.msra.mxu0 0.0
    %3935 = vmatprep.subr.mxu0 0.0
    %3936 = vmatpush1.msra.mxu0 0.0
    %3937 = vmatprep.subr.mxu0 0.0
    %3938 = vmatpush1.msra.mxu0 0.0
    %3939 = vmatprep.subr.mxu0 0.0
    %3940 = vmatpush1.msra.mxu0 0.0
    %3941 = vmatprep.subr.mxu0 0.0
    %3942 = vmatpush1.msra.mxu0 0.0
    %3943 = vmatprep.subr.mxu0 0.0
    %3944 = vmatpush1.msra.mxu0 0.0
    %3945 = vmatprep.subr.mxu0 0.0
    %3946 = vmatpush1.msra.mxu0 0.0
    %3947 = vmatprep.subr.mxu0 0.0
    %3948 = vmatpush1.msra.mxu0 0.0
    %3949 = vmatprep.subr.mxu0 0.0
    %3950 = vmatpush1.msra.mxu0 0.0
    %3951 = vmatprep.subr.mxu0 0.0
    %3952 = vmatpush1.msra.mxu0 0.0
    %3953 = vmatprep.subr.mxu0 0.0
    %3954 = vmatpush1.msra.mxu0 0.0
    %3955 = vmatprep.subr.mxu0 0.0
    %3956 = vmatpush1.msra.mxu0 0.0
    %3957 = vmatprep.subr.mxu0 0.0
    %3958 = vmatpush1.msra.mxu0 0.0
    %3959 = vmatprep.subr.mxu0 0.0
    %3960 = vmatpush1.msra.mxu0 0.0
    %3961 = vmatprep.subr.mxu0 0.0
    %3962 = vmatpush1.msra.mxu0 0.0
    %3963 = vmatprep.subr.mxu0 0.0
    %3964 = vmatpush1.msra.mxu0 0.0
    %3965 = vmatprep.subr.mxu0 0.0
    %3966 = vmatpush1.msra.mxu0 0.0
    %3967 = vmatprep.mubr.f32.mxu0 0.0
    %3968 = vmatmul.mubr.f32.gmra.mrb[0].mxu0 %v3901
    %v3969 = vpop.f32.mrb[0].mxu0
    %v3970 = vadd.f32 %v3898, %v3969
    %v3971 = vpop.f32.mrb[0].mxu0
    %3972 = vdwg.mxu0
    %vm3973 = vcmask 58368
    %3974 = vst.msk [vmem:[#allocation11] sm:$0x3] %vm3973, %v3970
    // Predicated region
    $region94: #{conv_encoder_forward.1} parent=1 // pred_check
      _
    $region95: #{conv_encoder_forward.1} parent=1 // pred_check_branch
      %3976 = sbr.rel (0) target = $region97
    $region96: #{conv_encoder_forward.1} parent=1 // pred_region
      %s3978 = ssub.s32 32, 32
      %3979 = vsyncadd [#allocation8], %s3978
      %s3981 = sshll.u32 [#allocation11], 4
      %s3982 = int_to_ptr.vmem [resolvable:$true] %s3981
      %3984 = dma.vmem_to_hbm [thread:$0]  %s3982, 32, %s21, [#allocation8]
    $region97: #{conv_encoder_forward.1} parent=1 // pred_fallthru
      _
    // Predicated region
    $region98: #{conv_encoder_forward.1} parent=1 // pred_check
      _
    $region99: #{conv_encoder_forward.1} parent=1 // pred_check_branch
      %3986 = sbr.rel (0) target = $region101
    $region100: #{conv_encoder_forward.1} parent=1 // pred_region
      %3987 = dma.done [#allocation8], 32
    $region101: #{conv_encoder_forward.1} parent=1 // pred_fallthru
      _
    %3988 = vsyncpa [#allocation7], 1
    %3989 = vsyncpa [#allocation10], 1
    %3990 = vsyncpa [#allocation8], 1

</llo_original>
